<compile_context>
chip_gen: v7x
topology: tpu7x:2x2x1
jax: 0.10.0
libtpu: 0.0.40
codegen_flags: <defaults>
</compile_context>

<pallas_src>
import jax
import jax.numpy as jnp
from jax import lax
from jax.experimental import pallas as pl
from jax.experimental.pallas import tpu as pltpu

JITTER = 1e-4  # gpytorch float32 jitter used by VariationalStrategy
LANE = 128


def _round_up(x, m):
    return ((x + m - 1) // m) * m


def _pad2(a, rows, cols):
    out = jnp.zeros((rows, cols), a.dtype)
    return out.at[: a.shape[0], : a.shape[1]].set(a)


# ----------------------------- fused Pallas kernel -----------------------------

def _svgp_fwd_kernel(xi_ref, xj_ref, w1_ref, b1_ref, w2_ref, b2_ref,
                     zs_ref, hzs_ref, a_mid_ref, alpha_ref, log_scale_ref,
                     mean_ref, covar_ref,
                     fs_scr, hsq_scr, t_scr):
    i = pl.program_id(0)
    j = pl.program_id(1)

    def scaled_feats(x):
        # stem MLP; 1/lengthscale is pre-folded into W2/b2 in precompute.
        h = jnp.dot(x, w1_ref[...], preferred_element_type=jnp.float32)
        h = jnp.maximum(h + b1_ref[...], 0.0)
        return jnp.dot(h, w2_ref[...], preferred_element_type=jnp.float32) + b2_ref[...]

    # ---- i (row) block: computed once per row block, cached in VMEM scratch ----
    @pl.when(j == 0)
    def _():
        fs_i = scaled_feats(xi_ref[...])                                # (TM, D)
        hsq_i = 0.5 * jnp.sum(fs_i * fs_i, axis=-1, keepdims=True)      # (TM, 1)
        fz_i = lax.dot_general(fs_i, zs_ref[...], (((1,), (1,)), ((), ())),
                               preferred_element_type=jnp.float32)      # (TM, M)
        # unscaled Kxz (outputscale folded into alpha / a_mid downstream)
        kxz_i = jnp.exp(jnp.minimum(fz_i - hsq_i - hzs_ref[...], 0.0))
        # predictive mean row block, lane-dense (1, TM); alpha = scale * L^{-T} m
        mean_ref[...] = lax.dot_general(alpha_ref[...], kxz_i,
                                        (((1,), (1,)), ((), ())),
                                        preferred_element_type=jnp.float32)
        fs_scr[...] = fs_i
        hsq_scr[...] = hsq_i
        # t_i = Kxz_i @ (scale^2 * L^{-T}(S-I)L^{-1})  -- bf16 MXU path
        t_scr[...] = jnp.dot(kxz_i.astype(jnp.bfloat16), a_mid_ref[...],
                             preferred_element_type=jnp.float32
                             ).astype(jnp.bfloat16)

    # ---- j (column) block: every grid step ----
    fs_j = scaled_feats(xj_ref[...])                                    # (TN, D)
    fsq_j = fs_j * fs_j
    hsq_j = 0.5 * jnp.sum(fsq_j, axis=-1, keepdims=True)                # (TN, 1)
    log_scale = log_scale_ref[0, 0]
    # (1, TN) row of 0.5*||fs_j||^2 - log(scale), built without an XLU transpose
    ones_row = jnp.ones((1, fs_j.shape[-1]), jnp.float32)
    row_adj = 0.5 * lax.dot_general(ones_row, fsq_j, (((1,), (1,)), ((), ())),
                                    preferred_element_type=jnp.float32) - log_scale
    fz_j = lax.dot_general(fs_j, zs_ref[...], (((1,), (1,)), ((), ())),
                           preferred_element_type=jnp.float32)          # (TN, M)
    kxz_j = jnp.exp(jnp.minimum(fz_j - hsq_j - hzs_ref[...], 0.0))

    # Kxx tile = exp(min(-0.5*d^2, 0) + log scale); distance matmul kept in f32
    ff = lax.dot_general(fs_scr[...], fs_j, (((1,), (1,)), ((), ())),
                         preferred_element_type=jnp.float32)            # (TM, TN)
    kxx = jnp.exp(jnp.minimum(ff - hsq_scr[...] - row_adj, log_scale))

    # quadratic form Kxz_i A Kzx_j  -- bf16 MXU path
    quad = lax.dot_general(t_scr[...], kxz_j.astype(jnp.bfloat16),
                           (((1,), (1,)), ((), ())),
                           preferred_element_type=jnp.float32)          # (TM, TN)
    covar_ref[...] = kxx + quad

    # jitter only on diagonal tiles
    @pl.when(i == j)
    def _():
        tm, tn = covar_ref.shape
        r = lax.broadcasted_iota(jnp.int32, (tm, tn), 0)
        c = lax.broadcasted_iota(jnp.int32, (tm, tn), 1)
        covar_ref[...] = covar_ref[...] + jnp.where(r == c, JITTER, 0.0)


# ----------------------- parameter-only precompute (hoisted) -----------------------

def precompute_constants(params):
    """All parameter-only work; run once per parameter set (plain JAX).

    Folds 1/lengthscale into the stem's last layer, outputscale into
    alpha / A / the log-space Kxx exponent, and zero-pads every operand to
    128-lane multiples so the kernel sees clean (8,128) tiles / MXU feeds.
    """
    hp = lax.Precision.HIGHEST
    f32 = jnp.float32

    w1 = params["w1"].astype(f32)
    b1 = params["b1"].astype(f32)
    w2 = params["w2"].astype(f32)
    b2 = params["b2"].astype(f32)
    ls = params["lengthscale"].astype(f32)
    z = params["inducing_points"].astype(f32)
    os_ = jnp.asarray(params["outputscale"], f32)

    in_dim, hid = w1.shape
    m, d = z.shape

    inv_ls = 1.0 / ls
    # stem(x)/lengthscale  ==  relu(x@W1+b1) @ (W2*inv_ls) + b2*inv_ls
    w2s = w2 * inv_ls[None, :]
    b2s = b2 * inv_ls

    zs = z * inv_ls[None, :]
    zs_sq = jnp.sum(zs * zs, axis=-1)

    sq = jnp.maximum(zs_sq[:, None] + zs_sq[None, :]
                     - 2.0 * jnp.dot(zs, zs.T, precision=hp), 0.0)
    kzz = os_ * jnp.exp(-0.5 * sq) + JITTER * jnp.eye(m, dtype=f32)

    # TODO(synk): Cholesky factorization / triangular solve have no clean Pallas
    # TPU equivalent; they are parameter-only and hoisted out of the forward path.
    l = jnp.linalg.cholesky(kzz)
    l_inv = jax.scipy.linalg.solve_triangular(l, jnp.eye(m, dtype=f32), lower=True)

    chol = jnp.tril(params["chol_variational_covar"].astype(f32))
    s = jnp.dot(chol, chol.T, precision=hp)
    mid = s - jnp.eye(m, dtype=f32)
    a_mid = jnp.dot(jnp.dot(l_inv.T, mid, precision=hp), l_inv, precision=hp)   # (M, M)
    alpha = jnp.dot(l_inv.T, params["variational_mean"].astype(f32), precision=hp)

    # fold outputscale (Kxz is emitted unscaled inside the kernel)
    a_mid = (os_ * os_) * a_mid          # scale^2 * L^{-T}(S-I)L^{-1}
    alpha = os_ * alpha                  # scale   * L^{-T} m

    in_pad = _round_up(in_dim, LANE)
    hid_pad = _round_up(hid, LANE)
    d_pad = _round_up(d, LANE)
    m_pad = _round_up(m, LANE)

    return {
        "input_dim": in_dim,
        "in_pad": in_pad,
        "d_pad": d_pad,
        "m_pad": m_pad,
        "w1": _pad2(w1, in_pad, hid_pad),
        "b1": _pad2(b1[None, :], 1, hid_pad),
        "w2": _pad2(w2s, hid_pad, d_pad),
        "b2": _pad2(b2s[None, :], 1, d_pad),
        "zs": _pad2(zs, m_pad, d_pad),
        "half_zs_sq": _pad2(0.5 * zs_sq[None, :], 1, m_pad),
        "a_mid": _pad2(a_mid, m_pad, m_pad).astype(jnp.bfloat16),   # bf16 MXU operand
        "alpha": _pad2(alpha[None, :], 1, m_pad),
        "log_scale": jnp.log(os_).reshape(1, 1),
    }


# ----------------------------- forward wrapper -----------------------------

def svgp_forward(consts, inputs, *, block=128):
    """forward(inputs) = gp(stem(inputs.view(-1, input_dim))) -> (mean, covar)."""
    in_dim = consts["input_dim"]
    in_pad = consts["in_pad"]
    x = inputs.reshape(-1, in_dim).astype(jnp.float32)       # inputs.view(-1, input_dim)
    n = x.shape[0]
    n_pad = _round_up(n, block)
    g = n_pad // block
    x_pad = jnp.zeros((n_pad, in_pad), jnp.float32).at[:n, :in_dim].set(x)

    def const_spec(arr):   # parameter operands: DMA'd once, resident across the grid
        return pl.BlockSpec(arr.shape, lambda i, j: (0, 0))

    mean_row, covar = pl.pallas_call(
        _svgp_fwd_kernel,
        out_shape=(jax.ShapeDtypeStruct((1, n_pad), jnp.float32),
                   jax.ShapeDtypeStruct((n_pad, n_pad), jnp.float32)),
        grid=(g, g),
        in_specs=[
            pl.BlockSpec((block, in_pad), lambda i, j: (i, 0)),   # x, row (i) block
            pl.BlockSpec((block, in_pad), lambda i, j: (j, 0)),   # x, col (j) block
            const_spec(consts["w1"]),
            const_spec(consts["b1"]),
            const_spec(consts["w2"]),
            const_spec(consts["b2"]),
            const_spec(consts["zs"]),
            const_spec(consts["half_zs_sq"]),
            const_spec(consts["a_mid"]),
            const_spec(consts["alpha"]),
            pl.BlockSpec((1, 1), lambda i, j: (0, 0),
                         memory_space=pltpu.MemorySpace.SMEM),    # log(outputscale)
        ],
        out_specs=(
            pl.BlockSpec((1, block), lambda i, j: (0, i)),        # mean, lane-dense row
            pl.BlockSpec((block, block), lambda i, j: (i, j)),    # covar tile
        ),
        scratch_shapes=[
            pltpu.VMEM((block, consts["d_pad"]), jnp.float32),    # fs_i
            pltpu.VMEM((block, 1), jnp.float32),                  # 0.5*||fs_i||^2
            pltpu.VMEM((block, consts["m_pad"]), jnp.bfloat16),   # Kxz_i @ A'
        ],
        compiler_params=pltpu.CompilerParams(
            dimension_semantics=("parallel", "arbitrary"),
            vmem_limit_bytes=32 * 1024 * 1024,
        ),
    )(x_pad, x_pad, consts["w1"], consts["b1"], consts["w2"], consts["b2"],
      consts["zs"], consts["half_zs_sq"], consts["a_mid"], consts["alpha"],
      consts["log_scale"])

    return mean_row[0, :n], covar[:n, :n]


# ----------------------------- pure JAX reference -----------------------------

def reference_forward(params, inputs):
    hp = lax.Precision.HIGHEST
    x = inputs.reshape(-1, params["w1"].shape[0]).astype(jnp.float32)
    h = jnp.maximum(jnp.dot(x, params["w1"], precision=hp) + params["b1"], 0.0)
    feats = jnp.dot(h, params["w2"], precision=hp) + params["b2"]

    def k(a, b):
        a = a / params["lengthscale"]
        b = b / params["lengthscale"]
        sq = (jnp.sum(a * a, -1)[:, None] + jnp.sum(b * b, -1)[None, :]
              - 2.0 * jnp.dot(a, b.T, precision=hp))
        return params["outputscale"] * jnp.exp(-0.5 * jnp.maximum(sq, 0.0))

    z = params["inducing_points"]
    num_ind = z.shape[0]
    kzz = k(z, z) + JITTER * jnp.eye(num_ind, dtype=jnp.float32)
    kxz = k(feats, z)
    kxx = k(feats, feats)
    l = jnp.linalg.cholesky(kzz)
    interp = jax.scipy.linalg.solve_triangular(l, kxz.T, lower=True)
    chol = jnp.tril(params["chol_variational_covar"])
    s = chol @ chol.T
    mean = interp.T @ params["variational_mean"]
    n = feats.shape[0]
    covar = (kxx + JITTER * jnp.eye(n, dtype=jnp.float32)
             + interp.T @ (s - jnp.eye(num_ind, dtype=jnp.float32)) @ interp)
    return mean, covar


# ----------------------------- main -----------------------------

if __name__ == "__main__":
    # batch=200 -> padded N=256, grid=(2,2): exercises diagonal/off-diagonal tiles,
    # scratch reuse across j, the gated mean write, and the parallel row axis.
    # NOTE: at these sizes wall-clock is dominated by launch/per-step overhead;
    # the structural tiling only pays off at production N/M.
    batch, input_dim, hidden, feat_dim, num_inducing = 200, 16, 32, 8, 16

    keys = jax.random.split(jax.random.PRNGKey(0), 8)
    params = {
        # stem: Linear(input_dim, hidden) -> ReLU -> Linear(hidden, feat_dim)
        "w1": 0.2 * jax.random.normal(keys[0], (input_dim, hidden), jnp.float32),
        "b1": 0.05 * jax.random.normal(keys[1], (hidden,), jnp.float32),
        "w2": 0.2 * jax.random.normal(keys[2], (hidden, feat_dim), jnp.float32),
        "b2": 0.05 * jax.random.normal(keys[3], (feat_dim,), jnp.float32),
        # GP: inducing_points.uniform_(-1, 1), ScaleKernel(RBFKernel(ard_num_dims=feat_dim))
        "inducing_points": jax.random.uniform(
            keys[4], (num_inducing, feat_dim), jnp.float32, -1.0, 1.0),
        "lengthscale": 1.0 + jax.random.uniform(keys[5], (feat_dim,), jnp.float32, 0.0, 1.0),
        "outputscale": jnp.float32(1.5),
        # CholeskyVariationalDistribution: mean (M,), lower-tri chol of S (M, M)
        "variational_mean": 0.1 * jax.random.normal(keys[6], (num_inducing,), jnp.float32),
        "chol_variational_covar": jnp.eye(num_inducing, dtype=jnp.float32)
            + 0.01 * jax.random.normal(keys[7], (num_inducing, num_inducing), jnp.float32),
    }

    x = jax.random.normal(jax.random.PRNGKey(1), (batch, input_dim), jnp.float32)

    # Parameter-only precompute (hoisted out of the per-forward path).
    consts = precompute_constants(params)
    jax.block_until_ready([v for v in consts.values() if isinstance(v, jax.Array)])

    mean, covar = svgp_forward(consts, x)
    jax.block_until_ready((mean, covar))

    ref_mean, ref_covar = reference_forward(params, x)
    assert mean.shape == (batch,) and covar.shape == (batch, batch)
    assert bool(jnp.all(jnp.isfinite(mean))) and bool(jnp.all(jnp.isfinite(covar)))
    # mean path is all-f32; the covariance quad form uses the bf16 MXU path,
    # so its tolerance is slightly looser than pure-f32.
    assert jnp.allclose(mean, ref_mean, rtol=5e-3, atol=5e-3)
    assert jnp.allclose(covar, ref_covar, rtol=1e-2, atol=1e-2)

    print("KERNEL_OK")
</pallas_src>

<mosaic_0001>
module attributes {stable_mosaic.version = 11 : i64} {
  func.func @_svgp_fwd_kernel(%arg0: i32, %arg1: i32, %arg2: memref<128x128xf32, #tpu.memory_space<vmem>>, %arg3: memref<128x128xf32, #tpu.memory_space<vmem>>, %arg4: memref<128x128xf32, #tpu.memory_space<vmem>>, %arg5: memref<1x128xf32, #tpu.memory_space<vmem>>, %arg6: memref<128x128xf32, #tpu.memory_space<vmem>>, %arg7: memref<1x128xf32, #tpu.memory_space<vmem>>, %arg8: memref<128x128xf32, #tpu.memory_space<vmem>>, %arg9: memref<1x128xf32, #tpu.memory_space<vmem>>, %arg10: memref<128x128xbf16, #tpu.memory_space<vmem>>, %arg11: memref<1x128xf32, #tpu.memory_space<vmem>>, %arg12: memref<1x1xf32, #tpu.memory_space<smem>>, %arg13: memref<1x128xf32, #tpu.memory_space<vmem>>, %arg14: memref<128x128xf32, #tpu.memory_space<vmem>>, %arg15: memref<128x128xf32, #tpu.memory_space<vmem>>, %arg16: memref<128x1xf32, #tpu.memory_space<vmem>>, %arg17: memref<128x128xbf16, #tpu.memory_space<vmem>>) attributes {dimension_semantics = [#tpu.dimension_semantics<parallel>, #tpu.dimension_semantics<arbitrary>], iteration_bounds = array<i64: 2, 2>, scalar_prefetch = 0 : i64, scratch_operands = 3 : i64, tpu.core_type = #tpu.core_type<tc>, window_params = [{transform_indices = @transform_0, window_bounds = array<i64: 128, 128>}, {transform_indices = @transform_1, window_bounds = array<i64: 128, 128>}, {pipeline_mode = #tpu.pipeline_mode<synchronous>, transform_indices = @transform_2, window_bounds = array<i64: 128, 128>}, {pipeline_mode = #tpu.pipeline_mode<synchronous>, transform_indices = @transform_3, window_bounds = array<i64: 1, 128>}, {pipeline_mode = #tpu.pipeline_mode<synchronous>, transform_indices = @transform_4, window_bounds = array<i64: 128, 128>}, {pipeline_mode = #tpu.pipeline_mode<synchronous>, transform_indices = @transform_5, window_bounds = array<i64: 1, 128>}, {pipeline_mode = #tpu.pipeline_mode<synchronous>, transform_indices = @transform_6, window_bounds = array<i64: 128, 128>}, {pipeline_mode = #tpu.pipeline_mode<synchronous>, transform_indices = @transform_7, window_bounds = array<i64: 1, 128>}, {pipeline_mode = #tpu.pipeline_mode<synchronous>, transform_indices = @transform_8, window_bounds = array<i64: 128, 128>}, {pipeline_mode = #tpu.pipeline_mode<synchronous>, transform_indices = @transform_9, window_bounds = array<i64: 1, 128>}, {transform_indices = @transform_10, window_bounds = array<i64: 1, 1>}, {transform_indices = @transform_11, window_bounds = array<i64: 1, 128>}, {transform_indices = @transform_12, window_bounds = array<i64: 128, 128>}]} {
    %c0_i32 = arith.constant 0 : i32
    %0 = arith.cmpi eq, %arg1, %c0_i32 : i32
    %1 = arith.extui %0 : i1 to i32
    %c0_i32_0 = arith.constant 0 : i32
    %2 = arith.cmpi ne, %1, %c0_i32_0 : i32
    scf.if %2 {
      %c0_36 = arith.constant 0 : index
      %c0_37 = arith.constant 0 : index
      %56 = vector.load %arg2[%c0_36, %c0_37] : memref<128x128xf32, #tpu.memory_space<vmem>>, vector<128x128xf32>
      %c0_38 = arith.constant 0 : index
      %c0_39 = arith.constant 0 : index
      %57 = vector.load %arg4[%c0_38, %c0_39] : memref<128x128xf32, #tpu.memory_space<vmem>>, vector<128x128xf32>
      %cst_40 = arith.constant dense<0.000000e+00> : vector<128x128xf32>
      %58 = tpu.matmul %56, %57, %cst_40 {dimension_numbers = #tpu.dot_dimension_numbers<[1], [0], [0], [1], [0, 0, 1, 1], [], []>} : vector<128x128xf32>, vector<128x128xf32>, vector<128x128xf32> -> vector<128x128xf32>
      %c0_41 = arith.constant 0 : index
      %c0_42 = arith.constant 0 : index
      %59 = vector.load %arg5[%c0_41, %c0_42] : memref<1x128xf32, #tpu.memory_space<vmem>>, vector<1x128xf32>
      %60 = vector.broadcast %59 : vector<1x128xf32> to vector<128x128xf32>
      %61 = arith.addf %58, %60 : vector<128x128xf32>
      %cst_43 = arith.constant 0.000000e+00 : f32
      %62 = vector.broadcast %cst_43 : f32 to vector<128x128xf32>
      %63 = arith.maximumf %61, %62 : vector<128x128xf32>
      %c0_44 = arith.constant 0 : index
      %c0_45 = arith.constant 0 : index
      %64 = vector.load %arg6[%c0_44, %c0_45] : memref<128x128xf32, #tpu.memory_space<vmem>>, vector<128x128xf32>
      %cst_46 = arith.constant dense<0.000000e+00> : vector<128x128xf32>
      %65 = tpu.matmul %63, %64, %cst_46 {dimension_numbers = #tpu.dot_dimension_numbers<[1], [0], [0], [1], [0, 0, 1, 1], [], []>} : vector<128x128xf32>, vector<128x128xf32>, vector<128x128xf32> -> vector<128x128xf32>
      %c0_47 = arith.constant 0 : index
      %c0_48 = arith.constant 0 : index
      %66 = vector.load %arg7[%c0_47, %c0_48] : memref<1x128xf32, #tpu.memory_space<vmem>>, vector<1x128xf32>
      %67 = vector.broadcast %66 : vector<1x128xf32> to vector<128x128xf32>
      %68 = arith.addf %65, %67 : vector<128x128xf32>
      %69 = arith.mulf %68, %68 : vector<128x128xf32>
      %cst_49 = arith.constant dense<0.000000e+00> : vector<128xf32>
      %70 = vector.multi_reduction <add>, %69, %cst_49 [1] : vector<128x128xf32> to vector<128xf32>
      %71 = vector.shape_cast %70 : vector<128xf32> to vector<128x1xf32>
      %cst_50 = arith.constant 5.000000e-01 : f32
      %72 = vector.broadcast %cst_50 : f32 to vector<128x1xf32>
      %73 = arith.mulf %72, %71 : vector<128x1xf32>
      %c0_51 = arith.constant 0 : index
      %c0_52 = arith.constant 0 : index
      %74 = vector.load %arg8[%c0_51, %c0_52] : memref<128x128xf32, #tpu.memory_space<vmem>>, vector<128x128xf32>
      %cst_53 = arith.constant dense<0.000000e+00> : vector<128x128xf32>
      %75 = tpu.matmul %68, %74, %cst_53 {dimension_numbers = #tpu.dot_dimension_numbers<[1], [1], [0], [0], [0, 0, 1, 0], [], []>} : vector<128x128xf32>, vector<128x128xf32>, vector<128x128xf32> -> vector<128x128xf32>
      %76 = vector.broadcast %73 : vector<128x1xf32> to vector<128x128xf32>
      %77 = arith.subf %75, %76 : vector<128x128xf32>
      %c0_54 = arith.constant 0 : index
      %c0_55 = arith.constant 0 : index
      %78 = vector.load %arg9[%c0_54, %c0_55] : memref<1x128xf32, #tpu.memory_space<vmem>>, vector<1x128xf32>
      %79 = vector.broadcast %78 : vector<1x128xf32> to vector<128x128xf32>
      %80 = arith.subf %77, %79 : vector<128x128xf32>
      %cst_56 = arith.constant 0.000000e+00 : f32
      %81 = vector.broadcast %cst_56 : f32 to vector<128x128xf32>
      %82 = arith.minimumf %80, %81 : vector<128x128xf32>
      %83 = math.exp %82 : vector<128x128xf32>
      %c0_57 = arith.constant 0 : index
      %c0_58 = arith.constant 0 : index
      %84 = vector.load %arg11[%c0_57, %c0_58] : memref<1x128xf32, #tpu.memory_space<vmem>>, vector<1x128xf32>
      %cst_59 = arith.constant dense<0.000000e+00> : vector<1x128xf32>
      %85 = tpu.matmul %84, %83, %cst_59 {dimension_numbers = #tpu.dot_dimension_numbers<[1], [1], [0], [0], [0, 0, 1, 0], [], []>} : vector<1x128xf32>, vector<128x128xf32>, vector<1x128xf32> -> vector<1x128xf32>
      %c0_60 = arith.constant 0 : index
      %c0_61 = arith.constant 0 : index
      %86 = vector.load %arg13[%c0_60, %c0_61] : memref<1x128xf32, #tpu.memory_space<vmem>>, vector<1x128xf32>
      tpu.vector_store %arg13[%c0_60, %c0_61], %85 {strides = array<i32>} : memref<1x128xf32, #tpu.memory_space<vmem>>, vector<1x128xf32>,
      %c0_62 = arith.constant 0 : index
      %c0_63 = arith.constant 0 : index
      %87 = vector.load %arg15[%c0_62, %c0_63] : memref<128x128xf32, #tpu.memory_space<vmem>>, vector<128x128xf32>
      tpu.vector_store %arg15[%c0_62, %c0_63], %68 {strides = array<i32>} : memref<128x128xf32, #tpu.memory_space<vmem>>, vector<128x128xf32>,
      %c0_64 = arith.constant 0 : index
      %c0_65 = arith.constant 0 : index
      %88 = vector.load %arg16[%c0_64, %c0_65] : memref<128x1xf32, #tpu.memory_space<vmem>>, vector<128x1xf32>
      tpu.vector_store %arg16[%c0_64, %c0_65], %73 {strides = array<i32>} : memref<128x1xf32, #tpu.memory_space<vmem>>, vector<128x1xf32>,
      %89 = arith.truncf %83 : vector<128x128xf32> to vector<128x128xbf16>
      %c0_66 = arith.constant 0 : index
      %c0_67 = arith.constant 0 : index
      %90 = vector.load %arg10[%c0_66, %c0_67] : memref<128x128xbf16, #tpu.memory_space<vmem>>, vector<128x128xbf16>
      %cst_68 = arith.constant dense<0.000000e+00> : vector<128x128xf32>
      %91 = tpu.matmul %89, %90, %cst_68 {dimension_numbers = #tpu.dot_dimension_numbers<[1], [0], [0], [1], [0, 0, 1, 1], [], []>} : vector<128x128xbf16>, vector<128x128xbf16>, vector<128x128xf32> -> vector<128x128xf32>
      %92 = arith.truncf %91 : vector<128x128xf32> to vector<128x128xbf16>
      %c0_69 = arith.constant 0 : index
      %c0_70 = arith.constant 0 : index
      %93 = vector.load %arg17[%c0_69, %c0_70] : memref<128x128xbf16, #tpu.memory_space<vmem>>, vector<128x128xbf16>
      tpu.vector_store %arg17[%c0_69, %c0_70], %92 {strides = array<i32>} : memref<128x128xbf16, #tpu.memory_space<vmem>>, vector<128x128xbf16>,
    } else {
    }
    %c0 = arith.constant 0 : index
    %c0_1 = arith.constant 0 : index
    %3 = vector.load %arg3[%c0, %c0_1] : memref<128x128xf32, #tpu.memory_space<vmem>>, vector<128x128xf32>
    %c0_2 = arith.constant 0 : index
    %c0_3 = arith.constant 0 : index
    %4 = vector.load %arg4[%c0_2, %c0_3] : memref<128x128xf32, #tpu.memory_space<vmem>>, vector<128x128xf32>
    %cst = arith.constant dense<0.000000e+00> : vector<128x128xf32>
    %5 = tpu.matmul %3, %4, %cst {dimension_numbers = #tpu.dot_dimension_numbers<[1], [0], [0], [1], [0, 0, 1, 1], [], []>} : vector<128x128xf32>, vector<128x128xf32>, vector<128x128xf32> -> vector<128x128xf32>
    %c0_4 = arith.constant 0 : index
    %c0_5 = arith.constant 0 : index
    %6 = vector.load %arg5[%c0_4, %c0_5] : memref<1x128xf32, #tpu.memory_space<vmem>>, vector<1x128xf32>
    %7 = vector.broadcast %6 : vector<1x128xf32> to vector<128x128xf32>
    %8 = arith.addf %5, %7 : vector<128x128xf32>
    %cst_6 = arith.constant 0.000000e+00 : f32
    %9 = vector.broadcast %cst_6 : f32 to vector<128x128xf32>
    %10 = arith.maximumf %8, %9 : vector<128x128xf32>
    %c0_7 = arith.constant 0 : index
    %c0_8 = arith.constant 0 : index
    %11 = vector.load %arg6[%c0_7, %c0_8] : memref<128x128xf32, #tpu.memory_space<vmem>>, vector<128x128xf32>
    %cst_9 = arith.constant dense<0.000000e+00> : vector<128x128xf32>
    %12 = tpu.matmul %10, %11, %cst_9 {dimension_numbers = #tpu.dot_dimension_numbers<[1], [0], [0], [1], [0, 0, 1, 1], [], []>} : vector<128x128xf32>, vector<128x128xf32>, vector<128x128xf32> -> vector<128x128xf32>
    %c0_10 = arith.constant 0 : index
    %c0_11 = arith.constant 0 : index
    %13 = vector.load %arg7[%c0_10, %c0_11] : memref<1x128xf32, #tpu.memory_space<vmem>>, vector<1x128xf32>
    %14 = vector.broadcast %13 : vector<1x128xf32> to vector<128x128xf32>
    %15 = arith.addf %12, %14 : vector<128x128xf32>
    %16 = arith.mulf %15, %15 : vector<128x128xf32>
    %cst_12 = arith.constant dense<0.000000e+00> : vector<128xf32>
    %17 = vector.multi_reduction <add>, %16, %cst_12 [1] : vector<128x128xf32> to vector<128xf32>
    %18 = vector.shape_cast %17 : vector<128xf32> to vector<128x1xf32>
    %cst_13 = arith.constant 5.000000e-01 : f32
    %19 = vector.broadcast %cst_13 : f32 to vector<128x1xf32>
    %20 = arith.mulf %19, %18 : vector<128x1xf32>
    %c0_14 = arith.constant 0 : index
    %c0_15 = arith.constant 0 : index
    %21 = memref.load %arg12[%c0_14, %c0_15] : memref<1x1xf32, #tpu.memory_space<smem>>
    %cst_16 = arith.constant 1.000000e+00 : f32
    %22 = vector.broadcast %cst_16 : f32 to vector<1x128xf32>
    %cst_17 = arith.constant dense<0.000000e+00> : vector<1x128xf32>
    %23 = tpu.matmul %22, %16, %cst_17 {dimension_numbers = #tpu.dot_dimension_numbers<[1], [1], [0], [0], [0, 0, 1, 0], [], []>} : vector<1x128xf32>, vector<128x128xf32>, vector<1x128xf32> -> vector<1x128xf32>
    %cst_18 = arith.constant 5.000000e-01 : f32
    %24 = vector.broadcast %cst_18 : f32 to vector<1x128xf32>
    %25 = arith.mulf %24, %23 : vector<1x128xf32>
    %26 = vector.broadcast %21 : f32 to vector<1x128xf32>
    %27 = arith.subf %25, %26 : vector<1x128xf32>
    %c0_19 = arith.constant 0 : index
    %c0_20 = arith.constant 0 : index
    %28 = vector.load %arg8[%c0_19, %c0_20] : memref<128x128xf32, #tpu.memory_space<vmem>>, vector<128x128xf32>
    %cst_21 = arith.constant dense<0.000000e+00> : vector<128x128xf32>
    %29 = tpu.matmul %15, %28, %cst_21 {dimension_numbers = #tpu.dot_dimension_numbers<[1], [1], [0], [0], [0, 0, 1, 0], [], []>} : vector<128x128xf32>, vector<128x128xf32>, vector<128x128xf32> -> vector<128x128xf32>
    %30 = vector.broadcast %20 : vector<128x1xf32> to vector<128x128xf32>
    %31 = arith.subf %29, %30 : vector<128x128xf32>
    %c0_22 = arith.constant 0 : index
    %c0_23 = arith.constant 0 : index
    %32 = vector.load %arg9[%c0_22, %c0_23] : memref<1x128xf32, #tpu.memory_space<vmem>>, vector<1x128xf32>
    %33 = vector.broadcast %32 : vector<1x128xf32> to vector<128x128xf32>
    %34 = arith.subf %31, %33 : vector<128x128xf32>
    %cst_24 = arith.constant 0.000000e+00 : f32
    %35 = vector.broadcast %cst_24 : f32 to vector<128x128xf32>
    %36 = arith.minimumf %34, %35 : vector<128x128xf32>
    %37 = math.exp %36 : vector<128x128xf32>
    %c0_25 = arith.constant 0 : index
    %c0_26 = arith.constant 0 : index
    %38 = vector.load %arg15[%c0_25, %c0_26] : memref<128x128xf32, #tpu.memory_space<vmem>>, vector<128x128xf32>
    %cst_27 = arith.constant dense<0.000000e+00> : vector<128x128xf32>
    %39 = tpu.matmul %38, %15, %cst_27 {dimension_numbers = #tpu.dot_dimension_numbers<[1], [1], [0], [0], [0, 0, 1, 0], [], []>} : vector<128x128xf32>, vector<128x128xf32>, vector<128x128xf32> -> vector<128x128xf32>
    %c0_28 = arith.constant 0 : index
    %c0_29 = arith.constant 0 : index
    %40 = vector.load %arg16[%c0_28, %c0_29] : memref<128x1xf32, #tpu.memory_space<vmem>>, vector<128x1xf32>
    %41 = vector.broadcast %40 : vector<128x1xf32> to vector<128x128xf32>
    %42 = arith.subf %39, %41 : vector<128x128xf32>
    %43 = vector.broadcast %27 : vector<1x128xf32> to vector<128x128xf32>
    %44 = arith.subf %42, %43 : vector<128x128xf32>
    %45 = vector.broadcast %21 : f32 to vector<128x128xf32>
    %46 = arith.minimumf %44, %45 : vector<128x128xf32>
    %47 = math.exp %46 : vector<128x128xf32>
    %c0_30 = arith.constant 0 : index
    %c0_31 = arith.constant 0 : index
    %48 = vector.load %arg17[%c0_30, %c0_31] : memref<128x128xbf16, #tpu.memory_space<vmem>>, vector<128x128xbf16>
    %49 = arith.truncf %37 : vector<128x128xf32> to vector<128x128xbf16>
    %cst_32 = arith.constant dense<0.000000e+00> : vector<128x128xf32>
    %50 = tpu.matmul %48, %49, %cst_32 {dimension_numbers = #tpu.dot_dimension_numbers<[1], [1], [0], [0], [0, 0, 1, 0], [], []>} : vector<128x128xbf16>, vector<128x128xbf16>, vector<128x128xf32> -> vector<128x128xf32>
    %51 = arith.addf %47, %50 : vector<128x128xf32>
    %c0_33 = arith.constant 0 : index
    %c0_34 = arith.constant 0 : index
    %52 = vector.load %arg14[%c0_33, %c0_34] : memref<128x128xf32, #tpu.memory_space<vmem>>, vector<128x128xf32>
    tpu.vector_store %arg14[%c0_33, %c0_34], %51 {strides = array<i32>} : memref<128x128xf32, #tpu.memory_space<vmem>>, vector<128x128xf32>,
    %53 = arith.cmpi eq, %arg0, %arg1 : i32
    %54 = arith.extui %53 : i1 to i32
    %c0_i32_35 = arith.constant 0 : i32
    %55 = arith.cmpi ne, %54, %c0_i32_35 : i32
    scf.if %55 {
      %56 = tpu.iota {dimensions = array<i32: 0>} : vector<128x128xi32>
      %57 = tpu.iota {dimensions = array<i32: 1>} : vector<128x128xi32>
      %c0_36 = arith.constant 0 : index
      %c0_37 = arith.constant 0 : index
      %58 = vector.load %arg14[%c0_36, %c0_37] : memref<128x128xf32, #tpu.memory_space<vmem>>, vector<128x128xf32>
      %59 = arith.cmpi eq, %56, %57 : vector<128x128xi32>
      %cst_38 = arith.constant 9.99999974E-5 : f32
      %cst_39 = arith.constant 0.000000e+00 : f32
      %60 = vector.broadcast %cst_38 : f32 to vector<128x128xf32>
      %61 = vector.broadcast %cst_39 : f32 to vector<128x128xf32>
      %62 = arith.select %59, %60, %61 : vector<128x128xi1>, vector<128x128xf32>
      %63 = arith.addf %58, %62 : vector<128x128xf32>
      %c0_40 = arith.constant 0 : index
      %c0_41 = arith.constant 0 : index
      %64 = vector.load %arg14[%c0_40, %c0_41] : memref<128x128xf32, #tpu.memory_space<vmem>>, vector<128x128xf32>
      tpu.vector_store %arg14[%c0_40, %c0_41], %63 {strides = array<i32>} : memref<128x128xf32, #tpu.memory_space<vmem>>, vector<128x128xf32>,
    } else {
    }
    return
  }
  func.func @transform_0(%arg0: i32, %arg1: i32) -> (i32, i32) {
    %c0_i32 = arith.constant 0 : i32
    %c0_i32_0 = arith.constant 0 : i32
    return %arg0, %c0_i32 : i32, i32
  }
  func.func @transform_1(%arg0: i32, %arg1: i32) -> (i32, i32) {
    %c0_i32 = arith.constant 0 : i32
    %c0_i32_0 = arith.constant 0 : i32
    return %arg1, %c0_i32 : i32, i32
  }
  func.func @transform_2(%arg0: i32, %arg1: i32) -> (i32, i32) {
    %c0_i32 = arith.constant 0 : i32
    %c0_i32_0 = arith.constant 0 : i32
    %c0_i32_1 = arith.constant 0 : i32
    return %c0_i32, %c0_i32_0 : i32, i32
  }
  func.func @transform_3(%arg0: i32, %arg1: i32) -> (i32, i32) {
    %c0_i32 = arith.constant 0 : i32
    %c0_i32_0 = arith.constant 0 : i32
    %c0_i32_1 = arith.constant 0 : i32
    return %c0_i32, %c0_i32_0 : i32, i32
  }
  func.func @transform_4(%arg0: i32, %arg1: i32) -> (i32, i32) {
    %c0_i32 = arith.constant 0 : i32
    %c0_i32_0 = arith.constant 0 : i32
    %c0_i32_1 = arith.constant 0 : i32
    return %c0_i32, %c0_i32_0 : i32, i32
  }
  func.func @transform_5(%arg0: i32, %arg1: i32) -> (i32, i32) {
    %c0_i32 = arith.constant 0 : i32
    %c0_i32_0 = arith.constant 0 : i32
    %c0_i32_1 = arith.constant 0 : i32
    return %c0_i32, %c0_i32_0 : i32, i32
  }
  func.func @transform_6(%arg0: i32, %arg1: i32) -> (i32, i32) {
    %c0_i32 = arith.constant 0 : i32
    %c0_i32_0 = arith.constant 0 : i32
    %c0_i32_1 = arith.constant 0 : i32
    return %c0_i32, %c0_i32_0 : i32, i32
  }
  func.func @transform_7(%arg0: i32, %arg1: i32) -> (i32, i32) {
    %c0_i32 = arith.constant 0 : i32
    %c0_i32_0 = arith.constant 0 : i32
    %c0_i32_1 = arith.constant 0 : i32
    return %c0_i32, %c0_i32_0 : i32, i32
  }
  func.func @transform_8(%arg0: i32, %arg1: i32) -> (i32, i32) {
    %c0_i32 = arith.constant 0 : i32
    %c0_i32_0 = arith.constant 0 : i32
    %c0_i32_1 = arith.constant 0 : i32
    return %c0_i32, %c0_i32_0 : i32, i32
  }
  func.func @transform_9(%arg0: i32, %arg1: i32) -> (i32, i32) {
    %c0_i32 = arith.constant 0 : i32
    %c0_i32_0 = arith.constant 0 : i32
    %c0_i32_1 = arith.constant 0 : i32
    return %c0_i32, %c0_i32_0 : i32, i32
  }
  func.func @transform_10(%arg0: i32, %arg1: i32) -> (i32, i32) {
    %c0_i32 = arith.constant 0 : i32
    %c0_i32_0 = arith.constant 0 : i32
    %c0_i32_1 = arith.constant 0 : i32
    return %c0_i32, %c0_i32_0 : i32, i32
  }
  func.func @transform_11(%arg0: i32, %arg1: i32) -> (i32, i32) {
    %c0_i32 = arith.constant 0 : i32
    %c0_i32_0 = arith.constant 0 : i32
    return %c0_i32, %arg0 : i32, i32
  }
  func.func @transform_12(%arg0: i32, %arg1: i32) -> (i32, i32) {
    %c0_i32 = arith.constant 0 : i32
    return %arg0, %arg1 : i32, i32
  }
}

</mosaic_0001>

<llo_original>
// kernel: tpu_custom_call.1
$region0: #{tpu_custom_call.1}
  #allocation0 [shape = 'u32[]', space=smem, size = 0x4, offset = 0x4, fixed_abs, tag = 'smem constant byte address 0x4 - core index']
  #allocation1 [shape = 'u32[144,128]{1,0:T(1,128)}', space=vmem, size = 0x12000, scoped, tag = 'internal scratch']
  #allocation2 [shape = 'f32[128,128]{1,0:T(8,128)}', space=vmem, size = 0x10000, scoped, tag = 'scratch operand']
  #allocation3 [shape = 'f32[128,1]{1,0:T(8,128)}', space=vmem, size = 0x10000, scoped, tag = 'scratch operand']
  #allocation4 [shape = 'bf16[128,128]{1,0:T(16,128)(2,1)}', space=vmem, size = 0x8000, scoped, tag = 'scratch operand']
  #allocation5 [shape = 'f32[1,1]{1,0:T(1,128)S(6)}', space=smem, size = 0x200, scoped, tag = 'scoped memory for tpu_custom_call.1']
  %s0 = inlined_call_operand.hbm [shape: f32[256,128], index: 0, kind: input, shape index: {}]
  %s1 = inlined_call_operand.hbm [shape: f32[256,128], index: 1, kind: input, shape index: {}]
  %s2 = inlined_call_operand.hbm [shape: f32[128,128], index: 2, kind: input, shape index: {}]
  %s3 = inlined_call_operand.vmem [shape: f32[1,128], index: 3, kind: input, shape index: {}]
  %s4 = inlined_call_operand.hbm [shape: f32[128,128], index: 4, kind: input, shape index: {}]
  %s5 = inlined_call_operand.vmem [shape: f32[1,128], index: 5, kind: input, shape index: {}]
  %s6 = inlined_call_operand.hbm [shape: f32[128,128], index: 6, kind: input, shape index: {}]
  %s7 = inlined_call_operand.vmem [shape: f32[1,128], index: 7, kind: input, shape index: {}]
  %s8 = inlined_call_operand.hbm [shape: bf16[128,128], index: 8, kind: input, shape index: {}]
  %s9 = inlined_call_operand.vmem [shape: f32[1,128], index: 9, kind: input, shape index: {}]
  %s10 = inlined_call_operand.<no memory space> [shape: f32[1,1], index: 10, kind: input, shape index: {}]
  %s11 = inlined_call_operand.hbm [shape: f32[1,256], index: 11, kind: output, shape index: {0}]
  %s12 = inlined_call_operand.hbm [shape: f32[256,256], index: 12, kind: output, shape index: {1}]
  %13 = xla_tuple %s11, %s12
  %s14 = sld [smem:[#allocation0]]
  $region117: #{tpu_custom_call.1} parent=0
    _
  %s16 = ssub.s32 1, %s14
  %s17 = scalar_select 0, %s16, %s14
  %18 = sst [smem:[#allocation5]] %s10
  $region1: #{tpu_custom_call.1} parent=0
    #allocation6 [shape = 'u8[131072]{0}', space=vmem, size = 0x20000, scoped, tag = 'input window, operand 0']
    #allocation7 [shape = 's32[2]{0}', space=sflag, size = 0x8, scoped, tag = 'scoped memory for tpu_custom_call.1']
    #allocation8 [shape = 's32[2]{0}', space=sflag, size = 0x8, scoped, tag = 'scoped memory for tpu_custom_call.1']
    #allocation9 [shape = 'u8[131072]{0}', space=vmem, size = 0x20000, scoped, tag = 'input window, operand 1']
    #allocation10 [shape = 's32[2]{0}', space=sflag, size = 0x8, scoped, tag = 'scoped memory for tpu_custom_call.1']
    #allocation11 [shape = 'u8[65536]{0}', space=vmem, size = 0x10000, scoped, tag = 'input window, operand 2, single buffered']
    #allocation12 [shape = 'u8[65536]{0}', space=vmem, size = 0x10000, scoped, tag = 'input window, operand 4, single buffered']
    #allocation13 [shape = 's32[1]{0}', space=sflag, size = 0x4, scoped, tag = 'scoped memory for tpu_custom_call.1']
    #allocation14 [shape = 'u8[65536]{0}', space=vmem, size = 0x10000, scoped, tag = 'input window, operand 6, single buffered']
    #allocation15 [shape = 'u8[32768]{0}', space=vmem, size = 0x8000, scoped, tag = 'input window, operand 8, single buffered']
    #allocation16 [shape = 's32[1]{0}', space=sflag, size = 0x4, scoped, tag = 'scoped memory for tpu_custom_call.1']
    #allocation17 [shape = 'u8[1024]{0}', space=vmem, size = 0x400, scoped, tag = 'output window, operand 0']
    #allocation18 [shape = 'u8[131072]{0}', space=vmem, size = 0x20000, scoped, tag = 'output window, operand 1']
    #allocation19 [shape = 's32[2]{0}', space=sflag, size = 0x8, scoped, tag = 'scoped memory for tpu_custom_call.1']
    %19 = vsyncpa [#allocation7], 0
    %s20 = scalar_lea.sflag [#allocation7], 1
    %21 = vsyncpa %s20, 0
    %22 = vsyncpa [#allocation10], 0
    %s23 = scalar_lea.sflag [#allocation10], 1
    %24 = vsyncpa %s23, 0
    %25 = vsyncpa [#allocation13], 0
    %26 = vsyncpa [#allocation16], 0
    %27 = vsyncpa [#allocation8], 0
    %s28 = scalar_lea.sflag [#allocation8], 1
    %29 = vsyncpa %s28, 0
    %30 = vsyncpa [#allocation19], 0
    %s31 = scalar_lea.sflag [#allocation19], 1
    %32 = vsyncpa %s31, 0
    loop: start=0, step=1, limit=6
    $region2: #{tpu_custom_call.1} parent=1 // loop_pre_header
      _
    $region3: #{tpu_custom_call.1} parent=1 // loop_header
      %s34 = sphi 0, %s38
      %p35 = scmp.ge.s32.totalorder %s34, 6
      %s41 = sphi 0, %s53
      %s42 = sphi 0, %s49
      %s43 = sphi 0, %s41
      %s44 = sphi 0, %s42
      %s45 = sphi 0, %s43
      %s46 = sphi 0, %s44
      %s56 = sphi 0, %s58
      %s59 = sphi 0, %s56
      %s60 = sphi 0, %s59
      %s76 = sphi 0, %s60
      %s82 = sphi 0, %s84
      %s85 = sphi 0, %s82
      %s86 = sphi 0, %s85
      %s102 = sphi 0, %s86
      %s106 = sphi 0, %s106
      %s108 = sphi 0, %s106
      %s109 = sphi 0, %s108
      %s123 = sphi 0, %s109
      %s127 = sphi 0, %s127
      %s129 = sphi 0, %s127
      %s130 = sphi 0, %s129
      %s144 = sphi 0, %s130
      %s148 = sphi 0, %s148
      %s150 = sphi 0, %s148
      %s151 = sphi 0, %s150
      %s165 = sphi 0, %s151
      %s169 = sphi 0, %s169
      %s171 = sphi 0, %s169
      %s172 = sphi 0, %s171
      %s186 = sphi 0, %s172
      %s190 = sphi 0, %s190
      %s192 = sphi 0, %s190
      %s193 = sphi 0, %s192
      %s207 = sphi 0, %s193
      %s211 = sphi 0, %s211
      %s213 = sphi 0, %s211
      %s214 = sphi 0, %s213
      %s228 = sphi 0, %s214
      %s232 = sphi 0, %s232
      %s234 = sphi 0, %s232
      %s235 = sphi 0, %s234
      %s249 = sphi 0, %s235
      %s253 = sphi 0, %s253
      %s255 = sphi 0, %s253
      %s256 = sphi 0, %s255
      %s270 = sphi 0, %s256
      %s274 = sphi 0, %s274
      %s276 = sphi 0, %s274
      %s277 = sphi 0, %s276
      %s291 = sphi 0, %s277
      %s297 = sphi 0, %s299
      %s300 = sphi 0, %s297
      %s301 = sphi 0, %s300
      %s317 = sphi 0, %s301
      %s325 = sphi 0, %s327
      %s328 = sphi 0, %s325
      %s329 = sphi 0, %s328
      %s345 = sphi 0, %s329
    $region4: #{tpu_custom_call.1} parent=1 // loop_header_branch
      %37 = sbr.rel (%p35) target = $region8
    $region5: #{tpu_custom_call.1} parent=1 // loop_body
      %s39 = ssub.s32 %s34, 1
      %s40 = ssub.s32 %s34, 2
      %s47 = sadd.s32 1, %s42
      %p48 = scmp.ge.s32.totalorder %s47, 2
      %s49 = scalar_select %p48, 0, %s47
      %s50 = sadd.s32 1, %s41
      %s51 = scalar_select %p48, %s50, %s41
      %p52 = scmp.ge.s32.totalorder %s51, 2
      %s53 = scalar_select %p52, 0, %s51
      %s54 = ssub.s32 %s41, %s53
      %p55 = scmp.eq.s32.totalorder %s54, 0
      %s57 = sadd.s32 %s56, 1
      %s58 = scalar_select %p55, %s56, %s57
      %p61 = pneg %p55
      %p62 = scmp.eq.s32.totalorder %s34, 3
      %p63 = por %p61, %p62
      %p64 = scmp.ne.s32.totalorder %s56, %s59
      %p65 = scmp.eq.s32.totalorder %s34, 0
      %p66 = por %p64, %p65
      %p67 = scmp.ne.s32.totalorder %s56, %s59
      %p68 = scmp.eq.s32.totalorder %s39, 3
      %p69 = por %p67, %p68
      %p70 = scmp.ne.s32.totalorder %s59, %s60
      %p71 = scmp.eq.s32.totalorder %s39, 0
      %p72 = por %p70, %p71
      %p73 = scmp.ne.s32.totalorder %s59, %s60
      %p74 = scmp.eq.s32.totalorder %s40, 3
      %p75 = por %p73, %p74
      %p77 = scmp.ne.s32.totalorder %s60, %s76
      %p78 = scmp.eq.s32.totalorder %s40, 0
      %p79 = por %p77, %p78
      %s80 = ssub.s32 %s42, %s49
      %p81 = scmp.eq.s32.totalorder %s80, 0
      %s83 = sadd.s32 %s82, 1
      %s84 = scalar_select %p81, %s82, %s83
      %p87 = pneg %p81
      %p88 = scmp.eq.s32.totalorder %s34, 3
      %p89 = por %p87, %p88
      %p90 = scmp.ne.s32.totalorder %s82, %s85
      %p91 = scmp.eq.s32.totalorder %s34, 0
      %p92 = por %p90, %p91
      %p93 = scmp.ne.s32.totalorder %s82, %s85
      %p94 = scmp.eq.s32.totalorder %s39, 3
      %p95 = por %p93, %p94
      %p96 = scmp.ne.s32.totalorder %s85, %s86
      %p97 = scmp.eq.s32.totalorder %s39, 0
      %p98 = por %p96, %p97
      %p99 = scmp.ne.s32.totalorder %s85, %s86
      %p100 = scmp.eq.s32.totalorder %s40, 3
      %p101 = por %p99, %p100
      %p103 = scmp.ne.s32.totalorder %s86, %s102
      %p104 = scmp.eq.s32.totalorder %s40, 0
      %p105 = por %p103, %p104
      %s107 = sadd.s32 %s106, 1
      %p110 = scmp.eq.s32.totalorder %s34, 3
      %p111 = scmp.ne.s32.totalorder %s106, %s108
      %p112 = scmp.eq.s32.totalorder %s34, 0
      %p113 = por %p111, %p112
      %p114 = scmp.ne.s32.totalorder %s106, %s108
      %p115 = scmp.eq.s32.totalorder %s39, 3
      %p116 = por %p114, %p115
      %p117 = scmp.ne.s32.totalorder %s108, %s109
      %p118 = scmp.eq.s32.totalorder %s39, 0
      %p119 = por %p117, %p118
      %p120 = scmp.ne.s32.totalorder %s108, %s109
      %p121 = scmp.eq.s32.totalorder %s40, 3
      %p122 = por %p120, %p121
      %p124 = scmp.ne.s32.totalorder %s109, %s123
      %p125 = scmp.eq.s32.totalorder %s40, 0
      %p126 = por %p124, %p125
      %s128 = sadd.s32 %s127, 1
      %p131 = scmp.eq.s32.totalorder %s34, 3
      %p132 = scmp.ne.s32.totalorder %s127, %s129
      %p133 = scmp.eq.s32.totalorder %s34, 0
      %p134 = por %p132, %p133
      %p135 = scmp.ne.s32.totalorder %s127, %s129
      %p136 = scmp.eq.s32.totalorder %s39, 3
      %p137 = por %p135, %p136
      %p138 = scmp.ne.s32.totalorder %s129, %s130
      %p139 = scmp.eq.s32.totalorder %s39, 0
      %p140 = por %p138, %p139
      %p141 = scmp.ne.s32.totalorder %s129, %s130
      %p142 = scmp.eq.s32.totalorder %s40, 3
      %p143 = por %p141, %p142
      %p145 = scmp.ne.s32.totalorder %s130, %s144
      %p146 = scmp.eq.s32.totalorder %s40, 0
      %p147 = por %p145, %p146
      %s149 = sadd.s32 %s148, 1
      %p152 = scmp.eq.s32.totalorder %s34, 3
      %p153 = scmp.ne.s32.totalorder %s148, %s150
      %p154 = scmp.eq.s32.totalorder %s34, 0
      %p155 = por %p153, %p154
      %p156 = scmp.ne.s32.totalorder %s148, %s150
      %p157 = scmp.eq.s32.totalorder %s39, 3
      %p158 = por %p156, %p157
      %p159 = scmp.ne.s32.totalorder %s150, %s151
      %p160 = scmp.eq.s32.totalorder %s39, 0
      %p161 = por %p159, %p160
      %p162 = scmp.ne.s32.totalorder %s150, %s151
      %p163 = scmp.eq.s32.totalorder %s40, 3
      %p164 = por %p162, %p163
      %p166 = scmp.ne.s32.totalorder %s151, %s165
      %p167 = scmp.eq.s32.totalorder %s40, 0
      %p168 = por %p166, %p167
      %s170 = sadd.s32 %s169, 1
      %p173 = scmp.eq.s32.totalorder %s34, 3
      %p174 = scmp.ne.s32.totalorder %s169, %s171
      %p175 = scmp.eq.s32.totalorder %s34, 0
      %p176 = por %p174, %p175
      %p177 = scmp.ne.s32.totalorder %s169, %s171
      %p178 = scmp.eq.s32.totalorder %s39, 3
      %p179 = por %p177, %p178
      %p180 = scmp.ne.s32.totalorder %s171, %s172
      %p181 = scmp.eq.s32.totalorder %s39, 0
      %p182 = por %p180, %p181
      %p183 = scmp.ne.s32.totalorder %s171, %s172
      %p184 = scmp.eq.s32.totalorder %s40, 3
      %p185 = por %p183, %p184
      %p187 = scmp.ne.s32.totalorder %s172, %s186
      %p188 = scmp.eq.s32.totalorder %s40, 0
      %p189 = por %p187, %p188
      %s191 = sadd.s32 %s190, 1
      %p194 = scmp.eq.s32.totalorder %s34, 3
      %p195 = scmp.ne.s32.totalorder %s190, %s192
      %p196 = scmp.eq.s32.totalorder %s34, 0
      %p197 = por %p195, %p196
      %p198 = scmp.ne.s32.totalorder %s190, %s192
      %p199 = scmp.eq.s32.totalorder %s39, 3
      %p200 = por %p198, %p199
      %p201 = scmp.ne.s32.totalorder %s192, %s193
      %p202 = scmp.eq.s32.totalorder %s39, 0
      %p203 = por %p201, %p202
      %p204 = scmp.ne.s32.totalorder %s192, %s193
      %p205 = scmp.eq.s32.totalorder %s40, 3
      %p206 = por %p204, %p205
      %p208 = scmp.ne.s32.totalorder %s193, %s207
      %p209 = scmp.eq.s32.totalorder %s40, 0
      %p210 = por %p208, %p209
      %s212 = sadd.s32 %s211, 1
      %p215 = scmp.eq.s32.totalorder %s34, 3
      %p216 = scmp.ne.s32.totalorder %s211, %s213
      %p217 = scmp.eq.s32.totalorder %s34, 0
      %p218 = por %p216, %p217
      %p219 = scmp.ne.s32.totalorder %s211, %s213
      %p220 = scmp.eq.s32.totalorder %s39, 3
      %p221 = por %p219, %p220
      %p222 = scmp.ne.s32.totalorder %s213, %s214
      %p223 = scmp.eq.s32.totalorder %s39, 0
      %p224 = por %p222, %p223
      %p225 = scmp.ne.s32.totalorder %s213, %s214
      %p226 = scmp.eq.s32.totalorder %s40, 3
      %p227 = por %p225, %p226
      %p229 = scmp.ne.s32.totalorder %s214, %s228
      %p230 = scmp.eq.s32.totalorder %s40, 0
      %p231 = por %p229, %p230
      %s233 = sadd.s32 %s232, 1
      %p236 = scmp.eq.s32.totalorder %s34, 3
      %p237 = scmp.ne.s32.totalorder %s232, %s234
      %p238 = scmp.eq.s32.totalorder %s34, 0
      %p239 = por %p237, %p238
      %p240 = scmp.ne.s32.totalorder %s232, %s234
      %p241 = scmp.eq.s32.totalorder %s39, 3
      %p242 = por %p240, %p241
      %p243 = scmp.ne.s32.totalorder %s234, %s235
      %p244 = scmp.eq.s32.totalorder %s39, 0
      %p245 = por %p243, %p244
      %p246 = scmp.ne.s32.totalorder %s234, %s235
      %p247 = scmp.eq.s32.totalorder %s40, 3
      %p248 = por %p246, %p247
      %p250 = scmp.ne.s32.totalorder %s235, %s249
      %p251 = scmp.eq.s32.totalorder %s40, 0
      %p252 = por %p250, %p251
      %s254 = sadd.s32 %s253, 1
      %p257 = scmp.eq.s32.totalorder %s34, 3
      %p258 = scmp.ne.s32.totalorder %s253, %s255
      %p259 = scmp.eq.s32.totalorder %s34, 0
      %p260 = por %p258, %p259
      %p261 = scmp.ne.s32.totalorder %s253, %s255
      %p262 = scmp.eq.s32.totalorder %s39, 3
      %p263 = por %p261, %p262
      %p264 = scmp.ne.s32.totalorder %s255, %s256
      %p265 = scmp.eq.s32.totalorder %s39, 0
      %p266 = por %p264, %p265
      %p267 = scmp.ne.s32.totalorder %s255, %s256
      %p268 = scmp.eq.s32.totalorder %s40, 3
      %p269 = por %p267, %p268
      %p271 = scmp.ne.s32.totalorder %s256, %s270
      %p272 = scmp.eq.s32.totalorder %s40, 0
      %p273 = por %p271, %p272
      %s275 = sadd.s32 %s274, 1
      %p278 = scmp.eq.s32.totalorder %s34, 3
      %p279 = scmp.ne.s32.totalorder %s274, %s276
      %p280 = scmp.eq.s32.totalorder %s34, 0
      %p281 = por %p279, %p280
      %p282 = scmp.ne.s32.totalorder %s274, %s276
      %p283 = scmp.eq.s32.totalorder %s39, 3
      %p284 = por %p282, %p283
      %p285 = scmp.ne.s32.totalorder %s276, %s277
      %p286 = scmp.eq.s32.totalorder %s39, 0
      %p287 = por %p285, %p286
      %p288 = scmp.ne.s32.totalorder %s276, %s277
      %p289 = scmp.eq.s32.totalorder %s40, 3
      %p290 = por %p288, %p289
      %p292 = scmp.ne.s32.totalorder %s277, %s291
      %p293 = scmp.eq.s32.totalorder %s40, 0
      %p294 = por %p292, %p293
      %s295 = ssub.s32 %s41, %s53
      %p296 = scmp.eq.s32.totalorder %s295, 0
      %s298 = sadd.s32 %s297, 1
      %s299 = scalar_select %p296, %s297, %s298
      %p302 = pneg %p296
      %p303 = scmp.eq.s32.totalorder %s34, 3
      %p304 = por %p302, %p303
      %p305 = scmp.ne.s32.totalorder %s297, %s300
      %p306 = scmp.eq.s32.totalorder %s34, 0
      %p307 = por %p305, %p306
      %p308 = scmp.ne.s32.totalorder %s297, %s300
      %p309 = scmp.eq.s32.totalorder %s39, 3
      %p310 = por %p308, %p309
      %p311 = scmp.ne.s32.totalorder %s300, %s301
      %p312 = scmp.eq.s32.totalorder %s39, 0
      %p313 = por %p311, %p312
      %p314 = scmp.ne.s32.totalorder %s300, %s301
      %p315 = scmp.eq.s32.totalorder %s40, 3
      %p316 = por %p314, %p315
      %p318 = scmp.ne.s32.totalorder %s301, %s317
      %p319 = scmp.eq.s32.totalorder %s40, 0
      %p320 = por %p318, %p319
      %s321 = ssub.s32 %s41, %s53
      %s322 = ssub.s32 %s42, %s49
      %s323 = sor.u32 %s321, %s322
      %p324 = scmp.eq.s32.totalorder %s323, 0
      %s326 = sadd.s32 %s325, 1
      %s327 = scalar_select %p324, %s325, %s326
      %p330 = pneg %p324
      %p331 = scmp.eq.s32.totalorder %s34, 3
      %p332 = por %p330, %p331
      %p333 = scmp.ne.s32.totalorder %s325, %s328
      %p334 = scmp.eq.s32.totalorder %s34, 0
      %p335 = por %p333, %p334
      %p336 = scmp.ne.s32.totalorder %s325, %s328
      %p337 = scmp.eq.s32.totalorder %s39, 3
      %p338 = por %p336, %p337
      %p339 = scmp.ne.s32.totalorder %s328, %s329
      %p340 = scmp.eq.s32.totalorder %s39, 0
      %p341 = por %p339, %p340
      %p342 = scmp.ne.s32.totalorder %s328, %s329
      %p343 = scmp.eq.s32.totalorder %s40, 3
      %p344 = por %p342, %p343
      %p346 = scmp.ne.s32.totalorder %s329, %s345
      %p347 = scmp.eq.s32.totalorder %s40, 0
      %p348 = por %p346, %p347
      %p349 = scmp.le.s32.totalorder 1, %s34
      %p350 = scmp.lt.s32.totalorder %s34, 5
      %p351 = pnand %p349, %p350
      %p352 = pneg %p351
      // Predicated region
      $region9: #{tpu_custom_call.1} parent=5 // pred_check
        _
      $region10: #{tpu_custom_call.1} parent=5 // pred_check_branch
        %354 = sbr.rel (%p351) target = $region12
      $region11: #{tpu_custom_call.1} parent=5 // pred_region
        %s355 = ssub.s32 %s34, 1
        // Predicated region
        $region13: #{tpu_custom_call.1} parent=11 // pred_check
          %p356 = pneg %p119
        $region14: #{tpu_custom_call.1} parent=11 // pred_check_branch
          %358 = sbr.rel (%p356) target = $region16
        $region15: #{tpu_custom_call.1} parent=11 // pred_region
          %s360 = ssub.s32 2048, 2048
          %361 = vsyncadd [#allocation10], %s360
          %s362 = sshll.u32 [#allocation11], 4
          %s363 = int_to_ptr.vmem [resolvable:$true] %s362
          %368 = dma.hbm_to_vmem [thread:$0]  %s2, 2048, %s363, [#allocation10], 128, 128, 8
        $region16: #{tpu_custom_call.1} parent=11 // pred_fallthru
          _
        // Predicated region
        $region17: #{tpu_custom_call.1} parent=11 // pred_check
          %p369 = pneg %p140
        $region18: #{tpu_custom_call.1} parent=11 // pred_check_branch
          %371 = sbr.rel (%p369) target = $region20
        $region19: #{tpu_custom_call.1} parent=11 // pred_region
          _
        $region20: #{tpu_custom_call.1} parent=11 // pred_fallthru
          _
        // Predicated region
        $region21: #{tpu_custom_call.1} parent=11 // pred_check
          %p372 = pneg %p161
        $region22: #{tpu_custom_call.1} parent=11 // pred_check_branch
          %374 = sbr.rel (%p372) target = $region24
        $region23: #{tpu_custom_call.1} parent=11 // pred_region
          %s376 = ssub.s32 2048, 2048
          %377 = vsyncadd [#allocation13], %s376
          %s378 = sshll.u32 [#allocation12], 4
          %s379 = int_to_ptr.vmem [resolvable:$true] %s378
          %384 = dma.hbm_to_vmem [thread:$0]  %s4, 2048, %s379, [#allocation13], 128, 128, 8
        $region24: #{tpu_custom_call.1} parent=11 // pred_fallthru
          _
        // Predicated region
        $region25: #{tpu_custom_call.1} parent=11 // pred_check
          %p385 = pneg %p182
        $region26: #{tpu_custom_call.1} parent=11 // pred_check_branch
          %387 = sbr.rel (%p385) target = $region28
        $region27: #{tpu_custom_call.1} parent=11 // pred_region
          _
        $region28: #{tpu_custom_call.1} parent=11 // pred_fallthru
          _
        // Predicated region
        $region29: #{tpu_custom_call.1} parent=11 // pred_check
          %p388 = pneg %p203
        $region30: #{tpu_custom_call.1} parent=11 // pred_check_branch
          %390 = sbr.rel (%p388) target = $region32
        $region31: #{tpu_custom_call.1} parent=11 // pred_region
          %s392 = ssub.s32 2048, 2048
          %393 = vsyncadd [#allocation13], %s392
          %s394 = sshll.u32 [#allocation14], 4
          %s395 = int_to_ptr.vmem [resolvable:$true] %s394
          %400 = dma.hbm_to_vmem [thread:$0]  %s6, 2048, %s395, [#allocation13], 128, 128, 8
        $region32: #{tpu_custom_call.1} parent=11 // pred_fallthru
          _
        // Predicated region
        $region33: #{tpu_custom_call.1} parent=11 // pred_check
          %p401 = pneg %p224
        $region34: #{tpu_custom_call.1} parent=11 // pred_check_branch
          %403 = sbr.rel (%p401) target = $region36
        $region35: #{tpu_custom_call.1} parent=11 // pred_region
          _
        $region36: #{tpu_custom_call.1} parent=11 // pred_fallthru
          _
        // Predicated region
        $region37: #{tpu_custom_call.1} parent=11 // pred_check
          %p404 = pneg %p245
        $region38: #{tpu_custom_call.1} parent=11 // pred_check_branch
          %406 = sbr.rel (%p404) target = $region40
        $region39: #{tpu_custom_call.1} parent=11 // pred_region
          %s408 = ssub.s32 1024, 1024
          %409 = vsyncadd [#allocation16], %s408
          %s410 = sshll.u32 [#allocation15], 4
          %s411 = int_to_ptr.vmem [resolvable:$true] %s410
          %416 = dma.hbm_to_vmem [thread:$0]  %s8, 1024, %s411, [#allocation16], 64, 64, 4
        $region40: #{tpu_custom_call.1} parent=11 // pred_fallthru
          _
        // Predicated region
        $region41: #{tpu_custom_call.1} parent=11 // pred_check
          %p417 = pneg %p266
        $region42: #{tpu_custom_call.1} parent=11 // pred_check_branch
          %419 = sbr.rel (%p417) target = $region44
        $region43: #{tpu_custom_call.1} parent=11 // pred_region
          _
        $region44: #{tpu_custom_call.1} parent=11 // pred_fallthru
          _
        // Predicated region
        $region45: #{tpu_custom_call.1} parent=11 // pred_check
          %p420 = pneg %p287
        $region46: #{tpu_custom_call.1} parent=11 // pred_check_branch
          %422 = sbr.rel (%p420) target = $region48
        $region47: #{tpu_custom_call.1} parent=11 // pred_region
          _
        $region48: #{tpu_custom_call.1} parent=11 // pred_fallthru
          _
      $region12: #{tpu_custom_call.1} parent=5 // pred_fallthru
        _
      %p423 = scmp.lt.s32.totalorder %s34, 4
      // Predicated region
      $region49: #{tpu_custom_call.1} parent=5 // pred_check
        %p424 = pneg %p423
      $region50: #{tpu_custom_call.1} parent=5 // pred_check_branch
        %426 = sbr.rel (%p424) target = $region52
      $region51: #{tpu_custom_call.1} parent=5 // pred_region
        // Predicated region
        $region53: #{tpu_custom_call.1} parent=51 // pred_check
          %p427 = pneg %p66
        $region54: #{tpu_custom_call.1} parent=51 // pred_check_branch
          %429 = sbr.rel (%p427) target = $region56
        $region55: #{tpu_custom_call.1} parent=51 // pred_region
          %s430 = sand.u32 %s56, 1
          %s431 = scalar_lea.sflag [#allocation7], %s430
          %s432 = sand.u32 %s56, 1
          %s433 = smul.addr %s432, 128
          %s434 = scalar_lea.vmem [#allocation6], %s433
          %s435 = smul.u32 16, %s41
          %s437 = ssub.s32 2048, 2048
          %438 = vsyncadd %s431, %s437
          %s439 = smul.addr %s435, 128
          %s440 = scalar_lea.hbm %s0, %s439
          %s441 = sshll.u32 %s434, 4
          %s442 = int_to_ptr.vmem [resolvable:$true] %s441
          %447 = dma.hbm_to_vmem [thread:$0]  %s440, 2048, %s442, %s431, 128, 128, 8
        $region56: #{tpu_custom_call.1} parent=51 // pred_fallthru
          _
        // Predicated region
        $region57: #{tpu_custom_call.1} parent=51 // pred_check
          %p448 = pneg %p92
        $region58: #{tpu_custom_call.1} parent=51 // pred_check_branch
          %450 = sbr.rel (%p448) target = $region60
        $region59: #{tpu_custom_call.1} parent=51 // pred_region
          %s451 = sand.u32 %s34, 1
          %s452 = scalar_lea.sflag [#allocation10], %s451
          %s453 = sand.u32 %s82, 1
          %s454 = smul.addr %s453, 128
          %s455 = scalar_lea.vmem [#allocation9], %s454
          %s456 = smul.u32 16, %s42
          %s458 = ssub.s32 2048, 2048
          %459 = vsyncadd %s452, %s458
          %s460 = smul.addr %s456, 128
          %s461 = scalar_lea.hbm %s1, %s460
          %s462 = sshll.u32 %s455, 4
          %s463 = int_to_ptr.vmem [resolvable:$true] %s462
          %468 = dma.hbm_to_vmem [thread:$0]  %s461, 2048, %s463, %s452, 128, 128, 8
        $region60: #{tpu_custom_call.1} parent=51 // pred_fallthru
          _
      $region52: #{tpu_custom_call.1} parent=5 // pred_fallthru
        _
      %p469 = scmp.le.s32.totalorder 1, %s34
      %p470 = scmp.lt.s32.totalorder %s34, 5
      %p471 = pnand %p469, %p470
      %p472 = pneg %p471
      // Predicated region
      $region61: #{tpu_custom_call.1} parent=5 // pred_check
        _
      $region62: #{tpu_custom_call.1} parent=5 // pred_check_branch
        %474 = sbr.rel (%p471) target = $region64
      $region63: #{tpu_custom_call.1} parent=5 // pred_region
        %s475 = ssub.s32 %s34, 1
        %s476 = sand.u32 %s59, 1
        %s477 = scalar_lea.sflag [#allocation7], %s476
        %s478 = sand.u32 %s59, 1
        %s479 = smul.addr %s478, 128
        %s480 = scalar_lea.vmem [#allocation6], %s479
        // Predicated region
        $region65: #{tpu_custom_call.1} parent=63 // pred_check
          %p481 = pneg %p72
        $region66: #{tpu_custom_call.1} parent=63 // pred_check_branch
          %483 = sbr.rel (%p481) target = $region68
        $region67: #{tpu_custom_call.1} parent=63 // pred_region
          %484 = dma.done %s477, 2048
        $region68: #{tpu_custom_call.1} parent=63 // pred_fallthru
          _
        %s485 = sand.u32 %s39, 1
        %s486 = scalar_lea.sflag [#allocation10], %s485
        %s487 = sand.u32 %s85, 1
        %s488 = smul.addr %s487, 128
        %s489 = scalar_lea.vmem [#allocation9], %s488
        // Predicated region
        $region69: #{tpu_custom_call.1} parent=63 // pred_check
          %p490 = pneg %p98
        $region70: #{tpu_custom_call.1} parent=63 // pred_check_branch
          %492 = sbr.rel (%p490) target = $region72
        $region71: #{tpu_custom_call.1} parent=63 // pred_region
          %493 = dma.done %s486, 2048
        $region72: #{tpu_custom_call.1} parent=63 // pred_fallthru
          _
        // Predicated region
        $region73: #{tpu_custom_call.1} parent=63 // pred_check
          %p494 = pneg %p119
        $region74: #{tpu_custom_call.1} parent=63 // pred_check_branch
          %496 = sbr.rel (%p494) target = $region76
        $region75: #{tpu_custom_call.1} parent=63 // pred_region
          %497 = dma.done [#allocation10], 2048
        $region76: #{tpu_custom_call.1} parent=63 // pred_fallthru
          _
        // Predicated region
        $region77: #{tpu_custom_call.1} parent=63 // pred_check
          %p498 = pneg %p161
        $region78: #{tpu_custom_call.1} parent=63 // pred_check_branch
          %500 = sbr.rel (%p498) target = $region80
        $region79: #{tpu_custom_call.1} parent=63 // pred_region
          %501 = dma.done [#allocation13], 2048
        $region80: #{tpu_custom_call.1} parent=63 // pred_fallthru
          _
        // Predicated region
        $region81: #{tpu_custom_call.1} parent=63 // pred_check
          %p502 = pneg %p203
        $region82: #{tpu_custom_call.1} parent=63 // pred_check_branch
          %504 = sbr.rel (%p502) target = $region84
        $region83: #{tpu_custom_call.1} parent=63 // pred_region
          %505 = dma.done [#allocation13], 2048
        $region84: #{tpu_custom_call.1} parent=63 // pred_fallthru
          _
        // Predicated region
        $region85: #{tpu_custom_call.1} parent=63 // pred_check
          %p506 = pneg %p245
        $region86: #{tpu_custom_call.1} parent=63 // pred_check_branch
          %508 = sbr.rel (%p506) target = $region88
        $region87: #{tpu_custom_call.1} parent=63 // pred_region
          %509 = dma.done [#allocation16], 1024
        $region88: #{tpu_custom_call.1} parent=63 // pred_fallthru
          _
        %s510 = sand.u32 %s59, 1
        %s511 = scalar_lea.sflag [#allocation7], %s510
        %s512 = sand.u32 %s59, 1
        %s513 = smul.addr %s512, 128
        %s514 = scalar_lea.vmem [#allocation6], %s513
        %p515 = pneg %p72
        %p516 = pneg %p69
        %s517 = sand.u32 %s39, 1
        %s518 = scalar_lea.sflag [#allocation10], %s517
        %s519 = sand.u32 %s85, 1
        %s520 = smul.addr %s519, 128
        %s521 = scalar_lea.vmem [#allocation9], %s520
        %p522 = pneg %p98
        %p523 = pneg %p95
        %p524 = pneg %p119
        %p525 = pneg %p116
        %p526 = pneg %p140
        %p527 = pneg %p137
        %p528 = pneg %p161
        %p529 = pneg %p158
        %p530 = pneg %p182
        %p531 = pneg %p179
        %p532 = pneg %p203
        %p533 = pneg %p200
        %p534 = pneg %p224
        %p535 = pneg %p221
        %p536 = pneg %p245
        %p537 = pneg %p242
        %p538 = pneg %p266
        %p539 = pneg %p263
        %p540 = pneg %p287
        %p541 = pneg %p284
        %p542 = pneg %p313
        %p543 = pneg %p310
        %s544 = sand.u32 %s300, 1
        %s545 = scalar_lea.sflag [#allocation8], %s544
        %s546 = sand.u32 %s300, 1
        %s547 = scalar_lea.vmem [#allocation17], %s546
        %p548 = pneg %p341
        %p549 = pneg %p338
        %s550 = sand.u32 %s328, 1
        %s551 = scalar_lea.sflag [#allocation19], %s550
        %s552 = sand.u32 %s328, 1
        %s553 = smul.addr %s552, 128
        %s554 = scalar_lea.vmem [#allocation18], %s553
        %s555 = smul.u32 16, %s43
        %s556 = smul.u32 16, %s44
        %s557 = smul.u32 16, %s43
        %p559 = scmp.eq.s32.totalorder %s44, 0
        // Predicated region
        $region89: #{tpu_custom_call.1} parent=63 // pred_check
          %p560 = pneg %p559
        $region90: #{tpu_custom_call.1} parent=63 // pred_check_branch
          %562 = sbr.rel (%p560) target = $region92
        $region91: #{tpu_custom_call.1} parent=63 // pred_region
          %v563 = vld [vmem:[%s480] sm:$0xff]
          %v564 = vld [vmem:[%s480 + $0x8] sm:$0xff]
          %v565 = vld [vmem:[%s480 + $0x10] sm:$0xff]
          %v566 = vld [vmem:[%s480 + $0x18] sm:$0xff]
          %v567 = vld [vmem:[%s480 + $0x20] sm:$0xff]
          %v568 = vld [vmem:[%s480 + $0x28] sm:$0xff]
          %v569 = vld [vmem:[%s480 + $0x30] sm:$0xff]
          %v570 = vld [vmem:[%s480 + $0x38] sm:$0xff]
          %v571 = vld [vmem:[%s480 + $0x40] sm:$0xff]
          %v572 = vld [vmem:[%s480 + $0x48] sm:$0xff]
          %v573 = vld [vmem:[%s480 + $0x50] sm:$0xff]
          %v574 = vld [vmem:[%s480 + $0x58] sm:$0xff]
          %v575 = vld [vmem:[%s480 + $0x60] sm:$0xff]
          %v576 = vld [vmem:[%s480 + $0x68] sm:$0xff]
          %v577 = vld [vmem:[%s480 + $0x70] sm:$0xff]
          %v578 = vld [vmem:[%s480 + $0x78] sm:$0xff]
          %v579 = vld [vmem:[#allocation11] sm:$0xff]
          %v580 = vld [vmem:[#allocation11 + $0x8] sm:$0xff]
          %v581 = vld [vmem:[#allocation11 + $0x10] sm:$0xff]
          %v582 = vld [vmem:[#allocation11 + $0x18] sm:$0xff]
          %v583 = vld [vmem:[#allocation11 + $0x20] sm:$0xff]
          %v584 = vld [vmem:[#allocation11 + $0x28] sm:$0xff]
          %v585 = vld [vmem:[#allocation11 + $0x30] sm:$0xff]
          %v586 = vld [vmem:[#allocation11 + $0x38] sm:$0xff]
          %v587 = vld [vmem:[#allocation11 + $0x40] sm:$0xff]
          %v588 = vld [vmem:[#allocation11 + $0x48] sm:$0xff]
          %v589 = vld [vmem:[#allocation11 + $0x50] sm:$0xff]
          %v590 = vld [vmem:[#allocation11 + $0x58] sm:$0xff]
          %v591 = vld [vmem:[#allocation11 + $0x60] sm:$0xff]
          %v592 = vld [vmem:[#allocation11 + $0x68] sm:$0xff]
          %v593 = vld [vmem:[#allocation11 + $0x70] sm:$0xff]
          %v594 = vld [vmem:[#allocation11 + $0x78] sm:$0xff]
          %v595 = vld [vmem:[%s3] sm:$0x1]
          %v597 = vlaneseq
          %v598 = vshrl.u32 %v597, 7
          %v599 = vsub.s32 0, %v598
          %v600 = vrot.slane %v595, %v599
          %602 = vmatprep.subr.mxu0 0.0
          %603 = vmatpush1.msra.mxu0 %v579
          %604 = vmatprep.subr.mxu0 0.0
          %605 = vmatpush1.msra.mxu0 %v580
          %606 = vmatprep.subr.mxu0 0.0
          %607 = vmatpush1.msra.mxu0 %v581
          %608 = vmatprep.subr.mxu0 0.0
          %609 = vmatpush1.msra.mxu0 %v582
          %610 = vmatprep.subr.mxu0 0.0
          %611 = vmatpush1.msra.mxu0 %v583
          %612 = vmatprep.subr.mxu0 0.0
          %613 = vmatpush1.msra.mxu0 %v584
          %614 = vmatprep.subr.mxu0 0.0
          %615 = vmatpush1.msra.mxu0 %v585
          %616 = vmatprep.subr.mxu0 0.0
          %617 = vmatpush1.msra.mxu0 %v586
          %618 = vmatprep.subr.mxu0 0.0
          %619 = vmatpush1.msra.mxu0 %v587
          %620 = vmatprep.subr.mxu0 0.0
          %621 = vmatpush1.msra.mxu0 %v588
          %622 = vmatprep.subr.mxu0 0.0
          %623 = vmatpush1.msra.mxu0 %v589
          %624 = vmatprep.subr.mxu0 0.0
          %625 = vmatpush1.msra.mxu0 %v590
          %626 = vmatprep.subr.mxu0 0.0
          %627 = vmatpush1.msra.mxu0 %v591
          %628 = vmatprep.subr.mxu0 0.0
          %629 = vmatpush1.msra.mxu0 %v592
          %630 = vmatprep.subr.mxu0 0.0
          %631 = vmatpush1.msra.mxu0 %v593
          %632 = vmatprep.subr.mxu0 0.0
          %633 = vmatpush1.msra.mxu0 %v594
          %634 = vmatprep.subr.mxu0 0.0
          %635 = vmatpush1.msra.mxu0 0.0
          %636 = vmatprep.subr.mxu0 0.0
          %637 = vmatpush1.msra.mxu0 0.0
          %638 = vmatprep.subr.mxu0 0.0
          %639 = vmatpush1.msra.mxu0 0.0
          %640 = vmatprep.subr.mxu0 0.0
          %641 = vmatpush1.msra.mxu0 0.0
          %642 = vmatprep.subr.mxu0 0.0
          %643 = vmatpush1.msra.mxu0 0.0
          %644 = vmatprep.subr.mxu0 0.0
          %645 = vmatpush1.msra.mxu0 0.0
          %646 = vmatprep.subr.mxu0 0.0
          %647 = vmatpush1.msra.mxu0 0.0
          %648 = vmatprep.subr.mxu0 0.0
          %649 = vmatpush1.msra.mxu0 0.0
          %650 = vmatprep.subr.mxu0 0.0
          %651 = vmatpush1.msra.mxu0 0.0
          %652 = vmatprep.subr.mxu0 0.0
          %653 = vmatpush1.msra.mxu0 0.0
          %654 = vmatprep.subr.mxu0 0.0
          %655 = vmatpush1.msra.mxu0 0.0
          %656 = vmatprep.subr.mxu0 0.0
          %657 = vmatpush1.msra.mxu0 0.0
          %658 = vmatprep.subr.mxu0 0.0
          %659 = vmatpush1.msra.mxu0 0.0
          %660 = vmatprep.subr.mxu0 0.0
          %661 = vmatpush1.msra.mxu0 0.0
          %662 = vmatprep.subr.mxu0 0.0
          %663 = vmatpush1.msra.mxu0 0.0
          %664 = vmatprep.subr.mxu0 0.0
          %665 = vmatpush1.msra.mxu0 0.0
          %666 = vmatprep.mubr.f32.mxu0 0.0
          %667 = vmatmul.mubr.f32.gmra.mrb[0].mxu0 %v563
          %v668 = vpop.f32.mrb[0].mxu0
          %v669 = vadd.f32 %v600, %v668
          %v670 = vpop.f32.mrb[0].mxu0
          %671 = vmatprep.mubr.f32.mxu0 0.0
          %672 = vmatmul.mubr.f32.gmra.mrb[0].mxu0 %v564
          %v673 = vpop.f32.mrb[0].mxu0
          %v674 = vadd.f32 %v600, %v673
          %v675 = vpop.f32.mrb[0].mxu0
          %676 = vmatprep.mubr.f32.mxu0 0.0
          %677 = vmatmul.mubr.f32.gmra.mrb[0].mxu0 %v565
          %v678 = vpop.f32.mrb[0].mxu0
          %v679 = vadd.f32 %v600, %v678
          %v680 = vpop.f32.mrb[0].mxu0
          %681 = vmatprep.mubr.f32.mxu0 0.0
          %682 = vmatmul.mubr.f32.gmra.mrb[0].mxu0 %v566
          %v683 = vpop.f32.mrb[0].mxu0
          %v684 = vadd.f32 %v600, %v683
          %v685 = vpop.f32.mrb[0].mxu0
          %686 = vmatprep.mubr.f32.mxu0 0.0
          %687 = vmatmul.mubr.f32.gmra.mrb[0].mxu0 %v567
          %v688 = vpop.f32.mrb[0].mxu0
          %v689 = vadd.f32 %v600, %v688
          %v690 = vpop.f32.mrb[0].mxu0
          %691 = vmatprep.mubr.f32.mxu0 0.0
          %692 = vmatmul.mubr.f32.gmra.mrb[0].mxu0 %v568
          %v693 = vpop.f32.mrb[0].mxu0
          %v694 = vadd.f32 %v600, %v693
          %v695 = vpop.f32.mrb[0].mxu0
          %696 = vmatprep.mubr.f32.mxu0 0.0
          %697 = vmatmul.mubr.f32.gmra.mrb[0].mxu0 %v569
          %v698 = vpop.f32.mrb[0].mxu0
          %v699 = vadd.f32 %v600, %v698
          %v700 = vpop.f32.mrb[0].mxu0
          %701 = vmatprep.mubr.f32.mxu0 0.0
          %702 = vmatmul.mubr.f32.gmra.mrb[0].mxu0 %v570
          %v703 = vpop.f32.mrb[0].mxu0
          %v704 = vadd.f32 %v600, %v703
          %v705 = vpop.f32.mrb[0].mxu0
          %706 = vmatprep.mubr.f32.mxu0 0.0
          %707 = vmatmul.mubr.f32.gmra.mrb[0].mxu0 %v571
          %v708 = vpop.f32.mrb[0].mxu0
          %v709 = vadd.f32 %v600, %v708
          %v710 = vpop.f32.mrb[0].mxu0
          %711 = vmatprep.mubr.f32.mxu0 0.0
          %712 = vmatmul.mubr.f32.gmra.mrb[0].mxu0 %v572
          %v713 = vpop.f32.mrb[0].mxu0
          %v714 = vadd.f32 %v600, %v713
          %v715 = vpop.f32.mrb[0].mxu0
          %716 = vmatprep.mubr.f32.mxu0 0.0
          %717 = vmatmul.mubr.f32.gmra.mrb[0].mxu0 %v573
          %v718 = vpop.f32.mrb[0].mxu0
          %v719 = vadd.f32 %v600, %v718
          %v720 = vpop.f32.mrb[0].mxu0
          %721 = vmatprep.mubr.f32.mxu0 0.0
          %722 = vmatmul.mubr.f32.gmra.mrb[0].mxu0 %v574
          %v723 = vpop.f32.mrb[0].mxu0
          %v724 = vadd.f32 %v600, %v723
          %v725 = vpop.f32.mrb[0].mxu0
          %726 = vmatprep.mubr.f32.mxu0 0.0
          %727 = vmatmul.mubr.f32.gmra.mrb[0].mxu0 %v575
          %v728 = vpop.f32.mrb[0].mxu0
          %v729 = vadd.f32 %v600, %v728
          %v730 = vpop.f32.mrb[0].mxu0
          %731 = vmatprep.mubr.f32.mxu0 0.0
          %732 = vmatmul.mubr.f32.gmra.mrb[0].mxu0 %v576
          %v733 = vpop.f32.mrb[0].mxu0
          %v734 = vadd.f32 %v600, %v733
          %v735 = vpop.f32.mrb[0].mxu0
          %736 = vmatprep.mubr.f32.mxu0 0.0
          %737 = vmatmul.mubr.f32.gmra.mrb[0].mxu0 %v577
          %v738 = vpop.f32.mrb[0].mxu0
          %v739 = vadd.f32 %v600, %v738
          %v740 = vpop.f32.mrb[0].mxu0
          %741 = vmatprep.mubr.f32.mxu0 0.0
          %742 = vmatmul.mubr.f32.gmra.mrb[0].mxu0 %v578
          %v743 = vpop.f32.mrb[0].mxu0
          %v744 = vadd.f32 %v600, %v743
          %v745 = vpop.f32.mrb[0].mxu0
          %746 = vdwg.mxu0
          %v747 = vmax.f32 %v669, 0.0
          %v748 = vmax.f32 %v674, 0.0
          %v749 = vmax.f32 %v679, 0.0
          %v750 = vmax.f32 %v684, 0.0
          %v751 = vmax.f32 %v689, 0.0
          %v752 = vmax.f32 %v694, 0.0
          %v753 = vmax.f32 %v699, 0.0
          %v754 = vmax.f32 %v704, 0.0
          %v755 = vmax.f32 %v709, 0.0
          %v756 = vmax.f32 %v714, 0.0
          %v757 = vmax.f32 %v719, 0.0
          %v758 = vmax.f32 %v724, 0.0
          %v759 = vmax.f32 %v729, 0.0
          %v760 = vmax.f32 %v734, 0.0
          %v761 = vmax.f32 %v739, 0.0
          %v762 = vmax.f32 %v744, 0.0
          %v763 = vld [vmem:[#allocation12] sm:$0xff]
          %v764 = vld [vmem:[#allocation12 + $0x8] sm:$0xff]
          %v765 = vld [vmem:[#allocation12 + $0x10] sm:$0xff]
          %v766 = vld [vmem:[#allocation12 + $0x18] sm:$0xff]
          %v767 = vld [vmem:[#allocation12 + $0x20] sm:$0xff]
          %v768 = vld [vmem:[#allocation12 + $0x28] sm:$0xff]
          %v769 = vld [vmem:[#allocation12 + $0x30] sm:$0xff]
          %v770 = vld [vmem:[#allocation12 + $0x38] sm:$0xff]
          %v771 = vld [vmem:[#allocation12 + $0x40] sm:$0xff]
          %v772 = vld [vmem:[#allocation12 + $0x48] sm:$0xff]
          %v773 = vld [vmem:[#allocation12 + $0x50] sm:$0xff]
          %v774 = vld [vmem:[#allocation12 + $0x58] sm:$0xff]
          %v775 = vld [vmem:[#allocation12 + $0x60] sm:$0xff]
          %v776 = vld [vmem:[#allocation12 + $0x68] sm:$0xff]
          %v777 = vld [vmem:[#allocation12 + $0x70] sm:$0xff]
          %v778 = vld [vmem:[#allocation12 + $0x78] sm:$0xff]
          %v779 = vld [vmem:[%s5] sm:$0x1]
          %v781 = vlaneseq
          %v782 = vshrl.u32 %v781, 7
          %v783 = vsub.s32 0, %v782
          %v784 = vrot.slane %v779, %v783
          %786 = vmatprep.subr.mxu0 0.0
          %787 = vmatpush1.msra.mxu0 %v763
          %788 = vmatprep.subr.mxu0 0.0
          %789 = vmatpush1.msra.mxu0 %v764
          %790 = vmatprep.subr.mxu0 0.0
          %791 = vmatpush1.msra.mxu0 %v765
          %792 = vmatprep.subr.mxu0 0.0
          %793 = vmatpush1.msra.mxu0 %v766
          %794 = vmatprep.subr.mxu0 0.0
          %795 = vmatpush1.msra.mxu0 %v767
          %796 = vmatprep.subr.mxu0 0.0
          %797 = vmatpush1.msra.mxu0 %v768
          %798 = vmatprep.subr.mxu0 0.0
          %799 = vmatpush1.msra.mxu0 %v769
          %800 = vmatprep.subr.mxu0 0.0
          %801 = vmatpush1.msra.mxu0 %v770
          %802 = vmatprep.subr.mxu0 0.0
          %803 = vmatpush1.msra.mxu0 %v771
          %804 = vmatprep.subr.mxu0 0.0
          %805 = vmatpush1.msra.mxu0 %v772
          %806 = vmatprep.subr.mxu0 0.0
          %807 = vmatpush1.msra.mxu0 %v773
          %808 = vmatprep.subr.mxu0 0.0
          %809 = vmatpush1.msra.mxu0 %v774
          %810 = vmatprep.subr.mxu0 0.0
          %811 = vmatpush1.msra.mxu0 %v775
          %812 = vmatprep.subr.mxu0 0.0
          %813 = vmatpush1.msra.mxu0 %v776
          %814 = vmatprep.subr.mxu0 0.0
          %815 = vmatpush1.msra.mxu0 %v777
          %816 = vmatprep.subr.mxu0 0.0
          %817 = vmatpush1.msra.mxu0 %v778
          %818 = vmatprep.subr.mxu0 0.0
          %819 = vmatpush1.msra.mxu0 0.0
          %820 = vmatprep.subr.mxu0 0.0
          %821 = vmatpush1.msra.mxu0 0.0
          %822 = vmatprep.subr.mxu0 0.0
          %823 = vmatpush1.msra.mxu0 0.0
          %824 = vmatprep.subr.mxu0 0.0
          %825 = vmatpush1.msra.mxu0 0.0
          %826 = vmatprep.subr.mxu0 0.0
          %827 = vmatpush1.msra.mxu0 0.0
          %828 = vmatprep.subr.mxu0 0.0
          %829 = vmatpush1.msra.mxu0 0.0
          %830 = vmatprep.subr.mxu0 0.0
          %831 = vmatpush1.msra.mxu0 0.0
          %832 = vmatprep.subr.mxu0 0.0
          %833 = vmatpush1.msra.mxu0 0.0
          %834 = vmatprep.subr.mxu0 0.0
          %835 = vmatpush1.msra.mxu0 0.0
          %836 = vmatprep.subr.mxu0 0.0
          %837 = vmatpush1.msra.mxu0 0.0
          %838 = vmatprep.subr.mxu0 0.0
          %839 = vmatpush1.msra.mxu0 0.0
          %840 = vmatprep.subr.mxu0 0.0
          %841 = vmatpush1.msra.mxu0 0.0
          %842 = vmatprep.subr.mxu0 0.0
          %843 = vmatpush1.msra.mxu0 0.0
          %844 = vmatprep.subr.mxu0 0.0
          %845 = vmatpush1.msra.mxu0 0.0
          %846 = vmatprep.subr.mxu0 0.0
          %847 = vmatpush1.msra.mxu0 0.0
          %848 = vmatprep.subr.mxu0 0.0
          %849 = vmatpush1.msra.mxu0 0.0
          %850 = vmatprep.mubr.f32.mxu0 0.0
          %851 = vmatmul.mubr.f32.gmra.mrb[0].mxu0 %v747
          %v852 = vpop.f32.mrb[0].mxu0
          %v853 = vadd.f32 %v784, %v852
          %v854 = vpop.f32.mrb[0].mxu0
          %855 = vmatprep.mubr.f32.mxu0 0.0
          %856 = vmatmul.mubr.f32.gmra.mrb[0].mxu0 %v748
          %v857 = vpop.f32.mrb[0].mxu0
          %v858 = vadd.f32 %v784, %v857
          %v859 = vpop.f32.mrb[0].mxu0
          %860 = vmatprep.mubr.f32.mxu0 0.0
          %861 = vmatmul.mubr.f32.gmra.mrb[0].mxu0 %v749
          %v862 = vpop.f32.mrb[0].mxu0
          %v863 = vadd.f32 %v784, %v862
          %v864 = vpop.f32.mrb[0].mxu0
          %865 = vmatprep.mubr.f32.mxu0 0.0
          %866 = vmatmul.mubr.f32.gmra.mrb[0].mxu0 %v750
          %v867 = vpop.f32.mrb[0].mxu0
          %v868 = vadd.f32 %v784, %v867
          %v869 = vpop.f32.mrb[0].mxu0
          %870 = vmatprep.mubr.f32.mxu0 0.0
          %871 = vmatmul.mubr.f32.gmra.mrb[0].mxu0 %v751
          %v872 = vpop.f32.mrb[0].mxu0
          %v873 = vadd.f32 %v784, %v872
          %v874 = vpop.f32.mrb[0].mxu0
          %875 = vmatprep.mubr.f32.mxu0 0.0
          %876 = vmatmul.mubr.f32.gmra.mrb[0].mxu0 %v752
          %v877 = vpop.f32.mrb[0].mxu0
          %v878 = vadd.f32 %v784, %v877
          %v879 = vpop.f32.mrb[0].mxu0
          %880 = vmatprep.mubr.f32.mxu0 0.0
          %881 = vmatmul.mubr.f32.gmra.mrb[0].mxu0 %v753
          %v882 = vpop.f32.mrb[0].mxu0
          %v883 = vadd.f32 %v784, %v882
          %v884 = vpop.f32.mrb[0].mxu0
          %885 = vmatprep.mubr.f32.mxu0 0.0
          %886 = vmatmul.mubr.f32.gmra.mrb[0].mxu0 %v754
          %v887 = vpop.f32.mrb[0].mxu0
          %v888 = vadd.f32 %v784, %v887
          %v889 = vpop.f32.mrb[0].mxu0
          %890 = vmatprep.mubr.f32.mxu0 0.0
          %891 = vmatmul.mubr.f32.gmra.mrb[0].mxu0 %v755
          %v892 = vpop.f32.mrb[0].mxu0
          %v893 = vadd.f32 %v784, %v892
          %v894 = vpop.f32.mrb[0].mxu0
          %895 = vmatprep.mubr.f32.mxu0 0.0
          %896 = vmatmul.mubr.f32.gmra.mrb[0].mxu0 %v756
          %v897 = vpop.f32.mrb[0].mxu0
          %v898 = vadd.f32 %v784, %v897
          %v899 = vpop.f32.mrb[0].mxu0
          %900 = vmatprep.mubr.f32.mxu0 0.0
          %901 = vmatmul.mubr.f32.gmra.mrb[0].mxu0 %v757
          %v902 = vpop.f32.mrb[0].mxu0
          %v903 = vadd.f32 %v784, %v902
          %v904 = vpop.f32.mrb[0].mxu0
          %905 = vmatprep.mubr.f32.mxu0 0.0
          %906 = vmatmul.mubr.f32.gmra.mrb[0].mxu0 %v758
          %v907 = vpop.f32.mrb[0].mxu0
          %v908 = vadd.f32 %v784, %v907
          %v909 = vpop.f32.mrb[0].mxu0
          %910 = vmatprep.mubr.f32.mxu0 0.0
          %911 = vmatmul.mubr.f32.gmra.mrb[0].mxu0 %v759
          %v912 = vpop.f32.mrb[0].mxu0
          %v913 = vadd.f32 %v784, %v912
          %v914 = vpop.f32.mrb[0].mxu0
          %915 = vmatprep.mubr.f32.mxu0 0.0
          %916 = vmatmul.mubr.f32.gmra.mrb[0].mxu0 %v760
          %v917 = vpop.f32.mrb[0].mxu0
          %v918 = vadd.f32 %v784, %v917
          %v919 = vpop.f32.mrb[0].mxu0
          %920 = vmatprep.mubr.f32.mxu0 0.0
          %921 = vmatmul.mubr.f32.gmra.mrb[0].mxu0 %v761
          %v922 = vpop.f32.mrb[0].mxu0
          %v923 = vadd.f32 %v784, %v922
          %v924 = vpop.f32.mrb[0].mxu0
          %925 = vmatprep.mubr.f32.mxu0 0.0
          %926 = vmatmul.mubr.f32.gmra.mrb[0].mxu0 %v762
          %v927 = vpop.f32.mrb[0].mxu0
          %v928 = vadd.f32 %v784, %v927
          %v929 = vpop.f32.mrb[0].mxu0
          %930 = vdwg.mxu0
          %v931 = vmul.f32 %v853, %v853
          %v932 = vmul.f32 %v858, %v858
          %v933 = vmul.f32 %v863, %v863
          %v934 = vmul.f32 %v868, %v868
          %v935 = vmul.f32 %v873, %v873
          %v936 = vmul.f32 %v878, %v878
          %v937 = vmul.f32 %v883, %v883
          %v938 = vmul.f32 %v888, %v888
          %v939 = vmul.f32 %v893, %v893
          %v940 = vmul.f32 %v898, %v898
          %v941 = vmul.f32 %v903, %v903
          %v942 = vmul.f32 %v908, %v908
          %v943 = vmul.f32 %v913, %v913
          %v944 = vmul.f32 %v918, %v918
          %v945 = vmul.f32 %v923, %v923
          %v946 = vmul.f32 %v928, %v928
          %947 = vadd.xlane.f32.xlu0 %v931
          %v948 = vpop.xlane.xlu0 %947
          %949 = vadd.xlane.f32.xlu0 %v932
          %v950 = vpop.xlane.xlu0 %949
          %951 = vadd.xlane.f32.xlu0 %v933
          %v952 = vpop.xlane.xlu0 %951
          %953 = vadd.xlane.f32.xlu0 %v934
          %v954 = vpop.xlane.xlu0 %953
          %955 = vadd.xlane.f32.xlu0 %v935
          %v956 = vpop.xlane.xlu0 %955
          %957 = vadd.xlane.f32.xlu0 %v936
          %v958 = vpop.xlane.xlu0 %957
          %959 = vadd.xlane.f32.xlu0 %v937
          %v960 = vpop.xlane.xlu0 %959
          %961 = vadd.xlane.f32.xlu0 %v938
          %v962 = vpop.xlane.xlu0 %961
          %963 = vadd.xlane.f32.xlu0 %v939
          %v964 = vpop.xlane.xlu0 %963
          %965 = vadd.xlane.f32.xlu0 %v940
          %v966 = vpop.xlane.xlu0 %965
          %967 = vadd.xlane.f32.xlu0 %v941
          %v968 = vpop.xlane.xlu0 %967
          %969 = vadd.xlane.f32.xlu0 %v942
          %v970 = vpop.xlane.xlu0 %969
          %971 = vadd.xlane.f32.xlu0 %v943
          %v972 = vpop.xlane.xlu0 %971
          %973 = vadd.xlane.f32.xlu0 %v944
          %v974 = vpop.xlane.xlu0 %973
          %975 = vadd.xlane.f32.xlu0 %v945
          %v976 = vpop.xlane.xlu0 %975
          %977 = vadd.xlane.f32.xlu0 %v946
          %v978 = vpop.xlane.xlu0 %977
          %v979 = vmul.f32 %v948, 0.5
          %v980 = vmul.f32 %v950, 0.5
          %v981 = vmul.f32 %v952, 0.5
          %v982 = vmul.f32 %v954, 0.5
          %v983 = vmul.f32 %v956, 0.5
          %v984 = vmul.f32 %v958, 0.5
          %v985 = vmul.f32 %v960, 0.5
          %v986 = vmul.f32 %v962, 0.5
          %v987 = vmul.f32 %v964, 0.5
          %v988 = vmul.f32 %v966, 0.5
          %v989 = vmul.f32 %v968, 0.5
          %v990 = vmul.f32 %v970, 0.5
          %v991 = vmul.f32 %v972, 0.5
          %v992 = vmul.f32 %v974, 0.5
          %v993 = vmul.f32 %v976, 0.5
          %v994 = vmul.f32 %v978, 0.5
          %v995 = vld [vmem:[#allocation14] sm:$0xff]
          %v996 = vld [vmem:[#allocation14 + $0x8] sm:$0xff]
          %v997 = vld [vmem:[#allocation14 + $0x10] sm:$0xff]
          %v998 = vld [vmem:[#allocation14 + $0x18] sm:$0xff]
          %v999 = vld [vmem:[#allocation14 + $0x20] sm:$0xff]
          %v1000 = vld [vmem:[#allocation14 + $0x28] sm:$0xff]
          %v1001 = vld [vmem:[#allocation14 + $0x30] sm:$0xff]
          %v1002 = vld [vmem:[#allocation14 + $0x38] sm:$0xff]
          %v1003 = vld [vmem:[#allocation14 + $0x40] sm:$0xff]
          %v1004 = vld [vmem:[#allocation14 + $0x48] sm:$0xff]
          %v1005 = vld [vmem:[#allocation14 + $0x50] sm:$0xff]
          %v1006 = vld [vmem:[#allocation14 + $0x58] sm:$0xff]
          %v1007 = vld [vmem:[#allocation14 + $0x60] sm:$0xff]
          %v1008 = vld [vmem:[#allocation14 + $0x68] sm:$0xff]
          %v1009 = vld [vmem:[#allocation14 + $0x70] sm:$0xff]
          %v1010 = vld [vmem:[#allocation14 + $0x78] sm:$0xff]
          %1011 = vmatprep.subr.mxu0 0.0
          %1012 = vmatpush1.xpose.msra.mxu0 %v995
          %1013 = vmatprep.subr.mxu0 0.0
          %1014 = vmatpush1.xpose.msra.mxu0 %v996
          %1015 = vmatprep.subr.mxu0 0.0
          %1016 = vmatpush1.xpose.msra.mxu0 %v997
          %1017 = vmatprep.subr.mxu0 0.0
          %1018 = vmatpush1.xpose.msra.mxu0 %v998
          %1019 = vmatprep.subr.mxu0 0.0
          %1020 = vmatpush1.xpose.msra.mxu0 %v999
          %1021 = vmatprep.subr.mxu0 0.0
          %1022 = vmatpush1.xpose.msra.mxu0 %v1000
          %1023 = vmatprep.subr.mxu0 0.0
          %1024 = vmatpush1.xpose.msra.mxu0 %v1001
          %1025 = vmatprep.subr.mxu0 0.0
          %1026 = vmatpush1.xpose.msra.mxu0 %v1002
          %1027 = vmatprep.subr.mxu0 0.0
          %1028 = vmatpush1.xpose.msra.mxu0 %v1003
          %1029 = vmatprep.subr.mxu0 0.0
          %1030 = vmatpush1.xpose.msra.mxu0 %v1004
          %1031 = vmatprep.subr.mxu0 0.0
          %1032 = vmatpush1.xpose.msra.mxu0 %v1005
          %1033 = vmatprep.subr.mxu0 0.0
          %1034 = vmatpush1.xpose.msra.mxu0 %v1006
          %1035 = vmatprep.subr.mxu0 0.0
          %1036 = vmatpush1.xpose.msra.mxu0 %v1007
          %1037 = vmatprep.subr.mxu0 0.0
          %1038 = vmatpush1.xpose.msra.mxu0 %v1008
          %1039 = vmatprep.subr.mxu0 0.0
          %1040 = vmatpush1.xpose.msra.mxu0 %v1009
          %1041 = vmatprep.subr.mxu0 0.0
          %1042 = vmatpush1.xpose.msra.mxu0 %v1010
          %1043 = vmatprep.subr.mxu0 0.0
          %1044 = vmatpush1.xpose.msra.mxu0 0.0
          %1045 = vmatprep.subr.mxu0 0.0
          %1046 = vmatpush1.xpose.msra.mxu0 0.0
          %1047 = vmatprep.subr.mxu0 0.0
          %1048 = vmatpush1.xpose.msra.mxu0 0.0
          %1049 = vmatprep.subr.mxu0 0.0
          %1050 = vmatpush1.xpose.msra.mxu0 0.0
          %1051 = vmatprep.subr.mxu0 0.0
          %1052 = vmatpush1.xpose.msra.mxu0 0.0
          %1053 = vmatprep.subr.mxu0 0.0
          %1054 = vmatpush1.xpose.msra.mxu0 0.0
          %1055 = vmatprep.subr.mxu0 0.0
          %1056 = vmatpush1.xpose.msra.mxu0 0.0
          %1057 = vmatprep.subr.mxu0 0.0
          %1058 = vmatpush1.xpose.msra.mxu0 0.0
          %1059 = vmatprep.subr.mxu0 0.0
          %1060 = vmatpush1.xpose.msra.mxu0 0.0
          %1061 = vmatprep.subr.mxu0 0.0
          %1062 = vmatpush1.xpose.msra.mxu0 0.0
          %1063 = vmatprep.subr.mxu0 0.0
          %1064 = vmatpush1.xpose.msra.mxu0 0.0
          %1065 = vmatprep.subr.mxu0 0.0
          %1066 = vmatpush1.xpose.msra.mxu0 0.0
          %1067 = vmatprep.subr.mxu0 0.0
          %1068 = vmatpush1.xpose.msra.mxu0 0.0
          %1069 = vmatprep.subr.mxu0 0.0
          %1070 = vmatpush1.xpose.msra.mxu0 0.0
          %1071 = vmatprep.subr.mxu0 0.0
          %1072 = vmatpush1.xpose.msra.mxu0 0.0
          %1073 = vmatprep.subr.mxu0 0.0
          %1074 = vmatpush1.xpose.msra.mxu0 0.0
          %1075 = vmatprep.mubr.f32.mxu0 0.0
          %1076 = vmatmul.mubr.f32.gmra.mrb[0].mxu0 %v853
          %v1077 = vpop.f32.mrb[0].mxu0
          %v1078 = vadd.f32 0.0, %v1077
          %v1079 = vpop.f32.mrb[0].mxu0
          %1080 = vmatprep.mubr.f32.mxu0 0.0
          %1081 = vmatmul.mubr.f32.gmra.mrb[0].mxu0 %v858
          %v1082 = vpop.f32.mrb[0].mxu0
          %v1083 = vadd.f32 0.0, %v1082
          %v1084 = vpop.f32.mrb[0].mxu0
          %1085 = vmatprep.mubr.f32.mxu0 0.0
          %1086 = vmatmul.mubr.f32.gmra.mrb[0].mxu0 %v863
          %v1087 = vpop.f32.mrb[0].mxu0
          %v1088 = vadd.f32 0.0, %v1087
          %v1089 = vpop.f32.mrb[0].mxu0
          %1090 = vmatprep.mubr.f32.mxu0 0.0
          %1091 = vmatmul.mubr.f32.gmra.mrb[0].mxu0 %v868
          %v1092 = vpop.f32.mrb[0].mxu0
          %v1093 = vadd.f32 0.0, %v1092
          %v1094 = vpop.f32.mrb[0].mxu0
          %1095 = vmatprep.mubr.f32.mxu0 0.0
          %1096 = vmatmul.mubr.f32.gmra.mrb[0].mxu0 %v873
          %v1097 = vpop.f32.mrb[0].mxu0
          %v1098 = vadd.f32 0.0, %v1097
          %v1099 = vpop.f32.mrb[0].mxu0
          %1100 = vmatprep.mubr.f32.mxu0 0.0
          %1101 = vmatmul.mubr.f32.gmra.mrb[0].mxu0 %v878
          %v1102 = vpop.f32.mrb[0].mxu0
          %v1103 = vadd.f32 0.0, %v1102
          %v1104 = vpop.f32.mrb[0].mxu0
          %1105 = vmatprep.mubr.f32.mxu0 0.0
          %1106 = vmatmul.mubr.f32.gmra.mrb[0].mxu0 %v883
          %v1107 = vpop.f32.mrb[0].mxu0
          %v1108 = vadd.f32 0.0, %v1107
          %v1109 = vpop.f32.mrb[0].mxu0
          %1110 = vmatprep.mubr.f32.mxu0 0.0
          %1111 = vmatmul.mubr.f32.gmra.mrb[0].mxu0 %v888
          %v1112 = vpop.f32.mrb[0].mxu0
          %v1113 = vadd.f32 0.0, %v1112
          %v1114 = vpop.f32.mrb[0].mxu0
          %1115 = vmatprep.mubr.f32.mxu0 0.0
          %1116 = vmatmul.mubr.f32.gmra.mrb[0].mxu0 %v893
          %v1117 = vpop.f32.mrb[0].mxu0
          %v1118 = vadd.f32 0.0, %v1117
          %v1119 = vpop.f32.mrb[0].mxu0
          %1120 = vmatprep.mubr.f32.mxu0 0.0
          %1121 = vmatmul.mubr.f32.gmra.mrb[0].mxu0 %v898
          %v1122 = vpop.f32.mrb[0].mxu0
          %v1123 = vadd.f32 0.0, %v1122
          %v1124 = vpop.f32.mrb[0].mxu0
          %1125 = vmatprep.mubr.f32.mxu0 0.0
          %1126 = vmatmul.mubr.f32.gmra.mrb[0].mxu0 %v903
          %v1127 = vpop.f32.mrb[0].mxu0
          %v1128 = vadd.f32 0.0, %v1127
          %v1129 = vpop.f32.mrb[0].mxu0
          %1130 = vmatprep.mubr.f32.mxu0 0.0
          %1131 = vmatmul.mubr.f32.gmra.mrb[0].mxu0 %v908
          %v1132 = vpop.f32.mrb[0].mxu0
          %v1133 = vadd.f32 0.0, %v1132
          %v1134 = vpop.f32.mrb[0].mxu0
          %1135 = vmatprep.mubr.f32.mxu0 0.0
          %1136 = vmatmul.mubr.f32.gmra.mrb[0].mxu0 %v913
          %v1137 = vpop.f32.mrb[0].mxu0
          %v1138 = vadd.f32 0.0, %v1137
          %v1139 = vpop.f32.mrb[0].mxu0
          %1140 = vmatprep.mubr.f32.mxu0 0.0
          %1141 = vmatmul.mubr.f32.gmra.mrb[0].mxu0 %v918
          %v1142 = vpop.f32.mrb[0].mxu0
          %v1143 = vadd.f32 0.0, %v1142
          %v1144 = vpop.f32.mrb[0].mxu0
          %1145 = vmatprep.mubr.f32.mxu0 0.0
          %1146 = vmatmul.mubr.f32.gmra.mrb[0].mxu0 %v923
          %v1147 = vpop.f32.mrb[0].mxu0
          %v1148 = vadd.f32 0.0, %v1147
          %v1149 = vpop.f32.mrb[0].mxu0
          %1150 = vmatprep.mubr.f32.mxu0 0.0
          %1151 = vmatmul.mubr.f32.gmra.mrb[0].mxu0 %v928
          %v1152 = vpop.f32.mrb[0].mxu0
          %v1153 = vadd.f32 0.0, %v1152
          %v1154 = vpop.f32.mrb[0].mxu0
          %1155 = vdwg.mxu0
          %v1156 = vsub.f32 %v1078, %v979
          %v1157 = vsub.f32 %v1083, %v980
          %v1158 = vsub.f32 %v1088, %v981
          %v1159 = vsub.f32 %v1093, %v982
          %v1160 = vsub.f32 %v1098, %v983
          %v1161 = vsub.f32 %v1103, %v984
          %v1162 = vsub.f32 %v1108, %v985
          %v1163 = vsub.f32 %v1113, %v986
          %v1164 = vsub.f32 %v1118, %v987
          %v1165 = vsub.f32 %v1123, %v988
          %v1166 = vsub.f32 %v1128, %v989
          %v1167 = vsub.f32 %v1133, %v990
          %v1168 = vsub.f32 %v1138, %v991
          %v1169 = vsub.f32 %v1143, %v992
          %v1170 = vsub.f32 %v1148, %v993
          %v1171 = vsub.f32 %v1153, %v994
          %v1172 = vld [vmem:[%s7] sm:$0x1]
          %v1174 = vlaneseq
          %v1175 = vshrl.u32 %v1174, 7
          %v1176 = vsub.s32 0, %v1175
          %v1177 = vrot.slane %v1172, %v1176
          %v1179 = vsub.f32 %v1156, %v1177
          %v1180 = vsub.f32 %v1157, %v1177
          %v1181 = vsub.f32 %v1158, %v1177
          %v1182 = vsub.f32 %v1159, %v1177
          %v1183 = vsub.f32 %v1160, %v1177
          %v1184 = vsub.f32 %v1161, %v1177
          %v1185 = vsub.f32 %v1162, %v1177
          %v1186 = vsub.f32 %v1163, %v1177
          %v1187 = vsub.f32 %v1164, %v1177
          %v1188 = vsub.f32 %v1165, %v1177
          %v1189 = vsub.f32 %v1166, %v1177
          %v1190 = vsub.f32 %v1167, %v1177
          %v1191 = vsub.f32 %v1168, %v1177
          %v1192 = vsub.f32 %v1169, %v1177
          %v1193 = vsub.f32 %v1170, %v1177
          %v1194 = vsub.f32 %v1171, %v1177
          %v1195 = vmin.f32 %v1179, 0.0
          %v1196 = vmin.f32 %v1180, 0.0
          %v1197 = vmin.f32 %v1181, 0.0
          %v1198 = vmin.f32 %v1182, 0.0
          %v1199 = vmin.f32 %v1183, 0.0
          %v1200 = vmin.f32 %v1184, 0.0
          %v1201 = vmin.f32 %v1185, 0.0
          %v1202 = vmin.f32 %v1186, 0.0
          %v1203 = vmin.f32 %v1187, 0.0
          %v1204 = vmin.f32 %v1188, 0.0
          %v1205 = vmin.f32 %v1189, 0.0
          %v1206 = vmin.f32 %v1190, 0.0
          %v1207 = vmin.f32 %v1191, 0.0
          %v1208 = vmin.f32 %v1192, 0.0
          %v1209 = vmin.f32 %v1193, 0.0
          %v1210 = vmin.f32 %v1194, 0.0
          %v1211 = vmul.f32 %v1195, 1.442695
          %v1212 = vpow.pop %v1211
          %v1213 = vmul.f32 %v1196, 1.442695
          %v1214 = vpow.pop %v1213
          %v1215 = vmul.f32 %v1197, 1.442695
          %v1216 = vpow.pop %v1215
          %v1217 = vmul.f32 %v1198, 1.442695
          %v1218 = vpow.pop %v1217
          %v1219 = vmul.f32 %v1199, 1.442695
          %v1220 = vpow.pop %v1219
          %v1221 = vmul.f32 %v1200, 1.442695
          %v1222 = vpow.pop %v1221
          %v1223 = vmul.f32 %v1201, 1.442695
          %v1224 = vpow.pop %v1223
          %v1225 = vmul.f32 %v1202, 1.442695
          %v1226 = vpow.pop %v1225
          %v1227 = vmul.f32 %v1203, 1.442695
          %v1228 = vpow.pop %v1227
          %v1229 = vmul.f32 %v1204, 1.442695
          %v1230 = vpow.pop %v1229
          %v1231 = vmul.f32 %v1205, 1.442695
          %v1232 = vpow.pop %v1231
          %v1233 = vmul.f32 %v1206, 1.442695
          %v1234 = vpow.pop %v1233
          %v1235 = vmul.f32 %v1207, 1.442695
          %v1236 = vpow.pop %v1235
          %v1237 = vmul.f32 %v1208, 1.442695
          %v1238 = vpow.pop %v1237
          %v1239 = vmul.f32 %v1209, 1.442695
          %v1240 = vpow.pop %v1239
          %v1241 = vmul.f32 %v1210, 1.442695
          %v1242 = vpow.pop %v1241
          %v1243 = vld [vmem:[%s9] sm:$0x1]
          %1244 = vmatprep.subr.mxu0 0.0
          %1245 = vmatpush1.xpose.msra.mxu0 %v1212
          %1246 = vmatprep.subr.mxu0 0.0
          %1247 = vmatpush1.xpose.msra.mxu0 %v1214
          %1248 = vmatprep.subr.mxu0 0.0
          %1249 = vmatpush1.xpose.msra.mxu0 %v1216
          %1250 = vmatprep.subr.mxu0 0.0
          %1251 = vmatpush1.xpose.msra.mxu0 %v1218
          %1252 = vmatprep.subr.mxu0 0.0
          %1253 = vmatpush1.xpose.msra.mxu0 %v1220
          %1254 = vmatprep.subr.mxu0 0.0
          %1255 = vmatpush1.xpose.msra.mxu0 %v1222
          %1256 = vmatprep.subr.mxu0 0.0
          %1257 = vmatpush1.xpose.msra.mxu0 %v1224
          %1258 = vmatprep.subr.mxu0 0.0
          %1259 = vmatpush1.xpose.msra.mxu0 %v1226
          %1260 = vmatprep.subr.mxu0 0.0
          %1261 = vmatpush1.xpose.msra.mxu0 %v1228
          %1262 = vmatprep.subr.mxu0 0.0
          %1263 = vmatpush1.xpose.msra.mxu0 %v1230
          %1264 = vmatprep.subr.mxu0 0.0
          %1265 = vmatpush1.xpose.msra.mxu0 %v1232
          %1266 = vmatprep.subr.mxu0 0.0
          %1267 = vmatpush1.xpose.msra.mxu0 %v1234
          %1268 = vmatprep.subr.mxu0 0.0
          %1269 = vmatpush1.xpose.msra.mxu0 %v1236
          %1270 = vmatprep.subr.mxu0 0.0
          %1271 = vmatpush1.xpose.msra.mxu0 %v1238
          %1272 = vmatprep.subr.mxu0 0.0
          %1273 = vmatpush1.xpose.msra.mxu0 %v1240
          %1274 = vmatprep.subr.mxu0 0.0
          %1275 = vmatpush1.xpose.msra.mxu0 %v1242
          %1276 = vmatprep.subr.mxu0 0.0
          %1277 = vmatpush1.xpose.msra.mxu0 0.0
          %1278 = vmatprep.subr.mxu0 0.0
          %1279 = vmatpush1.xpose.msra.mxu0 0.0
          %1280 = vmatprep.subr.mxu0 0.0
          %1281 = vmatpush1.xpose.msra.mxu0 0.0
          %1282 = vmatprep.subr.mxu0 0.0
          %1283 = vmatpush1.xpose.msra.mxu0 0.0
          %1284 = vmatprep.subr.mxu0 0.0
          %1285 = vmatpush1.xpose.msra.mxu0 0.0
          %1286 = vmatprep.subr.mxu0 0.0
          %1287 = vmatpush1.xpose.msra.mxu0 0.0
          %1288 = vmatprep.subr.mxu0 0.0
          %1289 = vmatpush1.xpose.msra.mxu0 0.0
          %1290 = vmatprep.subr.mxu0 0.0
          %1291 = vmatpush1.xpose.msra.mxu0 0.0
          %1292 = vmatprep.subr.mxu0 0.0
          %1293 = vmatpush1.xpose.msra.mxu0 0.0
          %1294 = vmatprep.subr.mxu0 0.0
          %1295 = vmatpush1.xpose.msra.mxu0 0.0
          %1296 = vmatprep.subr.mxu0 0.0
          %1297 = vmatpush1.xpose.msra.mxu0 0.0
          %1298 = vmatprep.subr.mxu0 0.0
          %1299 = vmatpush1.xpose.msra.mxu0 0.0
          %1300 = vmatprep.subr.mxu0 0.0
          %1301 = vmatpush1.xpose.msra.mxu0 0.0
          %1302 = vmatprep.subr.mxu0 0.0
          %1303 = vmatpush1.xpose.msra.mxu0 0.0
          %1304 = vmatprep.subr.mxu0 0.0
          %1305 = vmatpush1.xpose.msra.mxu0 0.0
          %1306 = vmatprep.subr.mxu0 0.0
          %1307 = vmatpush1.xpose.msra.mxu0 0.0
          %1308 = vmatprep.mubr.f32.mxu0 0.0
          %1309 = vmatmul.mubr.f32.gmra.mrb[0].mxu0 %v1243
          %v1310 = vpop.f32.mrb[0].mxu0
          %v1311 = vadd.f32 0.0, %v1310
          %v1312 = vpop.f32.mrb[0].mxu0
          %1313 = vdwg.mxu0
          %1314 = vst [vmem:[%s547] sm:$0x1] %v1311
          %1315 = vst [vmem:[#allocation2] sm:$0xff] %v853
          %1316 = vst [vmem:[#allocation2 + $0x8] sm:$0xff] %v858
          %1317 = vst [vmem:[#allocation2 + $0x10] sm:$0xff] %v863
          %1318 = vst [vmem:[#allocation2 + $0x18] sm:$0xff] %v868
          %1319 = vst [vmem:[#allocation2 + $0x20] sm:$0xff] %v873
          %1320 = vst [vmem:[#allocation2 + $0x28] sm:$0xff] %v878
          %1321 = vst [vmem:[#allocation2 + $0x30] sm:$0xff] %v883
          %1322 = vst [vmem:[#allocation2 + $0x38] sm:$0xff] %v888
          %1323 = vst [vmem:[#allocation2 + $0x40] sm:$0xff] %v893
          %1324 = vst [vmem:[#allocation2 + $0x48] sm:$0xff] %v898
          %1325 = vst [vmem:[#allocation2 + $0x50] sm:$0xff] %v903
          %1326 = vst [vmem:[#allocation2 + $0x58] sm:$0xff] %v908
          %1327 = vst [vmem:[#allocation2 + $0x60] sm:$0xff] %v913
          %1328 = vst [vmem:[#allocation2 + $0x68] sm:$0xff] %v918
          %1329 = vst [vmem:[#allocation2 + $0x70] sm:$0xff] %v923
          %1330 = vst [vmem:[#allocation2 + $0x78] sm:$0xff] %v928
          %vm1331 = vcmask 7168
          %1332 = vst.msk [vmem:[#allocation3] sm:$0xff] %vm1331, %v979
          %1333 = vst.msk [vmem:[#allocation3 + $0x8] sm:$0xff] %vm1331, %v980
          %1334 = vst.msk [vmem:[#allocation3 + $0x10] sm:$0xff] %vm1331, %v981
          %1335 = vst.msk [vmem:[#allocation3 + $0x18] sm:$0xff] %vm1331, %v982
          %1336 = vst.msk [vmem:[#allocation3 + $0x20] sm:$0xff] %vm1331, %v983
          %1337 = vst.msk [vmem:[#allocation3 + $0x28] sm:$0xff] %vm1331, %v984
          %1338 = vst.msk [vmem:[#allocation3 + $0x30] sm:$0xff] %vm1331, %v985
          %1339 = vst.msk [vmem:[#allocation3 + $0x38] sm:$0xff] %vm1331, %v986
          %1340 = vst.msk [vmem:[#allocation3 + $0x40] sm:$0xff] %vm1331, %v987
          %1341 = vst.msk [vmem:[#allocation3 + $0x48] sm:$0xff] %vm1331, %v988
          %1342 = vst.msk [vmem:[#allocation3 + $0x50] sm:$0xff] %vm1331, %v989
          %1343 = vst.msk [vmem:[#allocation3 + $0x58] sm:$0xff] %vm1331, %v990
          %1344 = vst.msk [vmem:[#allocation3 + $0x60] sm:$0xff] %vm1331, %v991
          %1345 = vst.msk [vmem:[#allocation3 + $0x68] sm:$0xff] %vm1331, %v992
          %1346 = vst.msk [vmem:[#allocation3 + $0x70] sm:$0xff] %vm1331, %v993
          %1347 = vst.msk [vmem:[#allocation3 + $0x78] sm:$0xff] %vm1331, %v994
          %v1348 = vpack.c.bf16 %v1214, %v1212
          %v1349 = vpack.c.bf16 %v1218, %v1216
          %v1350 = vpack.c.bf16 %v1222, %v1220
          %v1351 = vpack.c.bf16 %v1226, %v1224
          %v1352 = vpack.c.bf16 %v1230, %v1228
          %v1353 = vpack.c.bf16 %v1234, %v1232
          %v1354 = vpack.c.bf16 %v1238, %v1236
          %v1355 = vpack.c.bf16 %v1242, %v1240
          %v1356 = vld [vmem:[#allocation15] sm:$0xf]
          %v1357 = vld [vmem:[#allocation15 + $0x4] sm:$0xf]
          %v1358 = vld [vmem:[#allocation15 + $0x8] sm:$0xf]
          %v1359 = vld [vmem:[#allocation15 + $0xc] sm:$0xf]
          %v1360 = vld [vmem:[#allocation15 + $0x10] sm:$0xf]
          %v1361 = vld [vmem:[#allocation15 + $0x14] sm:$0xf]
          %v1362 = vld [vmem:[#allocation15 + $0x18] sm:$0xf]
          %v1363 = vld [vmem:[#allocation15 + $0x1c] sm:$0xf]
          %v1364 = vld [vmem:[#allocation15 + $0x20] sm:$0xf]
          %v1365 = vld [vmem:[#allocation15 + $0x24] sm:$0xf]
          %v1366 = vld [vmem:[#allocation15 + $0x28] sm:$0xf]
          %v1367 = vld [vmem:[#allocation15 + $0x2c] sm:$0xf]
          %v1368 = vld [vmem:[#allocation15 + $0x30] sm:$0xf]
          %v1369 = vld [vmem:[#allocation15 + $0x34] sm:$0xf]
          %v1370 = vld [vmem:[#allocation15 + $0x38] sm:$0xf]
          %v1371 = vld [vmem:[#allocation15 + $0x3c] sm:$0xf]
          %v1388 = vunpack.c.l.b16 %v1356
          %v1389 = vunpack.c.l.b16 %v1357
          %v1390 = vunpack.c.l.b16 %v1358
          %v1391 = vunpack.c.l.b16 %v1359
          %v1392 = vunpack.c.l.b16 %v1360
          %v1393 = vunpack.c.l.b16 %v1361
          %v1394 = vunpack.c.l.b16 %v1362
          %v1395 = vunpack.c.l.b16 %v1363
          %v1396 = vunpack.c.l.b16 %v1364
          %v1397 = vunpack.c.l.b16 %v1365
          %v1398 = vunpack.c.l.b16 %v1366
          %v1399 = vunpack.c.l.b16 %v1367
          %v1400 = vunpack.c.l.b16 %v1368
          %v1401 = vunpack.c.l.b16 %v1369
          %v1402 = vunpack.c.l.b16 %v1370
          %v1403 = vunpack.c.l.b16 %v1371
          %v1404 = vpack.c.b16 %v1389, %v1388
          %v1405 = vpack.c.b16 %v1391, %v1390
          %v1406 = vpack.c.b16 %v1393, %v1392
          %v1407 = vpack.c.b16 %v1395, %v1394
          %v1408 = vpack.c.b16 %v1397, %v1396
          %v1409 = vpack.c.b16 %v1399, %v1398
          %v1410 = vpack.c.b16 %v1401, %v1400
          %v1411 = vpack.c.b16 %v1403, %v1402
          %1420 = vmatprep.subr.bf16.mxu0 0
          %1421 = vmatpush1.bf16.msra.mxu0 %v1404
          %1422 = vmatprep.subr.bf16.mxu0 0
          %1423 = vmatpush1.bf16.msra.mxu0 %v1405
          %1424 = vmatprep.subr.bf16.mxu0 0
          %1425 = vmatpush1.bf16.msra.mxu0 %v1406
          %1426 = vmatprep.subr.bf16.mxu0 0
          %1427 = vmatpush1.bf16.msra.mxu0 %v1407
          %1428 = vmatprep.subr.bf16.mxu0 0
          %1429 = vmatpush1.bf16.msra.mxu0 %v1408
          %1430 = vmatprep.subr.bf16.mxu0 0
          %1431 = vmatpush1.bf16.msra.mxu0 %v1409
          %1432 = vmatprep.subr.bf16.mxu0 0
          %1433 = vmatpush1.bf16.msra.mxu0 %v1410
          %1434 = vmatprep.subr.bf16.mxu0 0
          %1435 = vmatpush1.bf16.msra.mxu0 %v1411
          %1436 = vmatprep.subr.bf16.mxu0 0
          %1437 = vmatpush1.bf16.msra.mxu0 0
          %1438 = vmatprep.subr.bf16.mxu0 0
          %1439 = vmatpush1.bf16.msra.mxu0 0
          %1440 = vmatprep.subr.bf16.mxu0 0
          %1441 = vmatpush1.bf16.msra.mxu0 0
          %1442 = vmatprep.subr.bf16.mxu0 0
          %1443 = vmatpush1.bf16.msra.mxu0 0
          %1444 = vmatprep.subr.bf16.mxu0 0
          %1445 = vmatpush1.bf16.msra.mxu0 0
          %1446 = vmatprep.subr.bf16.mxu0 0
          %1447 = vmatpush1.bf16.msra.mxu0 0
          %1448 = vmatprep.subr.bf16.mxu0 0
          %1449 = vmatpush1.bf16.msra.mxu0 0
          %1450 = vmatprep.subr.bf16.mxu0 0
          %1451 = vmatpush1.bf16.msra.mxu0 0
          %1452 = vmatprep.mubr.bf16.mxu0 0
          %1453 = vmatmul.mubr.bf16.gmra.mrb[0].mxu0 %v1348
          %v1454 = vpop.f32.mrb[0].mxu0
          %v1455 = vadd.f32 0.0, %v1454
          %v1456 = vpop.f32.mrb[0].mxu0
          %v1457 = vpop.f32.mrb[0].mxu0
          %v1458 = vadd.f32 0.0, %v1457
          %v1459 = vpop.f32.mrb[0].mxu0
          %1460 = vmatprep.mubr.bf16.mxu0 0
          %1461 = vmatmul.mubr.bf16.gmra.mrb[0].mxu0 %v1349
          %v1462 = vpop.f32.mrb[0].mxu0
          %v1463 = vadd.f32 0.0, %v1462
          %v1464 = vpop.f32.mrb[0].mxu0
          %v1465 = vpop.f32.mrb[0].mxu0
          %v1466 = vadd.f32 0.0, %v1465
          %v1467 = vpop.f32.mrb[0].mxu0
          %1468 = vmatprep.mubr.bf16.mxu0 0
          %1469 = vmatmul.mubr.bf16.gmra.mrb[0].mxu0 %v1350
          %v1470 = vpop.f32.mrb[0].mxu0
          %v1471 = vadd.f32 0.0, %v1470
          %v1472 = vpop.f32.mrb[0].mxu0
          %v1473 = vpop.f32.mrb[0].mxu0
          %v1474 = vadd.f32 0.0, %v1473
          %v1475 = vpop.f32.mrb[0].mxu0
          %1476 = vmatprep.mubr.bf16.mxu0 0
          %1477 = vmatmul.mubr.bf16.gmra.mrb[0].mxu0 %v1351
          %v1478 = vpop.f32.mrb[0].mxu0
          %v1479 = vadd.f32 0.0, %v1478
          %v1480 = vpop.f32.mrb[0].mxu0
          %v1481 = vpop.f32.mrb[0].mxu0
          %v1482 = vadd.f32 0.0, %v1481
          %v1483 = vpop.f32.mrb[0].mxu0
          %1484 = vmatprep.mubr.bf16.mxu0 0
          %1485 = vmatmul.mubr.bf16.gmra.mrb[0].mxu0 %v1352
          %v1486 = vpop.f32.mrb[0].mxu0
          %v1487 = vadd.f32 0.0, %v1486
          %v1488 = vpop.f32.mrb[0].mxu0
          %v1489 = vpop.f32.mrb[0].mxu0
          %v1490 = vadd.f32 0.0, %v1489
          %v1491 = vpop.f32.mrb[0].mxu0
          %1492 = vmatprep.mubr.bf16.mxu0 0
          %1493 = vmatmul.mubr.bf16.gmra.mrb[0].mxu0 %v1353
          %v1494 = vpop.f32.mrb[0].mxu0
          %v1495 = vadd.f32 0.0, %v1494
          %v1496 = vpop.f32.mrb[0].mxu0
          %v1497 = vpop.f32.mrb[0].mxu0
          %v1498 = vadd.f32 0.0, %v1497
          %v1499 = vpop.f32.mrb[0].mxu0
          %1500 = vmatprep.mubr.bf16.mxu0 0
          %1501 = vmatmul.mubr.bf16.gmra.mrb[0].mxu0 %v1354
          %v1502 = vpop.f32.mrb[0].mxu0
          %v1503 = vadd.f32 0.0, %v1502
          %v1504 = vpop.f32.mrb[0].mxu0
          %v1505 = vpop.f32.mrb[0].mxu0
          %v1506 = vadd.f32 0.0, %v1505
          %v1507 = vpop.f32.mrb[0].mxu0
          %1508 = vmatprep.mubr.bf16.mxu0 0
          %1509 = vmatmul.mubr.bf16.gmra.mrb[0].mxu0 %v1355
          %v1510 = vpop.f32.mrb[0].mxu0
          %v1511 = vadd.f32 0.0, %v1510
          %v1512 = vpop.f32.mrb[0].mxu0
          %v1513 = vpop.f32.mrb[0].mxu0
          %v1514 = vadd.f32 0.0, %v1513
          %v1515 = vpop.f32.mrb[0].mxu0
          %1516 = vdwg.mxu0
          %v1517 = vpack.c.bf16 %v1458, %v1455
          %v1518 = vpack.c.bf16 %v1466, %v1463
          %v1519 = vpack.c.bf16 %v1474, %v1471
          %v1520 = vpack.c.bf16 %v1482, %v1479
          %v1521 = vpack.c.bf16 %v1490, %v1487
          %v1522 = vpack.c.bf16 %v1498, %v1495
          %v1523 = vpack.c.bf16 %v1506, %v1503
          %v1524 = vpack.c.bf16 %v1514, %v1511
          %1525 = vst [vmem:[#allocation4] sm:$0xff] %v1517
          %1526 = vst [vmem:[#allocation4 + $0x8] sm:$0xff] %v1518
          %1527 = vst [vmem:[#allocation4 + $0x10] sm:$0xff] %v1519
          %1528 = vst [vmem:[#allocation4 + $0x18] sm:$0xff] %v1520
          %1529 = vst [vmem:[#allocation4 + $0x20] sm:$0xff] %v1521
          %1530 = vst [vmem:[#allocation4 + $0x28] sm:$0xff] %v1522
          %1531 = vst [vmem:[#allocation4 + $0x30] sm:$0xff] %v1523
          %1532 = vst [vmem:[#allocation4 + $0x38] sm:$0xff] %v1524
        $region92: #{tpu_custom_call.1} parent=63 // pred_fallthru
          _
        %v1533 = vld [vmem:[%s489] sm:$0xff]
        %v1534 = vld [vmem:[%s489 + $0x8] sm:$0xff]
        %v1535 = vld [vmem:[%s489 + $0x10] sm:$0xff]
        %v1536 = vld [vmem:[%s489 + $0x18] sm:$0xff]
        %v1537 = vld [vmem:[%s489 + $0x20] sm:$0xff]
        %v1538 = vld [vmem:[%s489 + $0x28] sm:$0xff]
        %v1539 = vld [vmem:[%s489 + $0x30] sm:$0xff]
        %v1540 = vld [vmem:[%s489 + $0x38] sm:$0xff]
        %v1541 = vld [vmem:[%s489 + $0x40] sm:$0xff]
        %v1542 = vld [vmem:[%s489 + $0x48] sm:$0xff]
        %v1543 = vld [vmem:[%s489 + $0x50] sm:$0xff]
        %v1544 = vld [vmem:[%s489 + $0x58] sm:$0xff]
        %v1545 = vld [vmem:[%s489 + $0x60] sm:$0xff]
        %v1546 = vld [vmem:[%s489 + $0x68] sm:$0xff]
        %v1547 = vld [vmem:[%s489 + $0x70] sm:$0xff]
        %v1548 = vld [vmem:[%s489 + $0x78] sm:$0xff]
        %v1549 = vld [vmem:[#allocation11] sm:$0xff]
        %v1550 = vld [vmem:[#allocation11 + $0x8] sm:$0xff]
        %v1551 = vld [vmem:[#allocation11 + $0x10] sm:$0xff]
        %v1552 = vld [vmem:[#allocation11 + $0x18] sm:$0xff]
        %v1553 = vld [vmem:[#allocation11 + $0x20] sm:$0xff]
        %v1554 = vld [vmem:[#allocation11 + $0x28] sm:$0xff]
        %v1555 = vld [vmem:[#allocation11 + $0x30] sm:$0xff]
        %v1556 = vld [vmem:[#allocation11 + $0x38] sm:$0xff]
        %v1557 = vld [vmem:[#allocation11 + $0x40] sm:$0xff]
        %v1558 = vld [vmem:[#allocation11 + $0x48] sm:$0xff]
        %v1559 = vld [vmem:[#allocation11 + $0x50] sm:$0xff]
        %v1560 = vld [vmem:[#allocation11 + $0x58] sm:$0xff]
        %v1561 = vld [vmem:[#allocation11 + $0x60] sm:$0xff]
        %v1562 = vld [vmem:[#allocation11 + $0x68] sm:$0xff]
        %v1563 = vld [vmem:[#allocation11 + $0x70] sm:$0xff]
        %v1564 = vld [vmem:[#allocation11 + $0x78] sm:$0xff]
        %v1565 = vld [vmem:[%s3] sm:$0x1]
        %v1567 = vlaneseq
        %v1568 = vshrl.u32 %v1567, 7
        %v1569 = vsub.s32 0, %v1568
        %v1570 = vrot.slane %v1565, %v1569
        %1572 = vmatprep.subr.mxu0 0.0
        %1573 = vmatpush1.msra.mxu0 %v1549
        %1574 = vmatprep.subr.mxu0 0.0
        %1575 = vmatpush1.msra.mxu0 %v1550
        %1576 = vmatprep.subr.mxu0 0.0
        %1577 = vmatpush1.msra.mxu0 %v1551
        %1578 = vmatprep.subr.mxu0 0.0
        %1579 = vmatpush1.msra.mxu0 %v1552
        %1580 = vmatprep.subr.mxu0 0.0
        %1581 = vmatpush1.msra.mxu0 %v1553
        %1582 = vmatprep.subr.mxu0 0.0
        %1583 = vmatpush1.msra.mxu0 %v1554
        %1584 = vmatprep.subr.mxu0 0.0
        %1585 = vmatpush1.msra.mxu0 %v1555
        %1586 = vmatprep.subr.mxu0 0.0
        %1587 = vmatpush1.msra.mxu0 %v1556
        %1588 = vmatprep.subr.mxu0 0.0
        %1589 = vmatpush1.msra.mxu0 %v1557
        %1590 = vmatprep.subr.mxu0 0.0
        %1591 = vmatpush1.msra.mxu0 %v1558
        %1592 = vmatprep.subr.mxu0 0.0
        %1593 = vmatpush1.msra.mxu0 %v1559
        %1594 = vmatprep.subr.mxu0 0.0
        %1595 = vmatpush1.msra.mxu0 %v1560
        %1596 = vmatprep.subr.mxu0 0.0
        %1597 = vmatpush1.msra.mxu0 %v1561
        %1598 = vmatprep.subr.mxu0 0.0
        %1599 = vmatpush1.msra.mxu0 %v1562
        %1600 = vmatprep.subr.mxu0 0.0
        %1601 = vmatpush1.msra.mxu0 %v1563
        %1602 = vmatprep.subr.mxu0 0.0
        %1603 = vmatpush1.msra.mxu0 %v1564
        %1604 = vmatprep.subr.mxu0 0.0
        %1605 = vmatpush1.msra.mxu0 0.0
        %1606 = vmatprep.subr.mxu0 0.0
        %1607 = vmatpush1.msra.mxu0 0.0
        %1608 = vmatprep.subr.mxu0 0.0
        %1609 = vmatpush1.msra.mxu0 0.0
        %1610 = vmatprep.subr.mxu0 0.0
        %1611 = vmatpush1.msra.mxu0 0.0
        %1612 = vmatprep.subr.mxu0 0.0
        %1613 = vmatpush1.msra.mxu0 0.0
        %1614 = vmatprep.subr.mxu0 0.0
        %1615 = vmatpush1.msra.mxu0 0.0
        %1616 = vmatprep.subr.mxu0 0.0
        %1617 = vmatpush1.msra.mxu0 0.0
        %1618 = vmatprep.subr.mxu0 0.0
        %1619 = vmatpush1.msra.mxu0 0.0
        %1620 = vmatprep.subr.mxu0 0.0
        %1621 = vmatpush1.msra.mxu0 0.0
        %1622 = vmatprep.subr.mxu0 0.0
        %1623 = vmatpush1.msra.mxu0 0.0
        %1624 = vmatprep.subr.mxu0 0.0
        %1625 = vmatpush1.msra.mxu0 0.0
        %1626 = vmatprep.subr.mxu0 0.0
        %1627 = vmatpush1.msra.mxu0 0.0
        %1628 = vmatprep.subr.mxu0 0.0
        %1629 = vmatpush1.msra.mxu0 0.0
        %1630 = vmatprep.subr.mxu0 0.0
        %1631 = vmatpush1.msra.mxu0 0.0
        %1632 = vmatprep.subr.mxu0 0.0
        %1633 = vmatpush1.msra.mxu0 0.0
        %1634 = vmatprep.subr.mxu0 0.0
        %1635 = vmatpush1.msra.mxu0 0.0
        %1636 = vmatprep.mubr.f32.mxu0 0.0
        %1637 = vmatmul.mubr.f32.gmra.mrb[0].mxu0 %v1533
        %v1638 = vpop.f32.mrb[0].mxu0
        %v1639 = vadd.f32 %v1570, %v1638
        %v1640 = vpop.f32.mrb[0].mxu0
        %1641 = vmatprep.mubr.f32.mxu0 0.0
        %1642 = vmatmul.mubr.f32.gmra.mrb[0].mxu0 %v1534
        %v1643 = vpop.f32.mrb[0].mxu0
        %v1644 = vadd.f32 %v1570, %v1643
        %v1645 = vpop.f32.mrb[0].mxu0
        %1646 = vmatprep.mubr.f32.mxu0 0.0
        %1647 = vmatmul.mubr.f32.gmra.mrb[0].mxu0 %v1535
        %v1648 = vpop.f32.mrb[0].mxu0
        %v1649 = vadd.f32 %v1570, %v1648
        %v1650 = vpop.f32.mrb[0].mxu0
        %1651 = vmatprep.mubr.f32.mxu0 0.0
        %1652 = vmatmul.mubr.f32.gmra.mrb[0].mxu0 %v1536
        %v1653 = vpop.f32.mrb[0].mxu0
        %v1654 = vadd.f32 %v1570, %v1653
        %v1655 = vpop.f32.mrb[0].mxu0
        %1656 = vmatprep.mubr.f32.mxu0 0.0
        %1657 = vmatmul.mubr.f32.gmra.mrb[0].mxu0 %v1537
        %v1658 = vpop.f32.mrb[0].mxu0
        %v1659 = vadd.f32 %v1570, %v1658
        %v1660 = vpop.f32.mrb[0].mxu0
        %1661 = vmatprep.mubr.f32.mxu0 0.0
        %1662 = vmatmul.mubr.f32.gmra.mrb[0].mxu0 %v1538
        %v1663 = vpop.f32.mrb[0].mxu0
        %v1664 = vadd.f32 %v1570, %v1663
        %v1665 = vpop.f32.mrb[0].mxu0
        %1666 = vmatprep.mubr.f32.mxu0 0.0
        %1667 = vmatmul.mubr.f32.gmra.mrb[0].mxu0 %v1539
        %v1668 = vpop.f32.mrb[0].mxu0
        %v1669 = vadd.f32 %v1570, %v1668
        %v1670 = vpop.f32.mrb[0].mxu0
        %1671 = vmatprep.mubr.f32.mxu0 0.0
        %1672 = vmatmul.mubr.f32.gmra.mrb[0].mxu0 %v1540
        %v1673 = vpop.f32.mrb[0].mxu0
        %v1674 = vadd.f32 %v1570, %v1673
        %v1675 = vpop.f32.mrb[0].mxu0
        %1676 = vmatprep.mubr.f32.mxu0 0.0
        %1677 = vmatmul.mubr.f32.gmra.mrb[0].mxu0 %v1541
        %v1678 = vpop.f32.mrb[0].mxu0
        %v1679 = vadd.f32 %v1570, %v1678
        %v1680 = vpop.f32.mrb[0].mxu0
        %1681 = vmatprep.mubr.f32.mxu0 0.0
        %1682 = vmatmul.mubr.f32.gmra.mrb[0].mxu0 %v1542
        %v1683 = vpop.f32.mrb[0].mxu0
        %v1684 = vadd.f32 %v1570, %v1683
        %v1685 = vpop.f32.mrb[0].mxu0
        %1686 = vmatprep.mubr.f32.mxu0 0.0
        %1687 = vmatmul.mubr.f32.gmra.mrb[0].mxu0 %v1543
        %v1688 = vpop.f32.mrb[0].mxu0
        %v1689 = vadd.f32 %v1570, %v1688
        %v1690 = vpop.f32.mrb[0].mxu0
        %1691 = vmatprep.mubr.f32.mxu0 0.0
        %1692 = vmatmul.mubr.f32.gmra.mrb[0].mxu0 %v1544
        %v1693 = vpop.f32.mrb[0].mxu0
        %v1694 = vadd.f32 %v1570, %v1693
        %v1695 = vpop.f32.mrb[0].mxu0
        %1696 = vmatprep.mubr.f32.mxu0 0.0
        %1697 = vmatmul.mubr.f32.gmra.mrb[0].mxu0 %v1545
        %v1698 = vpop.f32.mrb[0].mxu0
        %v1699 = vadd.f32 %v1570, %v1698
        %v1700 = vpop.f32.mrb[0].mxu0
        %1701 = vmatprep.mubr.f32.mxu0 0.0
        %1702 = vmatmul.mubr.f32.gmra.mrb[0].mxu0 %v1546
        %v1703 = vpop.f32.mrb[0].mxu0
        %v1704 = vadd.f32 %v1570, %v1703
        %v1705 = vpop.f32.mrb[0].mxu0
        %1706 = vmatprep.mubr.f32.mxu0 0.0
        %1707 = vmatmul.mubr.f32.gmra.mrb[0].mxu0 %v1547
        %v1708 = vpop.f32.mrb[0].mxu0
        %v1709 = vadd.f32 %v1570, %v1708
        %v1710 = vpop.f32.mrb[0].mxu0
        %1711 = vmatprep.mubr.f32.mxu0 0.0
        %1712 = vmatmul.mubr.f32.gmra.mrb[0].mxu0 %v1548
        %v1713 = vpop.f32.mrb[0].mxu0
        %v1714 = vadd.f32 %v1570, %v1713
        %v1715 = vpop.f32.mrb[0].mxu0
        %1716 = vdwg.mxu0
        %v1717 = vmax.f32 %v1639, 0.0
        %v1718 = vmax.f32 %v1644, 0.0
        %v1719 = vmax.f32 %v1649, 0.0
        %v1720 = vmax.f32 %v1654, 0.0
        %v1721 = vmax.f32 %v1659, 0.0
        %v1722 = vmax.f32 %v1664, 0.0
        %v1723 = vmax.f32 %v1669, 0.0
        %v1724 = vmax.f32 %v1674, 0.0
        %v1725 = vmax.f32 %v1679, 0.0
        %v1726 = vmax.f32 %v1684, 0.0
        %v1727 = vmax.f32 %v1689, 0.0
        %v1728 = vmax.f32 %v1694, 0.0
        %v1729 = vmax.f32 %v1699, 0.0
        %v1730 = vmax.f32 %v1704, 0.0
        %v1731 = vmax.f32 %v1709, 0.0
        %v1732 = vmax.f32 %v1714, 0.0
        %v1733 = vld [vmem:[#allocation12] sm:$0xff]
        %v1734 = vld [vmem:[#allocation12 + $0x8] sm:$0xff]
        %v1735 = vld [vmem:[#allocation12 + $0x10] sm:$0xff]
        %v1736 = vld [vmem:[#allocation12 + $0x18] sm:$0xff]
        %v1737 = vld [vmem:[#allocation12 + $0x20] sm:$0xff]
        %v1738 = vld [vmem:[#allocation12 + $0x28] sm:$0xff]
        %v1739 = vld [vmem:[#allocation12 + $0x30] sm:$0xff]
        %v1740 = vld [vmem:[#allocation12 + $0x38] sm:$0xff]
        %v1741 = vld [vmem:[#allocation12 + $0x40] sm:$0xff]
        %v1742 = vld [vmem:[#allocation12 + $0x48] sm:$0xff]
        %v1743 = vld [vmem:[#allocation12 + $0x50] sm:$0xff]
        %v1744 = vld [vmem:[#allocation12 + $0x58] sm:$0xff]
        %v1745 = vld [vmem:[#allocation12 + $0x60] sm:$0xff]
        %v1746 = vld [vmem:[#allocation12 + $0x68] sm:$0xff]
        %v1747 = vld [vmem:[#allocation12 + $0x70] sm:$0xff]
        %v1748 = vld [vmem:[#allocation12 + $0x78] sm:$0xff]
        %v1749 = vld [vmem:[%s5] sm:$0x1]
        %v1751 = vlaneseq
        %v1752 = vshrl.u32 %v1751, 7
        %v1753 = vsub.s32 0, %v1752
        %v1754 = vrot.slane %v1749, %v1753
        %1756 = vmatprep.subr.mxu0 0.0
        %1757 = vmatpush1.msra.mxu0 %v1733
        %1758 = vmatprep.subr.mxu0 0.0
        %1759 = vmatpush1.msra.mxu0 %v1734
        %1760 = vmatprep.subr.mxu0 0.0
        %1761 = vmatpush1.msra.mxu0 %v1735
        %1762 = vmatprep.subr.mxu0 0.0
        %1763 = vmatpush1.msra.mxu0 %v1736
        %1764 = vmatprep.subr.mxu0 0.0
        %1765 = vmatpush1.msra.mxu0 %v1737
        %1766 = vmatprep.subr.mxu0 0.0
        %1767 = vmatpush1.msra.mxu0 %v1738
        %1768 = vmatprep.subr.mxu0 0.0
        %1769 = vmatpush1.msra.mxu0 %v1739
        %1770 = vmatprep.subr.mxu0 0.0
        %1771 = vmatpush1.msra.mxu0 %v1740
        %1772 = vmatprep.subr.mxu0 0.0
        %1773 = vmatpush1.msra.mxu0 %v1741
        %1774 = vmatprep.subr.mxu0 0.0
        %1775 = vmatpush1.msra.mxu0 %v1742
        %1776 = vmatprep.subr.mxu0 0.0
        %1777 = vmatpush1.msra.mxu0 %v1743
        %1778 = vmatprep.subr.mxu0 0.0
        %1779 = vmatpush1.msra.mxu0 %v1744
        %1780 = vmatprep.subr.mxu0 0.0
        %1781 = vmatpush1.msra.mxu0 %v1745
        %1782 = vmatprep.subr.mxu0 0.0
        %1783 = vmatpush1.msra.mxu0 %v1746
        %1784 = vmatprep.subr.mxu0 0.0
        %1785 = vmatpush1.msra.mxu0 %v1747
        %1786 = vmatprep.subr.mxu0 0.0
        %1787 = vmatpush1.msra.mxu0 %v1748
        %1788 = vmatprep.subr.mxu0 0.0
        %1789 = vmatpush1.msra.mxu0 0.0
        %1790 = vmatprep.subr.mxu0 0.0
        %1791 = vmatpush1.msra.mxu0 0.0
        %1792 = vmatprep.subr.mxu0 0.0
        %1793 = vmatpush1.msra.mxu0 0.0
        %1794 = vmatprep.subr.mxu0 0.0
        %1795 = vmatpush1.msra.mxu0 0.0
        %1796 = vmatprep.subr.mxu0 0.0
        %1797 = vmatpush1.msra.mxu0 0.0
        %1798 = vmatprep.subr.mxu0 0.0
        %1799 = vmatpush1.msra.mxu0 0.0
        %1800 = vmatprep.subr.mxu0 0.0
        %1801 = vmatpush1.msra.mxu0 0.0
        %1802 = vmatprep.subr.mxu0 0.0
        %1803 = vmatpush1.msra.mxu0 0.0
        %1804 = vmatprep.subr.mxu0 0.0
        %1805 = vmatpush1.msra.mxu0 0.0
        %1806 = vmatprep.subr.mxu0 0.0
        %1807 = vmatpush1.msra.mxu0 0.0
        %1808 = vmatprep.subr.mxu0 0.0
        %1809 = vmatpush1.msra.mxu0 0.0
        %1810 = vmatprep.subr.mxu0 0.0
        %1811 = vmatpush1.msra.mxu0 0.0
        %1812 = vmatprep.subr.mxu0 0.0
        %1813 = vmatpush1.msra.mxu0 0.0
        %1814 = vmatprep.subr.mxu0 0.0
        %1815 = vmatpush1.msra.mxu0 0.0
        %1816 = vmatprep.subr.mxu0 0.0
        %1817 = vmatpush1.msra.mxu0 0.0
        %1818 = vmatprep.subr.mxu0 0.0
        %1819 = vmatpush1.msra.mxu0 0.0
        %1820 = vmatprep.mubr.f32.mxu0 0.0
        %1821 = vmatmul.mubr.f32.gmra.mrb[0].mxu0 %v1717
        %v1822 = vpop.f32.mrb[0].mxu0
        %v1823 = vadd.f32 %v1754, %v1822
        %v1824 = vpop.f32.mrb[0].mxu0
        %1825 = vmatprep.mubr.f32.mxu0 0.0
        %1826 = vmatmul.mubr.f32.gmra.mrb[0].mxu0 %v1718
        %v1827 = vpop.f32.mrb[0].mxu0
        %v1828 = vadd.f32 %v1754, %v1827
        %v1829 = vpop.f32.mrb[0].mxu0
        %1830 = vmatprep.mubr.f32.mxu0 0.0
        %1831 = vmatmul.mubr.f32.gmra.mrb[0].mxu0 %v1719
        %v1832 = vpop.f32.mrb[0].mxu0
        %v1833 = vadd.f32 %v1754, %v1832
        %v1834 = vpop.f32.mrb[0].mxu0
        %1835 = vmatprep.mubr.f32.mxu0 0.0
        %1836 = vmatmul.mubr.f32.gmra.mrb[0].mxu0 %v1720
        %v1837 = vpop.f32.mrb[0].mxu0
        %v1838 = vadd.f32 %v1754, %v1837
        %v1839 = vpop.f32.mrb[0].mxu0
        %1840 = vmatprep.mubr.f32.mxu0 0.0
        %1841 = vmatmul.mubr.f32.gmra.mrb[0].mxu0 %v1721
        %v1842 = vpop.f32.mrb[0].mxu0
        %v1843 = vadd.f32 %v1754, %v1842
        %v1844 = vpop.f32.mrb[0].mxu0
        %1845 = vmatprep.mubr.f32.mxu0 0.0
        %1846 = vmatmul.mubr.f32.gmra.mrb[0].mxu0 %v1722
        %v1847 = vpop.f32.mrb[0].mxu0
        %v1848 = vadd.f32 %v1754, %v1847
        %v1849 = vpop.f32.mrb[0].mxu0
        %1850 = vmatprep.mubr.f32.mxu0 0.0
        %1851 = vmatmul.mubr.f32.gmra.mrb[0].mxu0 %v1723
        %v1852 = vpop.f32.mrb[0].mxu0
        %v1853 = vadd.f32 %v1754, %v1852
        %v1854 = vpop.f32.mrb[0].mxu0
        %1855 = vmatprep.mubr.f32.mxu0 0.0
        %1856 = vmatmul.mubr.f32.gmra.mrb[0].mxu0 %v1724
        %v1857 = vpop.f32.mrb[0].mxu0
        %v1858 = vadd.f32 %v1754, %v1857
        %v1859 = vpop.f32.mrb[0].mxu0
        %1860 = vmatprep.mubr.f32.mxu0 0.0
        %1861 = vmatmul.mubr.f32.gmra.mrb[0].mxu0 %v1725
        %v1862 = vpop.f32.mrb[0].mxu0
        %v1863 = vadd.f32 %v1754, %v1862
        %v1864 = vpop.f32.mrb[0].mxu0
        %1865 = vmatprep.mubr.f32.mxu0 0.0
        %1866 = vmatmul.mubr.f32.gmra.mrb[0].mxu0 %v1726
        %v1867 = vpop.f32.mrb[0].mxu0
        %v1868 = vadd.f32 %v1754, %v1867
        %v1869 = vpop.f32.mrb[0].mxu0
        %1870 = vmatprep.mubr.f32.mxu0 0.0
        %1871 = vmatmul.mubr.f32.gmra.mrb[0].mxu0 %v1727
        %v1872 = vpop.f32.mrb[0].mxu0
        %v1873 = vadd.f32 %v1754, %v1872
        %v1874 = vpop.f32.mrb[0].mxu0
        %1875 = vmatprep.mubr.f32.mxu0 0.0
        %1876 = vmatmul.mubr.f32.gmra.mrb[0].mxu0 %v1728
        %v1877 = vpop.f32.mrb[0].mxu0
        %v1878 = vadd.f32 %v1754, %v1877
        %v1879 = vpop.f32.mrb[0].mxu0
        %1880 = vmatprep.mubr.f32.mxu0 0.0
        %1881 = vmatmul.mubr.f32.gmra.mrb[0].mxu0 %v1729
        %v1882 = vpop.f32.mrb[0].mxu0
        %v1883 = vadd.f32 %v1754, %v1882
        %v1884 = vpop.f32.mrb[0].mxu0
        %1885 = vmatprep.mubr.f32.mxu0 0.0
        %1886 = vmatmul.mubr.f32.gmra.mrb[0].mxu0 %v1730
        %v1887 = vpop.f32.mrb[0].mxu0
        %v1888 = vadd.f32 %v1754, %v1887
        %v1889 = vpop.f32.mrb[0].mxu0
        %1890 = vmatprep.mubr.f32.mxu0 0.0
        %1891 = vmatmul.mubr.f32.gmra.mrb[0].mxu0 %v1731
        %v1892 = vpop.f32.mrb[0].mxu0
        %v1893 = vadd.f32 %v1754, %v1892
        %v1894 = vpop.f32.mrb[0].mxu0
        %1895 = vmatprep.mubr.f32.mxu0 0.0
        %1896 = vmatmul.mubr.f32.gmra.mrb[0].mxu0 %v1732
        %v1897 = vpop.f32.mrb[0].mxu0
        %v1898 = vadd.f32 %v1754, %v1897
        %v1899 = vpop.f32.mrb[0].mxu0
        %1900 = vdwg.mxu0
        %v1901 = vmul.f32 %v1823, %v1823
        %v1902 = vmul.f32 %v1828, %v1828
        %v1903 = vmul.f32 %v1833, %v1833
        %v1904 = vmul.f32 %v1838, %v1838
        %v1905 = vmul.f32 %v1843, %v1843
        %v1906 = vmul.f32 %v1848, %v1848
        %v1907 = vmul.f32 %v1853, %v1853
        %v1908 = vmul.f32 %v1858, %v1858
        %v1909 = vmul.f32 %v1863, %v1863
        %v1910 = vmul.f32 %v1868, %v1868
        %v1911 = vmul.f32 %v1873, %v1873
        %v1912 = vmul.f32 %v1878, %v1878
        %v1913 = vmul.f32 %v1883, %v1883
        %v1914 = vmul.f32 %v1888, %v1888
        %v1915 = vmul.f32 %v1893, %v1893
        %v1916 = vmul.f32 %v1898, %v1898
        %1917 = vadd.xlane.f32.xlu0 %v1901
        %v1918 = vpop.xlane.xlu0 %1917
        %1919 = vadd.xlane.f32.xlu0 %v1902
        %v1920 = vpop.xlane.xlu0 %1919
        %1921 = vadd.xlane.f32.xlu0 %v1903
        %v1922 = vpop.xlane.xlu0 %1921
        %1923 = vadd.xlane.f32.xlu0 %v1904
        %v1924 = vpop.xlane.xlu0 %1923
        %1925 = vadd.xlane.f32.xlu0 %v1905
        %v1926 = vpop.xlane.xlu0 %1925
        %1927 = vadd.xlane.f32.xlu0 %v1906
        %v1928 = vpop.xlane.xlu0 %1927
        %1929 = vadd.xlane.f32.xlu0 %v1907
        %v1930 = vpop.xlane.xlu0 %1929
        %1931 = vadd.xlane.f32.xlu0 %v1908
        %v1932 = vpop.xlane.xlu0 %1931
        %1933 = vadd.xlane.f32.xlu0 %v1909
        %v1934 = vpop.xlane.xlu0 %1933
        %1935 = vadd.xlane.f32.xlu0 %v1910
        %v1936 = vpop.xlane.xlu0 %1935
        %1937 = vadd.xlane.f32.xlu0 %v1911
        %v1938 = vpop.xlane.xlu0 %1937
        %1939 = vadd.xlane.f32.xlu0 %v1912
        %v1940 = vpop.xlane.xlu0 %1939
        %1941 = vadd.xlane.f32.xlu0 %v1913
        %v1942 = vpop.xlane.xlu0 %1941
        %1943 = vadd.xlane.f32.xlu0 %v1914
        %v1944 = vpop.xlane.xlu0 %1943
        %1945 = vadd.xlane.f32.xlu0 %v1915
        %v1946 = vpop.xlane.xlu0 %1945
        %1947 = vadd.xlane.f32.xlu0 %v1916
        %v1948 = vpop.xlane.xlu0 %1947
        %v1949 = vmul.f32 %v1918, 0.5
        %v1950 = vmul.f32 %v1920, 0.5
        %v1951 = vmul.f32 %v1922, 0.5
        %v1952 = vmul.f32 %v1924, 0.5
        %v1953 = vmul.f32 %v1926, 0.5
        %v1954 = vmul.f32 %v1928, 0.5
        %v1955 = vmul.f32 %v1930, 0.5
        %v1956 = vmul.f32 %v1932, 0.5
        %v1957 = vmul.f32 %v1934, 0.5
        %v1958 = vmul.f32 %v1936, 0.5
        %v1959 = vmul.f32 %v1938, 0.5
        %v1960 = vmul.f32 %v1940, 0.5
        %v1961 = vmul.f32 %v1942, 0.5
        %v1962 = vmul.f32 %v1944, 0.5
        %v1963 = vmul.f32 %v1946, 0.5
        %v1964 = vmul.f32 %v1948, 0.5
        %s1965 = sld [smem:[#allocation5]]
        %1966 = vmatprep.subr.mxu0 0.0
        %1967 = vmatpush1.xpose.msra.mxu0 %v1901
        %1968 = vmatprep.subr.mxu0 0.0
        %1969 = vmatpush1.xpose.msra.mxu0 %v1902
        %1970 = vmatprep.subr.mxu0 0.0
        %1971 = vmatpush1.xpose.msra.mxu0 %v1903
        %1972 = vmatprep.subr.mxu0 0.0
        %1973 = vmatpush1.xpose.msra.mxu0 %v1904
        %1974 = vmatprep.subr.mxu0 0.0
        %1975 = vmatpush1.xpose.msra.mxu0 %v1905
        %1976 = vmatprep.subr.mxu0 0.0
        %1977 = vmatpush1.xpose.msra.mxu0 %v1906
        %1978 = vmatprep.subr.mxu0 0.0
        %1979 = vmatpush1.xpose.msra.mxu0 %v1907
        %1980 = vmatprep.subr.mxu0 0.0
        %1981 = vmatpush1.xpose.msra.mxu0 %v1908
        %1982 = vmatprep.subr.mxu0 0.0
        %1983 = vmatpush1.xpose.msra.mxu0 %v1909
        %1984 = vmatprep.subr.mxu0 0.0
        %1985 = vmatpush1.xpose.msra.mxu0 %v1910
        %1986 = vmatprep.subr.mxu0 0.0
        %1987 = vmatpush1.xpose.msra.mxu0 %v1911
        %1988 = vmatprep.subr.mxu0 0.0
        %1989 = vmatpush1.xpose.msra.mxu0 %v1912
        %1990 = vmatprep.subr.mxu0 0.0
        %1991 = vmatpush1.xpose.msra.mxu0 %v1913
        %1992 = vmatprep.subr.mxu0 0.0
        %1993 = vmatpush1.xpose.msra.mxu0 %v1914
        %1994 = vmatprep.subr.mxu0 0.0
        %1995 = vmatpush1.xpose.msra.mxu0 %v1915
        %1996 = vmatprep.subr.mxu0 0.0
        %1997 = vmatpush1.xpose.msra.mxu0 %v1916
        %1998 = vmatprep.subr.mxu0 0.0
        %1999 = vmatpush1.xpose.msra.mxu0 0.0
        %2000 = vmatprep.subr.mxu0 0.0
        %2001 = vmatpush1.xpose.msra.mxu0 0.0
        %2002 = vmatprep.subr.mxu0 0.0
        %2003 = vmatpush1.xpose.msra.mxu0 0.0
        %2004 = vmatprep.subr.mxu0 0.0
        %2005 = vmatpush1.xpose.msra.mxu0 0.0
        %2006 = vmatprep.subr.mxu0 0.0
        %2007 = vmatpush1.xpose.msra.mxu0 0.0
        %2008 = vmatprep.subr.mxu0 0.0
        %2009 = vmatpush1.xpose.msra.mxu0 0.0
        %2010 = vmatprep.subr.mxu0 0.0
        %2011 = vmatpush1.xpose.msra.mxu0 0.0
        %2012 = vmatprep.subr.mxu0 0.0
        %2013 = vmatpush1.xpose.msra.mxu0 0.0
        %2014 = vmatprep.subr.mxu0 0.0
        %2015 = vmatpush1.xpose.msra.mxu0 0.0
        %2016 = vmatprep.subr.mxu0 0.0
        %2017 = vmatpush1.xpose.msra.mxu0 0.0
        %2018 = vmatprep.subr.mxu0 0.0
        %2019 = vmatpush1.xpose.msra.mxu0 0.0
        %2020 = vmatprep.subr.mxu0 0.0
        %2021 = vmatpush1.xpose.msra.mxu0 0.0
        %2022 = vmatprep.subr.mxu0 0.0
        %2023 = vmatpush1.xpose.msra.mxu0 0.0
        %2024 = vmatprep.subr.mxu0 0.0
        %2025 = vmatpush1.xpose.msra.mxu0 0.0
        %2026 = vmatprep.subr.mxu0 0.0
        %2027 = vmatpush1.xpose.msra.mxu0 0.0
        %2028 = vmatprep.subr.mxu0 0.0
        %2029 = vmatpush1.xpose.msra.mxu0 0.0
        %2030 = vmatprep.mubr.f32.mxu0 0.0
        %2031 = vmatmul.mubr.f32.gmra.mrb[0].mxu0 1.0
        %v2032 = vpop.f32.mrb[0].mxu0
        %v2033 = vadd.f32 0.0, %v2032
        %v2034 = vpop.f32.mrb[0].mxu0
        %2035 = vdwg.mxu0
        %v2036 = vmul.f32 %v2033, 0.5
        %v2037 = vstv %s1965
        %v2038 = vsub.f32 %v2036, %v2037
        %v2039 = vld [vmem:[#allocation14] sm:$0xff]
        %v2040 = vld [vmem:[#allocation14 + $0x8] sm:$0xff]
        %v2041 = vld [vmem:[#allocation14 + $0x10] sm:$0xff]
        %v2042 = vld [vmem:[#allocation14 + $0x18] sm:$0xff]
        %v2043 = vld [vmem:[#allocation14 + $0x20] sm:$0xff]
        %v2044 = vld [vmem:[#allocation14 + $0x28] sm:$0xff]
        %v2045 = vld [vmem:[#allocation14 + $0x30] sm:$0xff]
        %v2046 = vld [vmem:[#allocation14 + $0x38] sm:$0xff]
        %v2047 = vld [vmem:[#allocation14 + $0x40] sm:$0xff]
        %v2048 = vld [vmem:[#allocation14 + $0x48] sm:$0xff]
        %v2049 = vld [vmem:[#allocation14 + $0x50] sm:$0xff]
        %v2050 = vld [vmem:[#allocation14 + $0x58] sm:$0xff]
        %v2051 = vld [vmem:[#allocation14 + $0x60] sm:$0xff]
        %v2052 = vld [vmem:[#allocation14 + $0x68] sm:$0xff]
        %v2053 = vld [vmem:[#allocation14 + $0x70] sm:$0xff]
        %v2054 = vld [vmem:[#allocation14 + $0x78] sm:$0xff]
        %2055 = vmatprep.subr.mxu0 0.0
        %2056 = vmatpush1.xpose.msra.mxu0 %v2039
        %2057 = vmatprep.subr.mxu0 0.0
        %2058 = vmatpush1.xpose.msra.mxu0 %v2040
        %2059 = vmatprep.subr.mxu0 0.0
        %2060 = vmatpush1.xpose.msra.mxu0 %v2041
        %2061 = vmatprep.subr.mxu0 0.0
        %2062 = vmatpush1.xpose.msra.mxu0 %v2042
        %2063 = vmatprep.subr.mxu0 0.0
        %2064 = vmatpush1.xpose.msra.mxu0 %v2043
        %2065 = vmatprep.subr.mxu0 0.0
        %2066 = vmatpush1.xpose.msra.mxu0 %v2044
        %2067 = vmatprep.subr.mxu0 0.0
        %2068 = vmatpush1.xpose.msra.mxu0 %v2045
        %2069 = vmatprep.subr.mxu0 0.0
        %2070 = vmatpush1.xpose.msra.mxu0 %v2046
        %2071 = vmatprep.subr.mxu0 0.0
        %2072 = vmatpush1.xpose.msra.mxu0 %v2047
        %2073 = vmatprep.subr.mxu0 0.0
        %2074 = vmatpush1.xpose.msra.mxu0 %v2048
        %2075 = vmatprep.subr.mxu0 0.0
        %2076 = vmatpush1.xpose.msra.mxu0 %v2049
        %2077 = vmatprep.subr.mxu0 0.0
        %2078 = vmatpush1.xpose.msra.mxu0 %v2050
        %2079 = vmatprep.subr.mxu0 0.0
        %2080 = vmatpush1.xpose.msra.mxu0 %v2051
        %2081 = vmatprep.subr.mxu0 0.0
        %2082 = vmatpush1.xpose.msra.mxu0 %v2052
        %2083 = vmatprep.subr.mxu0 0.0
        %2084 = vmatpush1.xpose.msra.mxu0 %v2053
        %2085 = vmatprep.subr.mxu0 0.0
        %2086 = vmatpush1.xpose.msra.mxu0 %v2054
        %2087 = vmatprep.subr.mxu0 0.0
        %2088 = vmatpush1.xpose.msra.mxu0 0.0
        %2089 = vmatprep.subr.mxu0 0.0
        %2090 = vmatpush1.xpose.msra.mxu0 0.0
        %2091 = vmatprep.subr.mxu0 0.0
        %2092 = vmatpush1.xpose.msra.mxu0 0.0
        %2093 = vmatprep.subr.mxu0 0.0
        %2094 = vmatpush1.xpose.msra.mxu0 0.0
        %2095 = vmatprep.subr.mxu0 0.0
        %2096 = vmatpush1.xpose.msra.mxu0 0.0
        %2097 = vmatprep.subr.mxu0 0.0
        %2098 = vmatpush1.xpose.msra.mxu0 0.0
        %2099 = vmatprep.subr.mxu0 0.0
        %2100 = vmatpush1.xpose.msra.mxu0 0.0
        %2101 = vmatprep.subr.mxu0 0.0
        %2102 = vmatpush1.xpose.msra.mxu0 0.0
        %2103 = vmatprep.subr.mxu0 0.0
        %2104 = vmatpush1.xpose.msra.mxu0 0.0
        %2105 = vmatprep.subr.mxu0 0.0
        %2106 = vmatpush1.xpose.msra.mxu0 0.0
        %2107 = vmatprep.subr.mxu0 0.0
        %2108 = vmatpush1.xpose.msra.mxu0 0.0
        %2109 = vmatprep.subr.mxu0 0.0
        %2110 = vmatpush1.xpose.msra.mxu0 0.0
        %2111 = vmatprep.subr.mxu0 0.0
        %2112 = vmatpush1.xpose.msra.mxu0 0.0
        %2113 = vmatprep.subr.mxu0 0.0
        %2114 = vmatpush1.xpose.msra.mxu0 0.0
        %2115 = vmatprep.subr.mxu0 0.0
        %2116 = vmatpush1.xpose.msra.mxu0 0.0
        %2117 = vmatprep.subr.mxu0 0.0
        %2118 = vmatpush1.xpose.msra.mxu0 0.0
        %2119 = vmatprep.mubr.f32.mxu0 0.0
        %2120 = vmatmul.mubr.f32.gmra.mrb[0].mxu0 %v1823
        %v2121 = vpop.f32.mrb[0].mxu0
        %v2122 = vadd.f32 0.0, %v2121
        %v2123 = vpop.f32.mrb[0].mxu0
        %2124 = vmatprep.mubr.f32.mxu0 0.0
        %2125 = vmatmul.mubr.f32.gmra.mrb[0].mxu0 %v1828
        %v2126 = vpop.f32.mrb[0].mxu0
        %v2127 = vadd.f32 0.0, %v2126
        %v2128 = vpop.f32.mrb[0].mxu0
        %2129 = vmatprep.mubr.f32.mxu0 0.0
        %2130 = vmatmul.mubr.f32.gmra.mrb[0].mxu0 %v1833
        %v2131 = vpop.f32.mrb[0].mxu0
        %v2132 = vadd.f32 0.0, %v2131
        %v2133 = vpop.f32.mrb[0].mxu0
        %2134 = vmatprep.mubr.f32.mxu0 0.0
        %2135 = vmatmul.mubr.f32.gmra.mrb[0].mxu0 %v1838
        %v2136 = vpop.f32.mrb[0].mxu0
        %v2137 = vadd.f32 0.0, %v2136
        %v2138 = vpop.f32.mrb[0].mxu0
        %2139 = vmatprep.mubr.f32.mxu0 0.0
        %2140 = vmatmul.mubr.f32.gmra.mrb[0].mxu0 %v1843
        %v2141 = vpop.f32.mrb[0].mxu0
        %v2142 = vadd.f32 0.0, %v2141
        %v2143 = vpop.f32.mrb[0].mxu0
        %2144 = vmatprep.mubr.f32.mxu0 0.0
        %2145 = vmatmul.mubr.f32.gmra.mrb[0].mxu0 %v1848
        %v2146 = vpop.f32.mrb[0].mxu0
        %v2147 = vadd.f32 0.0, %v2146
        %v2148 = vpop.f32.mrb[0].mxu0
        %2149 = vmatprep.mubr.f32.mxu0 0.0
        %2150 = vmatmul.mubr.f32.gmra.mrb[0].mxu0 %v1853
        %v2151 = vpop.f32.mrb[0].mxu0
        %v2152 = vadd.f32 0.0, %v2151
        %v2153 = vpop.f32.mrb[0].mxu0
        %2154 = vmatprep.mubr.f32.mxu0 0.0
        %2155 = vmatmul.mubr.f32.gmra.mrb[0].mxu0 %v1858
        %v2156 = vpop.f32.mrb[0].mxu0
        %v2157 = vadd.f32 0.0, %v2156
        %v2158 = vpop.f32.mrb[0].mxu0
        %2159 = vmatprep.mubr.f32.mxu0 0.0
        %2160 = vmatmul.mubr.f32.gmra.mrb[0].mxu0 %v1863
        %v2161 = vpop.f32.mrb[0].mxu0
        %v2162 = vadd.f32 0.0, %v2161
        %v2163 = vpop.f32.mrb[0].mxu0
        %2164 = vmatprep.mubr.f32.mxu0 0.0
        %2165 = vmatmul.mubr.f32.gmra.mrb[0].mxu0 %v1868
        %v2166 = vpop.f32.mrb[0].mxu0
        %v2167 = vadd.f32 0.0, %v2166
        %v2168 = vpop.f32.mrb[0].mxu0
        %2169 = vmatprep.mubr.f32.mxu0 0.0
        %2170 = vmatmul.mubr.f32.gmra.mrb[0].mxu0 %v1873
        %v2171 = vpop.f32.mrb[0].mxu0
        %v2172 = vadd.f32 0.0, %v2171
        %v2173 = vpop.f32.mrb[0].mxu0
        %2174 = vmatprep.mubr.f32.mxu0 0.0
        %2175 = vmatmul.mubr.f32.gmra.mrb[0].mxu0 %v1878
        %v2176 = vpop.f32.mrb[0].mxu0
        %v2177 = vadd.f32 0.0, %v2176
        %v2178 = vpop.f32.mrb[0].mxu0
        %2179 = vmatprep.mubr.f32.mxu0 0.0
        %2180 = vmatmul.mubr.f32.gmra.mrb[0].mxu0 %v1883
        %v2181 = vpop.f32.mrb[0].mxu0
        %v2182 = vadd.f32 0.0, %v2181
        %v2183 = vpop.f32.mrb[0].mxu0
        %2184 = vmatprep.mubr.f32.mxu0 0.0
        %2185 = vmatmul.mubr.f32.gmra.mrb[0].mxu0 %v1888
        %v2186 = vpop.f32.mrb[0].mxu0
        %v2187 = vadd.f32 0.0, %v2186
        %v2188 = vpop.f32.mrb[0].mxu0
        %2189 = vmatprep.mubr.f32.mxu0 0.0
        %2190 = vmatmul.mubr.f32.gmra.mrb[0].mxu0 %v1893
        %v2191 = vpop.f32.mrb[0].mxu0
        %v2192 = vadd.f32 0.0, %v2191
        %v2193 = vpop.f32.mrb[0].mxu0
        %2194 = vmatprep.mubr.f32.mxu0 0.0
        %2195 = vmatmul.mubr.f32.gmra.mrb[0].mxu0 %v1898
        %v2196 = vpop.f32.mrb[0].mxu0
        %v2197 = vadd.f32 0.0, %v2196
        %v2198 = vpop.f32.mrb[0].mxu0
        %2199 = vdwg.mxu0
        %v2200 = vsub.f32 %v2122, %v1949
        %v2201 = vsub.f32 %v2127, %v1950
        %v2202 = vsub.f32 %v2132, %v1951
        %v2203 = vsub.f32 %v2137, %v1952
        %v2204 = vsub.f32 %v2142, %v1953
        %v2205 = vsub.f32 %v2147, %v1954
        %v2206 = vsub.f32 %v2152, %v1955
        %v2207 = vsub.f32 %v2157, %v1956
        %v2208 = vsub.f32 %v2162, %v1957
        %v2209 = vsub.f32 %v2167, %v1958
        %v2210 = vsub.f32 %v2172, %v1959
        %v2211 = vsub.f32 %v2177, %v1960
        %v2212 = vsub.f32 %v2182, %v1961
        %v2213 = vsub.f32 %v2187, %v1962
        %v2214 = vsub.f32 %v2192, %v1963
        %v2215 = vsub.f32 %v2197, %v1964
        %v2216 = vld [vmem:[%s7] sm:$0x1]
        %v2218 = vlaneseq
        %v2219 = vshrl.u32 %v2218, 7
        %v2220 = vsub.s32 0, %v2219
        %v2221 = vrot.slane %v2216, %v2220
        %v2223 = vsub.f32 %v2200, %v2221
        %v2224 = vsub.f32 %v2201, %v2221
        %v2225 = vsub.f32 %v2202, %v2221
        %v2226 = vsub.f32 %v2203, %v2221
        %v2227 = vsub.f32 %v2204, %v2221
        %v2228 = vsub.f32 %v2205, %v2221
        %v2229 = vsub.f32 %v2206, %v2221
        %v2230 = vsub.f32 %v2207, %v2221
        %v2231 = vsub.f32 %v2208, %v2221
        %v2232 = vsub.f32 %v2209, %v2221
        %v2233 = vsub.f32 %v2210, %v2221
        %v2234 = vsub.f32 %v2211, %v2221
        %v2235 = vsub.f32 %v2212, %v2221
        %v2236 = vsub.f32 %v2213, %v2221
        %v2237 = vsub.f32 %v2214, %v2221
        %v2238 = vsub.f32 %v2215, %v2221
        %v2239 = vmin.f32 %v2223, 0.0
        %v2240 = vmin.f32 %v2224, 0.0
        %v2241 = vmin.f32 %v2225, 0.0
        %v2242 = vmin.f32 %v2226, 0.0
        %v2243 = vmin.f32 %v2227, 0.0
        %v2244 = vmin.f32 %v2228, 0.0
        %v2245 = vmin.f32 %v2229, 0.0
        %v2246 = vmin.f32 %v2230, 0.0
        %v2247 = vmin.f32 %v2231, 0.0
        %v2248 = vmin.f32 %v2232, 0.0
        %v2249 = vmin.f32 %v2233, 0.0
        %v2250 = vmin.f32 %v2234, 0.0
        %v2251 = vmin.f32 %v2235, 0.0
        %v2252 = vmin.f32 %v2236, 0.0
        %v2253 = vmin.f32 %v2237, 0.0
        %v2254 = vmin.f32 %v2238, 0.0
        %v2255 = vmul.f32 %v2239, 1.442695
        %v2256 = vpow.pop %v2255
        %v2257 = vmul.f32 %v2240, 1.442695
        %v2258 = vpow.pop %v2257
        %v2259 = vmul.f32 %v2241, 1.442695
        %v2260 = vpow.pop %v2259
        %v2261 = vmul.f32 %v2242, 1.442695
        %v2262 = vpow.pop %v2261
        %v2263 = vmul.f32 %v2243, 1.442695
        %v2264 = vpow.pop %v2263
        %v2265 = vmul.f32 %v2244, 1.442695
        %v2266 = vpow.pop %v2265
        %v2267 = vmul.f32 %v2245, 1.442695
        %v2268 = vpow.pop %v2267
        %v2269 = vmul.f32 %v2246, 1.442695
        %v2270 = vpow.pop %v2269
        %v2271 = vmul.f32 %v2247, 1.442695
        %v2272 = vpow.pop %v2271
        %v2273 = vmul.f32 %v2248, 1.442695
        %v2274 = vpow.pop %v2273
        %v2275 = vmul.f32 %v2249, 1.442695
        %v2276 = vpow.pop %v2275
        %v2277 = vmul.f32 %v2250, 1.442695
        %v2278 = vpow.pop %v2277
        %v2279 = vmul.f32 %v2251, 1.442695
        %v2280 = vpow.pop %v2279
        %v2281 = vmul.f32 %v2252, 1.442695
        %v2282 = vpow.pop %v2281
        %v2283 = vmul.f32 %v2253, 1.442695
        %v2284 = vpow.pop %v2283
        %v2285 = vmul.f32 %v2254, 1.442695
        %v2286 = vpow.pop %v2285
        %v2287 = vld [vmem:[#allocation2] sm:$0xff]
        %v2288 = vld [vmem:[#allocation2 + $0x8] sm:$0xff]
        %v2289 = vld [vmem:[#allocation2 + $0x10] sm:$0xff]
        %v2290 = vld [vmem:[#allocation2 + $0x18] sm:$0xff]
        %v2291 = vld [vmem:[#allocation2 + $0x20] sm:$0xff]
        %v2292 = vld [vmem:[#allocation2 + $0x28] sm:$0xff]
        %v2293 = vld [vmem:[#allocation2 + $0x30] sm:$0xff]
        %v2294 = vld [vmem:[#allocation2 + $0x38] sm:$0xff]
        %v2295 = vld [vmem:[#allocation2 + $0x40] sm:$0xff]
        %v2296 = vld [vmem:[#allocation2 + $0x48] sm:$0xff]
        %v2297 = vld [vmem:[#allocation2 + $0x50] sm:$0xff]
        %v2298 = vld [vmem:[#allocation2 + $0x58] sm:$0xff]
        %v2299 = vld [vmem:[#allocation2 + $0x60] sm:$0xff]
        %v2300 = vld [vmem:[#allocation2 + $0x68] sm:$0xff]
        %v2301 = vld [vmem:[#allocation2 + $0x70] sm:$0xff]
        %v2302 = vld [vmem:[#allocation2 + $0x78] sm:$0xff]
        %2303 = vmatprep.subr.mxu0 0.0
        %2304 = vmatpush1.xpose.msra.mxu0 %v1823
        %2305 = vmatprep.subr.mxu0 0.0
        %2306 = vmatpush1.xpose.msra.mxu0 %v1828
        %2307 = vmatprep.subr.mxu0 0.0
        %2308 = vmatpush1.xpose.msra.mxu0 %v1833
        %2309 = vmatprep.subr.mxu0 0.0
        %2310 = vmatpush1.xpose.msra.mxu0 %v1838
        %2311 = vmatprep.subr.mxu0 0.0
        %2312 = vmatpush1.xpose.msra.mxu0 %v1843
        %2313 = vmatprep.subr.mxu0 0.0
        %2314 = vmatpush1.xpose.msra.mxu0 %v1848
        %2315 = vmatprep.subr.mxu0 0.0
        %2316 = vmatpush1.xpose.msra.mxu0 %v1853
        %2317 = vmatprep.subr.mxu0 0.0
        %2318 = vmatpush1.xpose.msra.mxu0 %v1858
        %2319 = vmatprep.subr.mxu0 0.0
        %2320 = vmatpush1.xpose.msra.mxu0 %v1863
        %2321 = vmatprep.subr.mxu0 0.0
        %2322 = vmatpush1.xpose.msra.mxu0 %v1868
        %2323 = vmatprep.subr.mxu0 0.0
        %2324 = vmatpush1.xpose.msra.mxu0 %v1873
        %2325 = vmatprep.subr.mxu0 0.0
        %2326 = vmatpush1.xpose.msra.mxu0 %v1878
        %2327 = vmatprep.subr.mxu0 0.0
        %2328 = vmatpush1.xpose.msra.mxu0 %v1883
        %2329 = vmatprep.subr.mxu0 0.0
        %2330 = vmatpush1.xpose.msra.mxu0 %v1888
        %2331 = vmatprep.subr.mxu0 0.0
        %2332 = vmatpush1.xpose.msra.mxu0 %v1893
        %2333 = vmatprep.subr.mxu0 0.0
        %2334 = vmatpush1.xpose.msra.mxu0 %v1898
        %2335 = vmatprep.subr.mxu0 0.0
        %2336 = vmatpush1.xpose.msra.mxu0 0.0
        %2337 = vmatprep.subr.mxu0 0.0
        %2338 = vmatpush1.xpose.msra.mxu0 0.0
        %2339 = vmatprep.subr.mxu0 0.0
        %2340 = vmatpush1.xpose.msra.mxu0 0.0
        %2341 = vmatprep.subr.mxu0 0.0
        %2342 = vmatpush1.xpose.msra.mxu0 0.0
        %2343 = vmatprep.subr.mxu0 0.0
        %2344 = vmatpush1.xpose.msra.mxu0 0.0
        %2345 = vmatprep.subr.mxu0 0.0
        %2346 = vmatpush1.xpose.msra.mxu0 0.0
        %2347 = vmatprep.subr.mxu0 0.0
        %2348 = vmatpush1.xpose.msra.mxu0 0.0
        %2349 = vmatprep.subr.mxu0 0.0
        %2350 = vmatpush1.xpose.msra.mxu0 0.0
        %2351 = vmatprep.subr.mxu0 0.0
        %2352 = vmatpush1.xpose.msra.mxu0 0.0
        %2353 = vmatprep.subr.mxu0 0.0
        %2354 = vmatpush1.xpose.msra.mxu0 0.0
        %2355 = vmatprep.subr.mxu0 0.0
        %2356 = vmatpush1.xpose.msra.mxu0 0.0
        %2357 = vmatprep.subr.mxu0 0.0
        %2358 = vmatpush1.xpose.msra.mxu0 0.0
        %2359 = vmatprep.subr.mxu0 0.0
        %2360 = vmatpush1.xpose.msra.mxu0 0.0
        %2361 = vmatprep.subr.mxu0 0.0
        %2362 = vmatpush1.xpose.msra.mxu0 0.0
        %2363 = vmatprep.subr.mxu0 0.0
        %2364 = vmatpush1.xpose.msra.mxu0 0.0
        %2365 = vmatprep.subr.mxu0 0.0
        %2366 = vmatpush1.xpose.msra.mxu0 0.0
        %2367 = vmatprep.mubr.f32.mxu0 0.0
        %2368 = vmatmul.mubr.f32.gmra.mrb[0].mxu0 %v2287
        %v2369 = vpop.f32.mrb[0].mxu0
        %v2370 = vadd.f32 0.0, %v2369
        %v2371 = vpop.f32.mrb[0].mxu0
        %2372 = vmatprep.mubr.f32.mxu0 0.0
        %2373 = vmatmul.mubr.f32.gmra.mrb[0].mxu0 %v2288
        %v2374 = vpop.f32.mrb[0].mxu0
        %v2375 = vadd.f32 0.0, %v2374
        %v2376 = vpop.f32.mrb[0].mxu0
        %2377 = vmatprep.mubr.f32.mxu0 0.0
        %2378 = vmatmul.mubr.f32.gmra.mrb[0].mxu0 %v2289
        %v2379 = vpop.f32.mrb[0].mxu0
        %v2380 = vadd.f32 0.0, %v2379
        %v2381 = vpop.f32.mrb[0].mxu0
        %2382 = vmatprep.mubr.f32.mxu0 0.0
        %2383 = vmatmul.mubr.f32.gmra.mrb[0].mxu0 %v2290
        %v2384 = vpop.f32.mrb[0].mxu0
        %v2385 = vadd.f32 0.0, %v2384
        %v2386 = vpop.f32.mrb[0].mxu0
        %2387 = vmatprep.mubr.f32.mxu0 0.0
        %2388 = vmatmul.mubr.f32.gmra.mrb[0].mxu0 %v2291
        %v2389 = vpop.f32.mrb[0].mxu0
        %v2390 = vadd.f32 0.0, %v2389
        %v2391 = vpop.f32.mrb[0].mxu0
        %2392 = vmatprep.mubr.f32.mxu0 0.0
        %2393 = vmatmul.mubr.f32.gmra.mrb[0].mxu0 %v2292
        %v2394 = vpop.f32.mrb[0].mxu0
        %v2395 = vadd.f32 0.0, %v2394
        %v2396 = vpop.f32.mrb[0].mxu0
        %2397 = vmatprep.mubr.f32.mxu0 0.0
        %2398 = vmatmul.mubr.f32.gmra.mrb[0].mxu0 %v2293
        %v2399 = vpop.f32.mrb[0].mxu0
        %v2400 = vadd.f32 0.0, %v2399
        %v2401 = vpop.f32.mrb[0].mxu0
        %2402 = vmatprep.mubr.f32.mxu0 0.0
        %2403 = vmatmul.mubr.f32.gmra.mrb[0].mxu0 %v2294
        %v2404 = vpop.f32.mrb[0].mxu0
        %v2405 = vadd.f32 0.0, %v2404
        %v2406 = vpop.f32.mrb[0].mxu0
        %2407 = vmatprep.mubr.f32.mxu0 0.0
        %2408 = vmatmul.mubr.f32.gmra.mrb[0].mxu0 %v2295
        %v2409 = vpop.f32.mrb[0].mxu0
        %v2410 = vadd.f32 0.0, %v2409
        %v2411 = vpop.f32.mrb[0].mxu0
        %2412 = vmatprep.mubr.f32.mxu0 0.0
        %2413 = vmatmul.mubr.f32.gmra.mrb[0].mxu0 %v2296
        %v2414 = vpop.f32.mrb[0].mxu0
        %v2415 = vadd.f32 0.0, %v2414
        %v2416 = vpop.f32.mrb[0].mxu0
        %2417 = vmatprep.mubr.f32.mxu0 0.0
        %2418 = vmatmul.mubr.f32.gmra.mrb[0].mxu0 %v2297
        %v2419 = vpop.f32.mrb[0].mxu0
        %v2420 = vadd.f32 0.0, %v2419
        %v2421 = vpop.f32.mrb[0].mxu0
        %2422 = vmatprep.mubr.f32.mxu0 0.0
        %2423 = vmatmul.mubr.f32.gmra.mrb[0].mxu0 %v2298
        %v2424 = vpop.f32.mrb[0].mxu0
        %v2425 = vadd.f32 0.0, %v2424
        %v2426 = vpop.f32.mrb[0].mxu0
        %2427 = vmatprep.mubr.f32.mxu0 0.0
        %2428 = vmatmul.mubr.f32.gmra.mrb[0].mxu0 %v2299
        %v2429 = vpop.f32.mrb[0].mxu0
        %v2430 = vadd.f32 0.0, %v2429
        %v2431 = vpop.f32.mrb[0].mxu0
        %2432 = vmatprep.mubr.f32.mxu0 0.0
        %2433 = vmatmul.mubr.f32.gmra.mrb[0].mxu0 %v2300
        %v2434 = vpop.f32.mrb[0].mxu0
        %v2435 = vadd.f32 0.0, %v2434
        %v2436 = vpop.f32.mrb[0].mxu0
        %2437 = vmatprep.mubr.f32.mxu0 0.0
        %2438 = vmatmul.mubr.f32.gmra.mrb[0].mxu0 %v2301
        %v2439 = vpop.f32.mrb[0].mxu0
        %v2440 = vadd.f32 0.0, %v2439
        %v2441 = vpop.f32.mrb[0].mxu0
        %2442 = vmatprep.mubr.f32.mxu0 0.0
        %2443 = vmatmul.mubr.f32.gmra.mrb[0].mxu0 %v2302
        %v2444 = vpop.f32.mrb[0].mxu0
        %v2445 = vadd.f32 0.0, %v2444
        %v2446 = vpop.f32.mrb[0].mxu0
        %2447 = vdwg.mxu0
        %v2448 = vld [vmem:[#allocation3] sm:$0xff]
        %v2449 = vld [vmem:[#allocation3 + $0x8] sm:$0xff]
        %v2450 = vld [vmem:[#allocation3 + $0x10] sm:$0xff]
        %v2451 = vld [vmem:[#allocation3 + $0x18] sm:$0xff]
        %v2452 = vld [vmem:[#allocation3 + $0x20] sm:$0xff]
        %v2453 = vld [vmem:[#allocation3 + $0x28] sm:$0xff]
        %v2454 = vld [vmem:[#allocation3 + $0x30] sm:$0xff]
        %v2455 = vld [vmem:[#allocation3 + $0x38] sm:$0xff]
        %v2456 = vld [vmem:[#allocation3 + $0x40] sm:$0xff]
        %v2457 = vld [vmem:[#allocation3 + $0x48] sm:$0xff]
        %v2458 = vld [vmem:[#allocation3 + $0x50] sm:$0xff]
        %v2459 = vld [vmem:[#allocation3 + $0x58] sm:$0xff]
        %v2460 = vld [vmem:[#allocation3 + $0x60] sm:$0xff]
        %v2461 = vld [vmem:[#allocation3 + $0x68] sm:$0xff]
        %v2462 = vld [vmem:[#allocation3 + $0x70] sm:$0xff]
        %v2463 = vld [vmem:[#allocation3 + $0x78] sm:$0xff]
        %2465 = vset.pattern.permute.xlu0 0
        %2466 = vperm.xlu0 %2465, %v2448
        %v2467 = vpop.permute.xlu0 %2466
        %2470 = vset.pattern.permute.xlu0 0
        %2471 = vperm.xlu0 %2470, %v2449
        %v2472 = vpop.permute.xlu0 %2471
        %2475 = vset.pattern.permute.xlu0 0
        %2476 = vperm.xlu0 %2475, %v2450
        %v2477 = vpop.permute.xlu0 %2476
        %2480 = vset.pattern.permute.xlu0 0
        %2481 = vperm.xlu0 %2480, %v2451
        %v2482 = vpop.permute.xlu0 %2481
        %2485 = vset.pattern.permute.xlu0 0
        %2486 = vperm.xlu0 %2485, %v2452
        %v2487 = vpop.permute.xlu0 %2486
        %2490 = vset.pattern.permute.xlu0 0
        %2491 = vperm.xlu0 %2490, %v2453
        %v2492 = vpop.permute.xlu0 %2491
        %2495 = vset.pattern.permute.xlu0 0
        %2496 = vperm.xlu0 %2495, %v2454
        %v2497 = vpop.permute.xlu0 %2496
        %2500 = vset.pattern.permute.xlu0 0
        %2501 = vperm.xlu0 %2500, %v2455
        %v2502 = vpop.permute.xlu0 %2501
        %2505 = vset.pattern.permute.xlu0 0
        %2506 = vperm.xlu0 %2505, %v2456
        %v2507 = vpop.permute.xlu0 %2506
        %2510 = vset.pattern.permute.xlu0 0
        %2511 = vperm.xlu0 %2510, %v2457
        %v2512 = vpop.permute.xlu0 %2511
        %2515 = vset.pattern.permute.xlu0 0
        %2516 = vperm.xlu0 %2515, %v2458
        %v2517 = vpop.permute.xlu0 %2516
        %2520 = vset.pattern.permute.xlu0 0
        %2521 = vperm.xlu0 %2520, %v2459
        %v2522 = vpop.permute.xlu0 %2521
        %2525 = vset.pattern.permute.xlu0 0
        %2526 = vperm.xlu0 %2525, %v2460
        %v2527 = vpop.permute.xlu0 %2526
        %2530 = vset.pattern.permute.xlu0 0
        %2531 = vperm.xlu0 %2530, %v2461
        %v2532 = vpop.permute.xlu0 %2531
        %2535 = vset.pattern.permute.xlu0 0
        %2536 = vperm.xlu0 %2535, %v2462
        %v2537 = vpop.permute.xlu0 %2536
        %2540 = vset.pattern.permute.xlu0 0
        %2541 = vperm.xlu0 %2540, %v2463
        %v2542 = vpop.permute.xlu0 %2541
        %v2544 = vsub.f32 %v2370, %v2467
        %v2545 = vsub.f32 %v2375, %v2472
        %v2546 = vsub.f32 %v2380, %v2477
        %v2547 = vsub.f32 %v2385, %v2482
        %v2548 = vsub.f32 %v2390, %v2487
        %v2549 = vsub.f32 %v2395, %v2492
        %v2550 = vsub.f32 %v2400, %v2497
        %v2551 = vsub.f32 %v2405, %v2502
        %v2552 = vsub.f32 %v2410, %v2507
        %v2553 = vsub.f32 %v2415, %v2512
        %v2554 = vsub.f32 %v2420, %v2517
        %v2555 = vsub.f32 %v2425, %v2522
        %v2556 = vsub.f32 %v2430, %v2527
        %v2557 = vsub.f32 %v2435, %v2532
        %v2558 = vsub.f32 %v2440, %v2537
        %v2559 = vsub.f32 %v2445, %v2542
        %v2560 = vlaneseq
        %v2561 = vshrl.u32 %v2560, 7
        %v2562 = vsub.s32 0, %v2561
        %v2563 = vrot.slane %v2038, %v2562
        %v2564 = vsub.f32 %v2544, %v2563
        %v2565 = vsub.f32 %v2545, %v2563
        %v2566 = vsub.f32 %v2546, %v2563
        %v2567 = vsub.f32 %v2547, %v2563
        %v2568 = vsub.f32 %v2548, %v2563
        %v2569 = vsub.f32 %v2549, %v2563
        %v2570 = vsub.f32 %v2550, %v2563
        %v2571 = vsub.f32 %v2551, %v2563
        %v2572 = vsub.f32 %v2552, %v2563
        %v2573 = vsub.f32 %v2553, %v2563
        %v2574 = vsub.f32 %v2554, %v2563
        %v2575 = vsub.f32 %v2555, %v2563
        %v2576 = vsub.f32 %v2556, %v2563
        %v2577 = vsub.f32 %v2557, %v2563
        %v2578 = vsub.f32 %v2558, %v2563
        %v2579 = vsub.f32 %v2559, %v2563
        %v2580 = vmin.f32 %v2564, %v2037
        %v2581 = vmin.f32 %v2565, %v2037
        %v2582 = vmin.f32 %v2566, %v2037
        %v2583 = vmin.f32 %v2567, %v2037
        %v2584 = vmin.f32 %v2568, %v2037
        %v2585 = vmin.f32 %v2569, %v2037
        %v2586 = vmin.f32 %v2570, %v2037
        %v2587 = vmin.f32 %v2571, %v2037
        %v2588 = vmin.f32 %v2572, %v2037
        %v2589 = vmin.f32 %v2573, %v2037
        %v2590 = vmin.f32 %v2574, %v2037
        %v2591 = vmin.f32 %v2575, %v2037
        %v2592 = vmin.f32 %v2576, %v2037
        %v2593 = vmin.f32 %v2577, %v2037
        %v2594 = vmin.f32 %v2578, %v2037
        %v2595 = vmin.f32 %v2579, %v2037
        %v2596 = vmul.f32 %v2580, 1.442695
        %v2597 = vpow.pop %v2596
        %v2598 = vmul.f32 %v2581, 1.442695
        %v2599 = vpow.pop %v2598
        %v2600 = vmul.f32 %v2582, 1.442695
        %v2601 = vpow.pop %v2600
        %v2602 = vmul.f32 %v2583, 1.442695
        %v2603 = vpow.pop %v2602
        %v2604 = vmul.f32 %v2584, 1.442695
        %v2605 = vpow.pop %v2604
        %v2606 = vmul.f32 %v2585, 1.442695
        %v2607 = vpow.pop %v2606
        %v2608 = vmul.f32 %v2586, 1.442695
        %v2609 = vpow.pop %v2608
        %v2610 = vmul.f32 %v2587, 1.442695
        %v2611 = vpow.pop %v2610
        %v2612 = vmul.f32 %v2588, 1.442695
        %v2613 = vpow.pop %v2612
        %v2614 = vmul.f32 %v2589, 1.442695
        %v2615 = vpow.pop %v2614
        %v2616 = vmul.f32 %v2590, 1.442695
        %v2617 = vpow.pop %v2616
        %v2618 = vmul.f32 %v2591, 1.442695
        %v2619 = vpow.pop %v2618
        %v2620 = vmul.f32 %v2592, 1.442695
        %v2621 = vpow.pop %v2620
        %v2622 = vmul.f32 %v2593, 1.442695
        %v2623 = vpow.pop %v2622
        %v2624 = vmul.f32 %v2594, 1.442695
        %v2625 = vpow.pop %v2624
        %v2626 = vmul.f32 %v2595, 1.442695
        %v2627 = vpow.pop %v2626
        %v2628 = vld [vmem:[#allocation4] sm:$0xff]
        %v2629 = vld [vmem:[#allocation4 + $0x8] sm:$0xff]
        %v2630 = vld [vmem:[#allocation4 + $0x10] sm:$0xff]
        %v2631 = vld [vmem:[#allocation4 + $0x18] sm:$0xff]
        %v2632 = vld [vmem:[#allocation4 + $0x20] sm:$0xff]
        %v2633 = vld [vmem:[#allocation4 + $0x28] sm:$0xff]
        %v2634 = vld [vmem:[#allocation4 + $0x30] sm:$0xff]
        %v2635 = vld [vmem:[#allocation4 + $0x38] sm:$0xff]
        %v2636 = vpack.c.bf16 %v2258, %v2256
        %v2637 = vpack.c.bf16 %v2262, %v2260
        %v2638 = vpack.c.bf16 %v2266, %v2264
        %v2639 = vpack.c.bf16 %v2270, %v2268
        %v2640 = vpack.c.bf16 %v2274, %v2272
        %v2641 = vpack.c.bf16 %v2278, %v2276
        %v2642 = vpack.c.bf16 %v2282, %v2280
        %v2643 = vpack.c.bf16 %v2286, %v2284
        %2644 = vmatprep.subr.bf16.mxu0 0
        %2645 = vmatpush1.bf16.xpose.msra.mxu0 %v2636
        %2646 = vmatprep.subr.bf16.mxu0 0
        %2647 = vmatpush1.bf16.xpose.msra.mxu0 %v2637
        %2648 = vmatprep.subr.bf16.mxu0 0
        %2649 = vmatpush1.bf16.xpose.msra.mxu0 %v2638
        %2650 = vmatprep.subr.bf16.mxu0 0
        %2651 = vmatpush1.bf16.xpose.msra.mxu0 %v2639
        %2652 = vmatprep.subr.bf16.mxu0 0
        %2653 = vmatpush1.bf16.xpose.msra.mxu0 %v2640
        %2654 = vmatprep.subr.bf16.mxu0 0
        %2655 = vmatpush1.bf16.xpose.msra.mxu0 %v2641
        %2656 = vmatprep.subr.bf16.mxu0 0
        %2657 = vmatpush1.bf16.xpose.msra.mxu0 %v2642
        %2658 = vmatprep.subr.bf16.mxu0 0
        %2659 = vmatpush1.bf16.xpose.msra.mxu0 %v2643
        %2660 = vmatprep.subr.bf16.mxu0 0
        %2661 = vmatpush1.bf16.xpose.msra.mxu0 0
        %2662 = vmatprep.subr.bf16.mxu0 0
        %2663 = vmatpush1.bf16.xpose.msra.mxu0 0
        %2664 = vmatprep.subr.bf16.mxu0 0
        %2665 = vmatpush1.bf16.xpose.msra.mxu0 0
        %2666 = vmatprep.subr.bf16.mxu0 0
        %2667 = vmatpush1.bf16.xpose.msra.mxu0 0
        %2668 = vmatprep.subr.bf16.mxu0 0
        %2669 = vmatpush1.bf16.xpose.msra.mxu0 0
        %2670 = vmatprep.subr.bf16.mxu0 0
        %2671 = vmatpush1.bf16.xpose.msra.mxu0 0
        %2672 = vmatprep.subr.bf16.mxu0 0
        %2673 = vmatpush1.bf16.xpose.msra.mxu0 0
        %2674 = vmatprep.subr.bf16.mxu0 0
        %2675 = vmatpush1.bf16.xpose.msra.mxu0 0
        %2676 = vmatprep.mubr.bf16.mxu0 0
        %2677 = vmatmul.mubr.bf16.gmra.mrb[0].mxu0 %v2628
        %v2678 = vpop.f32.mrb[0].mxu0
        %v2679 = vadd.f32 0.0, %v2678
        %v2680 = vpop.f32.mrb[0].mxu0
        %v2681 = vpop.f32.mrb[0].mxu0
        %v2682 = vadd.f32 0.0, %v2681
        %v2683 = vpop.f32.mrb[0].mxu0
        %2684 = vmatprep.mubr.bf16.mxu0 0
        %2685 = vmatmul.mubr.bf16.gmra.mrb[0].mxu0 %v2629
        %v2686 = vpop.f32.mrb[0].mxu0
        %v2687 = vadd.f32 0.0, %v2686
        %v2688 = vpop.f32.mrb[0].mxu0
        %v2689 = vpop.f32.mrb[0].mxu0
        %v2690 = vadd.f32 0.0, %v2689
        %v2691 = vpop.f32.mrb[0].mxu0
        %2692 = vmatprep.mubr.bf16.mxu0 0
        %2693 = vmatmul.mubr.bf16.gmra.mrb[0].mxu0 %v2630
        %v2694 = vpop.f32.mrb[0].mxu0
        %v2695 = vadd.f32 0.0, %v2694
        %v2696 = vpop.f32.mrb[0].mxu0
        %v2697 = vpop.f32.mrb[0].mxu0
        %v2698 = vadd.f32 0.0, %v2697
        %v2699 = vpop.f32.mrb[0].mxu0
        %2700 = vmatprep.mubr.bf16.mxu0 0
        %2701 = vmatmul.mubr.bf16.gmra.mrb[0].mxu0 %v2631
        %v2702 = vpop.f32.mrb[0].mxu0
        %v2703 = vadd.f32 0.0, %v2702
        %v2704 = vpop.f32.mrb[0].mxu0
        %v2705 = vpop.f32.mrb[0].mxu0
        %v2706 = vadd.f32 0.0, %v2705
        %v2707 = vpop.f32.mrb[0].mxu0
        %2708 = vmatprep.mubr.bf16.mxu0 0
        %2709 = vmatmul.mubr.bf16.gmra.mrb[0].mxu0 %v2632
        %v2710 = vpop.f32.mrb[0].mxu0
        %v2711 = vadd.f32 0.0, %v2710
        %v2712 = vpop.f32.mrb[0].mxu0
        %v2713 = vpop.f32.mrb[0].mxu0
        %v2714 = vadd.f32 0.0, %v2713
        %v2715 = vpop.f32.mrb[0].mxu0
        %2716 = vmatprep.mubr.bf16.mxu0 0
        %2717 = vmatmul.mubr.bf16.gmra.mrb[0].mxu0 %v2633
        %v2718 = vpop.f32.mrb[0].mxu0
        %v2719 = vadd.f32 0.0, %v2718
        %v2720 = vpop.f32.mrb[0].mxu0
        %v2721 = vpop.f32.mrb[0].mxu0
        %v2722 = vadd.f32 0.0, %v2721
        %v2723 = vpop.f32.mrb[0].mxu0
        %2724 = vmatprep.mubr.bf16.mxu0 0
        %2725 = vmatmul.mubr.bf16.gmra.mrb[0].mxu0 %v2634
        %v2726 = vpop.f32.mrb[0].mxu0
        %v2727 = vadd.f32 0.0, %v2726
        %v2728 = vpop.f32.mrb[0].mxu0
        %v2729 = vpop.f32.mrb[0].mxu0
        %v2730 = vadd.f32 0.0, %v2729
        %v2731 = vpop.f32.mrb[0].mxu0
        %2732 = vmatprep.mubr.bf16.mxu0 0
        %2733 = vmatmul.mubr.bf16.gmra.mrb[0].mxu0 %v2635
        %v2734 = vpop.f32.mrb[0].mxu0
        %v2735 = vadd.f32 0.0, %v2734
        %v2736 = vpop.f32.mrb[0].mxu0
        %v2737 = vpop.f32.mrb[0].mxu0
        %v2738 = vadd.f32 0.0, %v2737
        %v2739 = vpop.f32.mrb[0].mxu0
        %2740 = vdwg.mxu0
        %v2741 = vadd.f32 %v2597, %v2679
        %v2742 = vadd.f32 %v2599, %v2682
        %v2743 = vadd.f32 %v2601, %v2687
        %v2744 = vadd.f32 %v2603, %v2690
        %v2745 = vadd.f32 %v2605, %v2695
        %v2746 = vadd.f32 %v2607, %v2698
        %v2747 = vadd.f32 %v2609, %v2703
        %v2748 = vadd.f32 %v2611, %v2706
        %v2749 = vadd.f32 %v2613, %v2711
        %v2750 = vadd.f32 %v2615, %v2714
        %v2751 = vadd.f32 %v2617, %v2719
        %v2752 = vadd.f32 %v2619, %v2722
        %v2753 = vadd.f32 %v2621, %v2727
        %v2754 = vadd.f32 %v2623, %v2730
        %v2755 = vadd.f32 %v2625, %v2735
        %v2756 = vadd.f32 %v2627, %v2738
        %2757 = vst [vmem:[%s554] sm:$0xff] %v2741
        %2758 = vst [vmem:[%s554 + $0x8] sm:$0xff] %v2742
        %2759 = vst [vmem:[%s554 + $0x10] sm:$0xff] %v2743
        %2760 = vst [vmem:[%s554 + $0x18] sm:$0xff] %v2744
        %2761 = vst [vmem:[%s554 + $0x20] sm:$0xff] %v2745
        %2762 = vst [vmem:[%s554 + $0x28] sm:$0xff] %v2746
        %2763 = vst [vmem:[%s554 + $0x30] sm:$0xff] %v2747
        %2764 = vst [vmem:[%s554 + $0x38] sm:$0xff] %v2748
        %2765 = vst [vmem:[%s554 + $0x40] sm:$0xff] %v2749
        %2766 = vst [vmem:[%s554 + $0x48] sm:$0xff] %v2750
        %2767 = vst [vmem:[%s554 + $0x50] sm:$0xff] %v2751
        %2768 = vst [vmem:[%s554 + $0x58] sm:$0xff] %v2752
        %2769 = vst [vmem:[%s554 + $0x60] sm:$0xff] %v2753
        %2770 = vst [vmem:[%s554 + $0x68] sm:$0xff] %v2754
        %2771 = vst [vmem:[%s554 + $0x70] sm:$0xff] %v2755
        %2772 = vst [vmem:[%s554 + $0x78] sm:$0xff] %v2756
        %p2773 = scmp.eq.s32.totalorder %s43, %s44
        // Predicated region
        $region93: #{tpu_custom_call.1} parent=63 // pred_check
          %p2774 = pneg %p2773
        $region94: #{tpu_custom_call.1} parent=63 // pred_check_branch
          %2776 = sbr.rel (%p2774) target = $region96
        $region95: #{tpu_custom_call.1} parent=63 // pred_region
          %v2777 = vlaneseq
          %v2778 = vshrl.u32 %v2777, 7
          %v2779 = vadd.s32 %v2778, 8
          %v2780 = vadd.s32 %v2778, 16
          %v2781 = vadd.s32 %v2778, 24
          %v2782 = vadd.s32 %v2778, 32
          %v2783 = vadd.s32 %v2778, 40
          %v2784 = vadd.s32 %v2778, 48
          %v2785 = vadd.s32 %v2778, 56
          %v2786 = vadd.s32 %v2778, 64
          %v2787 = vadd.s32 %v2778, 72
          %v2788 = vadd.s32 %v2778, 80
          %v2789 = vadd.s32 %v2778, 88
          %v2790 = vadd.s32 %v2778, 96
          %v2791 = vadd.s32 %v2778, 104
          %v2792 = vadd.s32 %v2778, 112
          %v2793 = vadd.s32 %v2778, 120
          %v2794 = vlaneseq
          %v2795 = vand.u32 %v2794, 127
          %v2796 = vld [vmem:[%s554] sm:$0xff]
          %v2797 = vld [vmem:[%s554 + $0x8] sm:$0xff]
          %v2798 = vld [vmem:[%s554 + $0x10] sm:$0xff]
          %v2799 = vld [vmem:[%s554 + $0x18] sm:$0xff]
          %v2800 = vld [vmem:[%s554 + $0x20] sm:$0xff]
          %v2801 = vld [vmem:[%s554 + $0x28] sm:$0xff]
          %v2802 = vld [vmem:[%s554 + $0x30] sm:$0xff]
          %v2803 = vld [vmem:[%s554 + $0x38] sm:$0xff]
          %v2804 = vld [vmem:[%s554 + $0x40] sm:$0xff]
          %v2805 = vld [vmem:[%s554 + $0x48] sm:$0xff]
          %v2806 = vld [vmem:[%s554 + $0x50] sm:$0xff]
          %v2807 = vld [vmem:[%s554 + $0x58] sm:$0xff]
          %v2808 = vld [vmem:[%s554 + $0x60] sm:$0xff]
          %v2809 = vld [vmem:[%s554 + $0x68] sm:$0xff]
          %v2810 = vld [vmem:[%s554 + $0x70] sm:$0xff]
          %v2811 = vld [vmem:[%s554 + $0x78] sm:$0xff]
          %vm2812 = vcmp.eq.s32.totalorder %v2778, %v2795
          %vm2813 = vcmp.eq.s32.totalorder %v2779, %v2795
          %vm2814 = vcmp.eq.s32.totalorder %v2780, %v2795
          %vm2815 = vcmp.eq.s32.totalorder %v2781, %v2795
          %vm2816 = vcmp.eq.s32.totalorder %v2782, %v2795
          %vm2817 = vcmp.eq.s32.totalorder %v2783, %v2795
          %vm2818 = vcmp.eq.s32.totalorder %v2784, %v2795
          %vm2819 = vcmp.eq.s32.totalorder %v2785, %v2795
          %vm2820 = vcmp.eq.s32.totalorder %v2786, %v2795
          %vm2821 = vcmp.eq.s32.totalorder %v2787, %v2795
          %vm2822 = vcmp.eq.s32.totalorder %v2788, %v2795
          %vm2823 = vcmp.eq.s32.totalorder %v2789, %v2795
          %vm2824 = vcmp.eq.s32.totalorder %v2790, %v2795
          %vm2825 = vcmp.eq.s32.totalorder %v2791, %v2795
          %vm2826 = vcmp.eq.s32.totalorder %v2792, %v2795
          %vm2827 = vcmp.eq.s32.totalorder %v2793, %v2795
          %v2828 = vsel %vm2812, 0.0001, 0.0
          %v2829 = vsel %vm2813, 0.0001, 0.0
          %v2830 = vsel %vm2814, 0.0001, 0.0
          %v2831 = vsel %vm2815, 0.0001, 0.0
          %v2832 = vsel %vm2816, 0.0001, 0.0
          %v2833 = vsel %vm2817, 0.0001, 0.0
          %v2834 = vsel %vm2818, 0.0001, 0.0
          %v2835 = vsel %vm2819, 0.0001, 0.0
          %v2836 = vsel %vm2820, 0.0001, 0.0
          %v2837 = vsel %vm2821, 0.0001, 0.0
          %v2838 = vsel %vm2822, 0.0001, 0.0
          %v2839 = vsel %vm2823, 0.0001, 0.0
          %v2840 = vsel %vm2824, 0.0001, 0.0
          %v2841 = vsel %vm2825, 0.0001, 0.0
          %v2842 = vsel %vm2826, 0.0001, 0.0
          %v2843 = vsel %vm2827, 0.0001, 0.0
          %v2844 = vadd.f32 %v2796, %v2828
          %v2845 = vadd.f32 %v2797, %v2829
          %v2846 = vadd.f32 %v2798, %v2830
          %v2847 = vadd.f32 %v2799, %v2831
          %v2848 = vadd.f32 %v2800, %v2832
          %v2849 = vadd.f32 %v2801, %v2833
          %v2850 = vadd.f32 %v2802, %v2834
          %v2851 = vadd.f32 %v2803, %v2835
          %v2852 = vadd.f32 %v2804, %v2836
          %v2853 = vadd.f32 %v2805, %v2837
          %v2854 = vadd.f32 %v2806, %v2838
          %v2855 = vadd.f32 %v2807, %v2839
          %v2856 = vadd.f32 %v2808, %v2840
          %v2857 = vadd.f32 %v2809, %v2841
          %v2858 = vadd.f32 %v2810, %v2842
          %v2859 = vadd.f32 %v2811, %v2843
          %2860 = vst [vmem:[%s554] sm:$0xff] %v2844
          %2861 = vst [vmem:[%s554 + $0x8] sm:$0xff] %v2845
          %2862 = vst [vmem:[%s554 + $0x10] sm:$0xff] %v2846
          %2863 = vst [vmem:[%s554 + $0x18] sm:$0xff] %v2847
          %2864 = vst [vmem:[%s554 + $0x20] sm:$0xff] %v2848
          %2865 = vst [vmem:[%s554 + $0x28] sm:$0xff] %v2849
          %2866 = vst [vmem:[%s554 + $0x30] sm:$0xff] %v2850
          %2867 = vst [vmem:[%s554 + $0x38] sm:$0xff] %v2851
          %2868 = vst [vmem:[%s554 + $0x40] sm:$0xff] %v2852
          %2869 = vst [vmem:[%s554 + $0x48] sm:$0xff] %v2853
          %2870 = vst [vmem:[%s554 + $0x50] sm:$0xff] %v2854
          %2871 = vst [vmem:[%s554 + $0x58] sm:$0xff] %v2855
          %2872 = vst [vmem:[%s554 + $0x60] sm:$0xff] %v2856
          %2873 = vst [vmem:[%s554 + $0x68] sm:$0xff] %v2857
          %2874 = vst [vmem:[%s554 + $0x70] sm:$0xff] %v2858
          %2875 = vst [vmem:[%s554 + $0x78] sm:$0xff] %v2859
        $region96: #{tpu_custom_call.1} parent=63 // pred_fallthru
          _
        %s2876 = sand.u32 %s300, 1
        %s2877 = scalar_lea.sflag [#allocation8], %s2876
        %s2878 = sand.u32 %s300, 1
        %s2879 = scalar_lea.vmem [#allocation17], %s2878
        %s2880 = sand.u32 %s328, 1
        %s2881 = scalar_lea.sflag [#allocation19], %s2880
        %s2882 = sand.u32 %s328, 1
        %s2883 = smul.addr %s2882, 128
        %s2884 = scalar_lea.vmem [#allocation18], %s2883
        // Predicated region
        $region97: #{tpu_custom_call.1} parent=63 // pred_check
          %p2885 = pneg %p310
        $region98: #{tpu_custom_call.1} parent=63 // pred_check_branch
          %2887 = sbr.rel (%p2885) target = $region100
        $region99: #{tpu_custom_call.1} parent=63 // pred_region
          %s2889 = ssub.s32 16, 16
          %2890 = vsyncadd %s2877, %s2889
          %s2891 = smul.addr %s43, 16
          %s2892 = scalar_lea.hbm %s11, %s2891
          %s2894 = sshll.u32 %s2879, 4
          %s2895 = int_to_ptr.vmem [resolvable:$true] %s2894
          %2897 = dma.vmem_to_hbm [thread:$0]  %s2895, 16, %s2892, %s2877
        $region100: #{tpu_custom_call.1} parent=63 // pred_fallthru
          _
        // Predicated region
        $region101: #{tpu_custom_call.1} parent=63 // pred_check
          %p2898 = pneg %p338
        $region102: #{tpu_custom_call.1} parent=63 // pred_check_branch
          %2900 = sbr.rel (%p2898) target = $region104
        $region103: #{tpu_custom_call.1} parent=63 // pred_region
          %s2901 = smul.u32 16, %s43
          %s2903 = ssub.s32 2048, 2048
          %2904 = vsyncadd %s2881, %s2903
          %s2905 = smul.addr %s2901, 2
          %s2906 = sadd.s32 %s44, %s2905
          %s2907 = smul.addr %s2906, 128
          %s2908 = scalar_lea.hbm %s12, %s2907
          %s2909 = sshll.u32 %s2884, 4
          %s2910 = int_to_ptr.vmem [resolvable:$true] %s2909
          %2915 = dma.vmem_to_hbm [thread:$0]  %s2910, 2048, %s2908, %s2881, 128, 256, 8
        $region104: #{tpu_custom_call.1} parent=63 // pred_fallthru
          _
      $region64: #{tpu_custom_call.1} parent=5 // pred_fallthru
        _
      %p2916 = scmp.le.s32.totalorder 2, %s34
      // Predicated region
      $region105: #{tpu_custom_call.1} parent=5 // pred_check
        %p2917 = pneg %p2916
      $region106: #{tpu_custom_call.1} parent=5 // pred_check_branch
        %2919 = sbr.rel (%p2917) target = $region108
      $region107: #{tpu_custom_call.1} parent=5 // pred_region
        %s2920 = ssub.s32 %s34, 2
        // Predicated region
        $region109: #{tpu_custom_call.1} parent=107 // pred_check
          %p2921 = pneg %p316
        $region110: #{tpu_custom_call.1} parent=107 // pred_check_branch
          %2923 = sbr.rel (%p2921) target = $region112
        $region111: #{tpu_custom_call.1} parent=107 // pred_region
          %s2924 = sand.u32 %s301, 1
          %s2925 = scalar_lea.sflag [#allocation8], %s2924
          %s2926 = sand.u32 %s301, 1
          %s2927 = scalar_lea.vmem [#allocation17], %s2926
          %2928 = dma.done %s2925, 16
        $region112: #{tpu_custom_call.1} parent=107 // pred_fallthru
          _
        // Predicated region
        $region113: #{tpu_custom_call.1} parent=107 // pred_check
          %p2929 = pneg %p344
        $region114: #{tpu_custom_call.1} parent=107 // pred_check_branch
          %2931 = sbr.rel (%p2929) target = $region116
        $region115: #{tpu_custom_call.1} parent=107 // pred_region
          %s2932 = sand.u32 %s329, 1
          %s2933 = scalar_lea.sflag [#allocation19], %s2932
          %s2934 = sand.u32 %s329, 1
          %s2935 = smul.addr %s2934, 128
          %s2936 = scalar_lea.vmem [#allocation18], %s2935
          %2937 = dma.done %s2933, 2048
        $region116: #{tpu_custom_call.1} parent=107 // pred_fallthru
          _
      $region108: #{tpu_custom_call.1} parent=5 // pred_fallthru
        _
    $region6: #{tpu_custom_call.1} parent=1 // loop_footer
      %s38 = sadd.s32 1, %s34
    $region7: #{tpu_custom_call.1} parent=1 // loop_footer_branch
      %33 = sbr.rel target = $region3
    $region8: #{tpu_custom_call.1} parent=1 // loop_exit
      _
    %2938 = vsyncpa [#allocation7], 1
    %s2939 = scalar_lea.sflag [#allocation7], 1
    %2940 = vsyncpa %s2939, 1
    %2941 = vsyncpa [#allocation10], 1
    %s2942 = scalar_lea.sflag [#allocation10], 1
    %2943 = vsyncpa %s2942, 1
    %2944 = vsyncpa [#allocation13], 1
    %2945 = vsyncpa [#allocation16], 1
    %2946 = vsyncpa [#allocation8], 1
    %s2947 = scalar_lea.sflag [#allocation8], 1
    %2948 = vsyncpa %s2947, 1
    %2949 = vsyncpa [#allocation19], 1
    %s2950 = scalar_lea.sflag [#allocation19], 1
    %2951 = vsyncpa %s2950, 1

</llo_original>
